<compile_context>
chip_gen: v7x
topology: tpu7x:2x2x1
jax: 0.10.0
libtpu: 0.0.40
codegen_flags: <defaults>
</compile_context>

<pallas_src>
import math

import jax
import jax.numpy as jnp
from jax.experimental import pallas as pl
from jax.experimental.pallas import tpu as pltpu

# --- hyperparameters (globals in the reference file; small, faithful values) ---
ENC_EMB_DIM = 32
ENC_NUM_HEADS = 4
ENC_NUM_LAYERS = 2
# Faithful to the reference `dim_feedforward=enc_num_layers` (looks like a bug
# in the original code, but we keep the semantics).
ENC_FFN_DIM = ENC_NUM_LAYERS
NUM_ATTRS = 8
LN_EPS = 1e-5                  # nn.LayerNorm default
# enc_dropout is irrelevant at inference (eval mode) -> treated as 0.


def _vmem_spec():
    return pl.BlockSpec(memory_space=pltpu.MemorySpace.VMEM)


def _erf_poly(z):
    # Abramowitz & Stegun 7.1.26 (|err| < 1.5e-7).  Mosaic-safe: exp + VPU ops
    # only (lax.erf may not have a Mosaic lowering rule).
    a1, a2, a3, a4, a5 = (0.254829592, -0.284496736, 1.421413741,
                          -1.453152027, 1.061405429)
    p = 0.3275911
    sgn = jnp.where(z >= 0.0, 1.0, -1.0).astype(jnp.float32)
    az = jnp.abs(z)
    t = 1.0 / (1.0 + p * az)
    poly = ((((a5 * t + a4) * t + a3) * t + a2) * t + a1) * t
    return sgn * (1.0 - poly * jnp.exp(-az * az))


def _gelu_kernel(x):
    # torch activation='gelu' (exact erf form), via the polynomial erf above.
    return 0.5 * x * (1.0 + _erf_poly(x * jnp.float32(1.0 / math.sqrt(2.0))))


def _gelu_ref(x):
    return 0.5 * x * (1.0 + jax.lax.erf(x * jnp.float32(1.0 / math.sqrt(2.0))))


def _layernorm(x, w, b):
    mu = jnp.mean(x, axis=-1, keepdims=True)
    var = jnp.mean(jnp.square(x - mu), axis=-1, keepdims=True)
    return (x - mu) * jax.lax.rsqrt(var + LN_EPS) * w + b


# ----------------------------------------------------------------------------
# Single fused kernel: embeddings -> L encoder layers -> masked mean-pool -> fc
# ----------------------------------------------------------------------------
def fused_forward_kernel(sx_col_ref, attr_col_ref, pad_bs_ref,
                         sx_emb_ref, attr_emb_ref,
                         qkv_wT_ref, qkv_b_ref, out_wT_ref, out_b_ref,
                         ln1_w_ref, ln1_b_ref,
                         ff1_w_ref, ff1_b_ref, ff2_wT_ref, ff2_b_ref,
                         ln2_w_ref, ln2_b_ref,
                         dis_wT_ref, dis_b_ref,
                         o_ref):
    N = sx_col_ref.shape[0]                      # N = B * S (batch-major flat)
    B, S = pad_bs_ref.shape
    V_sx, E = sx_emb_ref.shape
    V_attr = attr_emb_ref.shape[0]
    L = qkv_wT_ref.shape[0]
    F = ff1_w_ref.shape[1]
    H = ENC_NUM_HEADS
    Dh = E // H
    scale = jnp.float32(1.0 / math.sqrt(Dh))

    sx_col = sx_col_ref[...]                     # (N, 1) int32
    attr_col = attr_col_ref[...]                 # (N, 1) int32

    # --- fused embedding lookup: one-hot @ VMEM-resident tables (row 0 of each
    #     table is zero, so padding_idx=0 semantics are preserved).
    iota_sx = jax.lax.broadcasted_iota(jnp.int32, (N, V_sx), 1)
    iota_at = jax.lax.broadcasted_iota(jnp.int32, (N, V_attr), 1)
    onehot_sx = (iota_sx == sx_col).astype(jnp.float32)
    onehot_at = (iota_at == attr_col).astype(jnp.float32)
    x = (jnp.dot(onehot_sx, sx_emb_ref[...], preferred_element_type=jnp.float32)
         + jnp.dot(onehot_at, attr_emb_ref[...], preferred_element_type=jnp.float32))  # (N, E)

    pad_bs = pad_bs_ref[...]                     # (B, S): 1.0 at padding
    # Additive key-padding mask, pre-broadcast ONCE (broadcast_in_dim not CSE'd).
    neg_mask = jnp.broadcast_to((pad_bs * jnp.float32(-1e9))[:, None, :], (B, S, S))

    for l in range(L):                           # static loop, weights stacked (L, ...)
        # ---- MHA: one QKV matmul with pre-transposed weights ----
        qkv = jnp.dot(x, qkv_wT_ref[l],
                      preferred_element_type=jnp.float32) + qkv_b_ref[l]   # (N, 3E)
        q3 = qkv[:, 0:E].reshape(B, S, E)
        k3 = qkv[:, E:2 * E].reshape(B, S, E)
        v3 = qkv[:, 2 * E:3 * E].reshape(B, S, E)

        out_wT = out_wT_ref[l]                   # (E, E), already (in, out)
        acc = None
        for h in range(H):                       # batched over B inside each head
            sl = slice(h * Dh, (h + 1) * Dh)
            s = jnp.einsum('bqd,bkd->bqk', q3[:, :, sl], k3[:, :, sl],
                           preferred_element_type=jnp.float32) * scale + neg_mask
            m = jnp.max(s, axis=-1, keepdims=True)
            e = jnp.exp(s - m)
            p = e * pl.reciprocal(jnp.sum(e, axis=-1, keepdims=True), approx=True)
            oh = jnp.einsum('bqk,bkd->bqd', p, v3[:, :, sl],
                            preferred_element_type=jnp.float32)           # (B, S, Dh)
            # fold the output projection in per-head -> no head concat needed
            contrib = jnp.dot(oh.reshape(N, Dh), out_wT[sl, :],
                              preferred_element_type=jnp.float32)         # (N, E)
            acc = contrib if acc is None else acc + contrib
        attn = acc + out_b_ref[l]                                          # (N, E)

        # residual + LayerNorm 1 (post-norm, default nn.TransformerEncoderLayer)
        x1 = _layernorm(x + attn, ln1_w_ref[l], ln1_b_ref[l])

        # ---- FFN (dim_feedforward=F=2): VPU broadcast-mul-reduce, no (N,2) MXU ops
        ff1_w = ff1_w_ref[l]                     # (F, E)  -- PyTorch layout (out, in)
        ff1_b = ff1_b_ref[l]                     # (1, F)
        ff2_wT = ff2_wT_ref[l]                   # (F, E)  -- pre-transposed
        ff_acc = None
        for j in range(F):
            hj = jnp.sum(x1 * ff1_w[j:j + 1, :], axis=-1, keepdims=True) \
                 + ff1_b[:, j:j + 1]             # (N, 1)
            hj = _gelu_kernel(hj)
            term = hj * ff2_wT[j:j + 1, :]       # (N, E)
            ff_acc = term if ff_acc is None else ff_acc + term
        ff = ff_acc + ff2_b_ref[l]

        # residual + LayerNorm 2
        x = _layernorm(x1 + ff, ln2_w_ref[l], ln2_b_ref[l])

    # ---- masked mean-pool over the sequence + dis_fc head ----
    real_bs1 = (1.0 - pad_bs)[:, :, None]                          # (B, S, 1)
    num = jnp.sum(x.reshape(B, S, E) * real_bs1, axis=1)           # (B, E)
    den = jnp.sum(1.0 - pad_bs, axis=1, keepdims=True)             # (B, 1)
    # NOTE: like the PyTorch reference, an all-padded column would divide by 0.
    avg = num * pl.reciprocal(den, approx=True)
    # TODO(synk): output last dim = num_dis (5) -> lane-sparse masked store;
    # unavoidable given the logical output shape, irrelevant at this size.
    o_ref[...] = jnp.dot(avg, dis_wT_ref[...],
                         preferred_element_type=jnp.float32) + dis_b_ref[...]


# ----------------------------------------------------------------------------
# Glue: parameter init (PyTorch layout), host-side packing, and the wrapper
# ----------------------------------------------------------------------------
def init_params(key, num_sxs, num_dis):
    E, Fd = ENC_EMB_DIM, ENC_FFN_DIM
    ks = iter(jax.random.split(key, 8 + 8 * ENC_NUM_LAYERS))

    def w(shape, scale=0.05):
        return (scale * jax.random.normal(next(ks), shape)).astype(jnp.float32)

    sx_emb = w((num_sxs, E)).at[0].set(0.0)        # padding_idx=0
    attr_emb = w((NUM_ATTRS, E)).at[0].set(0.0)    # padding_idx=0
    layers = []
    for _ in range(ENC_NUM_LAYERS):
        layers.append(dict(
            qkv_w=w((3 * E, E)), qkv_b=w((1, 3 * E)),
            out_w=w((E, E)),     out_b=w((1, E)),
            ln1_w=jnp.ones((1, E), jnp.float32), ln1_b=jnp.zeros((1, E), jnp.float32),
            ff1_w=w((Fd, E)),    ff1_b=w((1, Fd)),
            ff2_w=w((E, Fd)),    ff2_b=w((1, E)),
            ln2_w=jnp.ones((1, E), jnp.float32), ln2_b=jnp.zeros((1, E), jnp.float32),
        ))
    dis_w = w((num_dis, E))
    dis_b = w((1, num_dis))
    return dict(sx_emb=sx_emb, attr_emb=attr_emb, layers=layers,
                dis_w=dis_w, dis_b=dis_b)


def pack_params(params):
    """Stack per-layer weights along a leading (L,) axis and pre-transpose all
    Linear weights to (in, out) so the kernel never transposes."""
    ls = params['layers']

    def stack(key, f=lambda a: a):
        return jnp.stack([f(lp[key]) for lp in ls])

    return dict(
        sx_emb=params['sx_emb'], attr_emb=params['attr_emb'],
        qkv_wT=stack('qkv_w', lambda a: a.T),    # (L, E, 3E)
        qkv_b=stack('qkv_b'),                    # (L, 1, 3E)
        out_wT=stack('out_w', lambda a: a.T),    # (L, E, E)
        out_b=stack('out_b'),                    # (L, 1, E)
        ln1_w=stack('ln1_w'), ln1_b=stack('ln1_b'),
        ff1_w=stack('ff1_w'),                    # (L, F, E) (PyTorch layout, rows lane-dense)
        ff1_b=stack('ff1_b'),                    # (L, 1, F)
        ff2_wT=stack('ff2_w', lambda a: a.T),    # (L, F, E)
        ff2_b=stack('ff2_b'),                    # (L, 1, E)
        ln2_w=stack('ln2_w'), ln2_b=stack('ln2_b'),
        dis_wT=params['dis_w'].T,                # (E, num_dis)
        dis_b=params['dis_b'],                   # (1, num_dis)
    )


def agent_get_mp_features(packed, sx_ids, attr_ids, pad_idx=0):
    # Only integer-id plumbing stays outside the kernel (a handful of int32s).
    S, B = sx_ids.shape
    num_dis = packed['dis_wT'].shape[1]

    ids_bs = sx_ids.T.astype(jnp.int32)                       # (B, S)
    sx_col = ids_bs.reshape(B * S, 1)                         # (N, 1)
    attr_col = attr_ids.T.astype(jnp.int32).reshape(B * S, 1)
    pad_bs = (ids_bs == pad_idx).astype(jnp.float32)          # (B, S): src_key_padding_mask

    args = (sx_col, attr_col, pad_bs,
            packed['sx_emb'], packed['attr_emb'],
            packed['qkv_wT'], packed['qkv_b'], packed['out_wT'], packed['out_b'],
            packed['ln1_w'], packed['ln1_b'],
            packed['ff1_w'], packed['ff1_b'], packed['ff2_wT'], packed['ff2_b'],
            packed['ln2_w'], packed['ln2_b'],
            packed['dis_wT'], packed['dis_b'])

    return pl.pallas_call(
        fused_forward_kernel,
        out_shape=jax.ShapeDtypeStruct((B, num_dis), jnp.float32),
        in_specs=[_vmem_spec() for _ in args],
        out_specs=_vmem_spec(),
        # TODO(synk): if B grows beyond toy scale, add a grid over batch tiles
        # with dimension_semantics=("parallel",) to use a second TensorCore.
    )(*args)


# ----------------------------------------------------------------------------
# Pure-JAX reference (same math, PyTorch-layout params) for a correctness check
# ----------------------------------------------------------------------------
def _ref_encoder_layer(x, pad_bs, p):
    S, B, E = x.shape
    H, Dh = ENC_NUM_HEADS, E // ENC_NUM_HEADS

    def lin(y, w, b):
        return jnp.einsum('sbe,fe->sbf', y, w) + b.reshape(-1)

    q = lin(x, p['qkv_w'][:E], p['qkv_b'][:, :E]).reshape(S, B, H, Dh)
    k = lin(x, p['qkv_w'][E:2 * E], p['qkv_b'][:, E:2 * E]).reshape(S, B, H, Dh)
    v = lin(x, p['qkv_w'][2 * E:], p['qkv_b'][:, 2 * E:]).reshape(S, B, H, Dh)
    scores = jnp.einsum('sbhd,tbhd->bhst', q, k) / math.sqrt(Dh)
    scores = scores + pad_bs[:, None, None, :] * (-1e9)
    probs = jax.nn.softmax(scores, axis=-1)
    attn = jnp.einsum('bhst,tbhd->sbhd', probs, v).reshape(S, B, E)
    attn = lin(attn, p['out_w'], p['out_b'])
    x1 = _layernorm(x + attn, p['ln1_w'][0], p['ln1_b'][0])
    h = _gelu_ref(lin(x1, p['ff1_w'], p['ff1_b']))
    ff = lin(h, p['ff2_w'], p['ff2_b'])
    return _layernorm(x1 + ff, p['ln2_w'][0], p['ln2_b'][0])


def _ref_get_mp_features(params, sx_ids, attr_ids, pad_idx=0):
    x = (params['sx_emb'][sx_ids] + params['attr_emb'][attr_ids]).astype(jnp.float32)
    pad_bs = (sx_ids == pad_idx).astype(jnp.float32).T
    for lp in params['layers']:
        x = _ref_encoder_layer(x, pad_bs, lp)
    mp = 1.0 - (sx_ids == pad_idx).astype(jnp.float32)
    avg = jnp.sum(x * mp[:, :, None], axis=0) / jnp.sum(mp, axis=0)[:, None]
    return jnp.einsum('be,de->bd', avg, params['dis_w']) + params['dis_b'][0]


if __name__ == "__main__":
    NUM_SXS, NUM_DIS = 20, 5
    S, B = 8, 2

    key = jax.random.PRNGKey(0)
    params = init_params(key, NUM_SXS, NUM_DIS)
    packed = pack_params(params)

    # (S, B) int ids; trailing zeros are padding (padding_idx = 0)
    sx_ids = jnp.array([[3, 5], [7, 2], [1, 9], [4, 6],
                        [2, 0], [8, 0], [0, 0], [0, 0]], dtype=jnp.int32)
    attr_ids = jnp.where(sx_ids > 0, (sx_ids % (NUM_ATTRS - 1)) + 1, 0).astype(jnp.int32)

    feats = agent_get_mp_features(packed, sx_ids, attr_ids, pad_idx=0)
    feats = jax.block_until_ready(feats)                    # (B, NUM_DIS)

    ref = _ref_get_mp_features(params, sx_ids, attr_ids, pad_idx=0)
    assert feats.shape == (B, NUM_DIS)
    # tolerance covers pl.reciprocal(approx=True) in softmax / pooling and the
    # polynomial erf in gelu
    assert jnp.allclose(feats, ref, atol=2e-2, rtol=2e-2), (feats, ref)

    # `Agent.forward` itself is a no-op in the reference; `predict` would just
    # be argmax over these features:
    _ = jnp.argmax(feats, axis=-1)

    print("KERNEL_OK")
</pallas_src>

<mosaic_0001>
module attributes {stable_mosaic.version = 11 : i64} {
  func.func @fused_forward_kernel(%arg0: memref<16x1xi32, #tpu.memory_space<vmem>>, %arg1: memref<16x1xi32, #tpu.memory_space<vmem>>, %arg2: memref<2x8xf32, #tpu.memory_space<vmem>>, %arg3: memref<20x32xf32, #tpu.memory_space<vmem>>, %arg4: memref<8x32xf32, #tpu.memory_space<vmem>>, %arg5: memref<2x32x96xf32, #tpu.memory_space<vmem>>, %arg6: memref<2x1x96xf32, #tpu.memory_space<vmem>>, %arg7: memref<2x32x32xf32, #tpu.memory_space<vmem>>, %arg8: memref<2x1x32xf32, #tpu.memory_space<vmem>>, %arg9: memref<2x1x32xf32, #tpu.memory_space<vmem>>, %arg10: memref<2x1x32xf32, #tpu.memory_space<vmem>>, %arg11: memref<2x2x32xf32, #tpu.memory_space<vmem>>, %arg12: memref<2x1x2xf32, #tpu.memory_space<vmem>>, %arg13: memref<2x2x32xf32, #tpu.memory_space<vmem>>, %arg14: memref<2x1x32xf32, #tpu.memory_space<vmem>>, %arg15: memref<2x1x32xf32, #tpu.memory_space<vmem>>, %arg16: memref<2x1x32xf32, #tpu.memory_space<vmem>>, %arg17: memref<32x5xf32, #tpu.memory_space<vmem>>, %arg18: memref<1x5xf32, #tpu.memory_space<vmem>>, %arg19: memref<2x5xf32, #tpu.memory_space<vmem>>) attributes {dimension_semantics = [], scalar_prefetch = 0 : i64, scratch_operands = 0 : i64, tpu.core_type = #tpu.core_type<tc>} {
    %c0 = arith.constant 0 : index
    %c0_0 = arith.constant 0 : index
    %0 = vector.load %arg0[%c0, %c0_0] : memref<16x1xi32, #tpu.memory_space<vmem>>, vector<16x1xi32>
    %c0_1 = arith.constant 0 : index
    %c0_2 = arith.constant 0 : index
    %1 = vector.load %arg1[%c0_1, %c0_2] : memref<16x1xi32, #tpu.memory_space<vmem>>, vector<16x1xi32>
    %2 = tpu.iota {dimensions = array<i32: 1>} : vector<16x20xi32>
    %3 = tpu.iota {dimensions = array<i32: 1>} : vector<16x8xi32>
    %4 = vector.broadcast %0 : vector<16x1xi32> to vector<16x20xi32>
    %5 = arith.cmpi eq, %2, %4 : vector<16x20xi32>
    %6 = arith.extui %5 : vector<16x20xi1> to vector<16x20xi32>
    %7 = arith.sitofp %6 : vector<16x20xi32> to vector<16x20xf32>
    %8 = vector.broadcast %1 : vector<16x1xi32> to vector<16x8xi32>
    %9 = arith.cmpi eq, %3, %8 : vector<16x8xi32>
    %10 = arith.extui %9 : vector<16x8xi1> to vector<16x8xi32>
    %11 = arith.sitofp %10 : vector<16x8xi32> to vector<16x8xf32>
    %c0_3 = arith.constant 0 : index
    %c0_4 = arith.constant 0 : index
    %12 = vector.load %arg3[%c0_3, %c0_4] : memref<20x32xf32, #tpu.memory_space<vmem>>, vector<20x32xf32>
    %cst = arith.constant dense<0.000000e+00> : vector<16x32xf32>
    %13 = tpu.matmul %7, %12, %cst {dimension_numbers = #tpu.dot_dimension_numbers<[1], [0], [0], [1], [0, 0, 1, 1], [], []>} : vector<16x20xf32>, vector<20x32xf32>, vector<16x32xf32> -> vector<16x32xf32>
    %c0_5 = arith.constant 0 : index
    %c0_6 = arith.constant 0 : index
    %14 = vector.load %arg4[%c0_5, %c0_6] : memref<8x32xf32, #tpu.memory_space<vmem>>, vector<8x32xf32>
    %cst_7 = arith.constant dense<0.000000e+00> : vector<16x32xf32>
    %15 = tpu.matmul %11, %14, %cst_7 {dimension_numbers = #tpu.dot_dimension_numbers<[1], [0], [0], [1], [0, 0, 1, 1], [], []>} : vector<16x8xf32>, vector<8x32xf32>, vector<16x32xf32> -> vector<16x32xf32>
    %16 = arith.addf %13, %15 : vector<16x32xf32>
    %c0_8 = arith.constant 0 : index
    %c0_9 = arith.constant 0 : index
    %17 = vector.load %arg2[%c0_8, %c0_9] : memref<2x8xf32, #tpu.memory_space<vmem>>, vector<2x8xf32>
    %cst_10 = arith.constant -1.000000e+09 : f32
    %18 = vector.broadcast %cst_10 : f32 to vector<2x8xf32>
    %19 = arith.mulf %17, %18 : vector<2x8xf32>
    %20 = vector.shape_cast %19 : vector<2x8xf32> to vector<2x1x8xf32>
    %21 = vector.shape_cast %20 : vector<2x1x8xf32> to vector<2x1x8xf32>
    %22 = vector.broadcast %21 : vector<2x1x8xf32> to vector<2x8x8xf32>
    %c0_11 = arith.constant 0 : index
    %c0_12 = arith.constant 0 : index
    %c0_13 = arith.constant 0 : index
    %23 = vector.load %arg5[%c0_11, %c0_12, %c0_13] : memref<2x32x96xf32, #tpu.memory_space<vmem>>, vector<1x32x96xf32>
    %24 = vector.shape_cast %23 : vector<1x32x96xf32> to vector<32x96xf32>
    %cst_14 = arith.constant dense<0.000000e+00> : vector<16x96xf32>
    %25 = tpu.matmul %16, %24, %cst_14 {dimension_numbers = #tpu.dot_dimension_numbers<[1], [0], [0], [1], [0, 0, 1, 1], [], []>} : vector<16x32xf32>, vector<32x96xf32>, vector<16x96xf32> -> vector<16x96xf32>
    %c0_15 = arith.constant 0 : index
    %c0_16 = arith.constant 0 : index
    %c0_17 = arith.constant 0 : index
    %26 = vector.load %arg6[%c0_15, %c0_16, %c0_17] : memref<2x1x96xf32, #tpu.memory_space<vmem>>, vector<1x1x96xf32>
    %27 = vector.shape_cast %26 : vector<1x1x96xf32> to vector<1x96xf32>
    %28 = vector.broadcast %27 : vector<1x96xf32> to vector<16x96xf32>
    %29 = arith.addf %25, %28 : vector<16x96xf32>
    %30 = vector.extract_strided_slice %29 {offsets = [0, 0], sizes = [16, 32], strides = [1, 1]} : vector<16x96xf32> to vector<16x32xf32>
    %31 = vector.shape_cast %30 : vector<16x32xf32> to vector<2x8x32xf32>
    %32 = vector.extract_strided_slice %29 {offsets = [0, 32], sizes = [16, 32], strides = [1, 1]} : vector<16x96xf32> to vector<16x32xf32>
    %33 = vector.shape_cast %32 : vector<16x32xf32> to vector<2x8x32xf32>
    %34 = vector.extract_strided_slice %29 {offsets = [0, 64], sizes = [16, 32], strides = [1, 1]} : vector<16x96xf32> to vector<16x32xf32>
    %35 = vector.shape_cast %34 : vector<16x32xf32> to vector<2x8x32xf32>
    %c0_18 = arith.constant 0 : index
    %c0_19 = arith.constant 0 : index
    %c0_20 = arith.constant 0 : index
    %36 = vector.load %arg7[%c0_18, %c0_19, %c0_20] : memref<2x32x32xf32, #tpu.memory_space<vmem>>, vector<1x32x32xf32>
    %37 = vector.shape_cast %36 : vector<1x32x32xf32> to vector<32x32xf32>
    %38 = vector.extract_strided_slice %31 {offsets = [0, 0, 0], sizes = [2, 8, 8], strides = [1, 1, 1]} : vector<2x8x32xf32> to vector<2x8x8xf32>
    %39 = vector.extract_strided_slice %33 {offsets = [0, 0, 0], sizes = [2, 8, 8], strides = [1, 1, 1]} : vector<2x8x32xf32> to vector<2x8x8xf32>
    "tpu.trace_start"() <{level = 10 : i32, message = "bqd,bkd->bqk"}> : () -> ()
    %cst_21 = arith.constant dense<0.000000e+00> : vector<2x8x8xf32>
    %40 = tpu.matmul %38, %39, %cst_21 {dimension_numbers = #tpu.dot_dimension_numbers<[2], [2], [1], [1], [0, 0, 0, 1, 1, 1], [0], [0]>} : vector<2x8x8xf32>, vector<2x8x8xf32>, vector<2x8x8xf32> -> vector<2x8x8xf32>
    "tpu.trace_stop"() : () -> ()
    %cst_22 = arith.constant 0.353553385 : f32
    %41 = vector.broadcast %cst_22 : f32 to vector<2x8x8xf32>
    %42 = arith.mulf %40, %41 : vector<2x8x8xf32>
    %43 = arith.addf %42, %22 : vector<2x8x8xf32>
    %cst_23 = arith.constant dense<0xFF800000> : vector<2x8xf32>
    %44 = vector.multi_reduction <maximumf>, %43, %cst_23 [2] : vector<2x8x8xf32> to vector<2x8xf32>
    %45 = vector.shape_cast %44 : vector<2x8xf32> to vector<2x8x1xf32>
    %46 = vector.broadcast %45 : vector<2x8x1xf32> to vector<2x8x8xf32>
    %47 = arith.subf %43, %46 : vector<2x8x8xf32>
    %48 = math.exp %47 : vector<2x8x8xf32>
    %cst_24 = arith.constant dense<0.000000e+00> : vector<2x8xf32>
    %49 = vector.multi_reduction <add>, %48, %cst_24 [2] : vector<2x8x8xf32> to vector<2x8xf32>
    %50 = vector.shape_cast %49 : vector<2x8xf32> to vector<2x8x1xf32>
    %51 = tpu.reciprocal %50 {approx = true} : vector<2x8x1xf32> -> vector<2x8x1xf32>
    %52 = vector.broadcast %51 : vector<2x8x1xf32> to vector<2x8x8xf32>
    %53 = arith.mulf %48, %52 : vector<2x8x8xf32>
    %54 = vector.extract_strided_slice %35 {offsets = [0, 0, 0], sizes = [2, 8, 8], strides = [1, 1, 1]} : vector<2x8x32xf32> to vector<2x8x8xf32>
    "tpu.trace_start"() <{level = 10 : i32, message = "bqk,bkd->bqd"}> : () -> ()
    %cst_25 = arith.constant dense<0.000000e+00> : vector<2x8x8xf32>
    %55 = tpu.matmul %53, %54, %cst_25 {dimension_numbers = #tpu.dot_dimension_numbers<[2], [1], [1], [2], [0, 0, 0, 1, 1, 2], [0], [0]>} : vector<2x8x8xf32>, vector<2x8x8xf32>, vector<2x8x8xf32> -> vector<2x8x8xf32>
    "tpu.trace_stop"() : () -> ()
    %56 = vector.shape_cast %55 : vector<2x8x8xf32> to vector<16x8xf32>
    %57 = vector.extract_strided_slice %37 {offsets = [0, 0], sizes = [8, 32], strides = [1, 1]} : vector<32x32xf32> to vector<8x32xf32>
    %cst_26 = arith.constant dense<0.000000e+00> : vector<16x32xf32>
    %58 = tpu.matmul %56, %57, %cst_26 {dimension_numbers = #tpu.dot_dimension_numbers<[1], [0], [0], [1], [0, 0, 1, 1], [], []>} : vector<16x8xf32>, vector<8x32xf32>, vector<16x32xf32> -> vector<16x32xf32>
    %59 = vector.extract_strided_slice %31 {offsets = [0, 0, 8], sizes = [2, 8, 8], strides = [1, 1, 1]} : vector<2x8x32xf32> to vector<2x8x8xf32>
    %60 = vector.extract_strided_slice %33 {offsets = [0, 0, 8], sizes = [2, 8, 8], strides = [1, 1, 1]} : vector<2x8x32xf32> to vector<2x8x8xf32>
    "tpu.trace_start"() <{level = 10 : i32, message = "bqd,bkd->bqk"}> : () -> ()
    %cst_27 = arith.constant dense<0.000000e+00> : vector<2x8x8xf32>
    %61 = tpu.matmul %59, %60, %cst_27 {dimension_numbers = #tpu.dot_dimension_numbers<[2], [2], [1], [1], [0, 0, 0, 1, 1, 1], [0], [0]>} : vector<2x8x8xf32>, vector<2x8x8xf32>, vector<2x8x8xf32> -> vector<2x8x8xf32>
    "tpu.trace_stop"() : () -> ()
    %cst_28 = arith.constant 0.353553385 : f32
    %62 = vector.broadcast %cst_28 : f32 to vector<2x8x8xf32>
    %63 = arith.mulf %61, %62 : vector<2x8x8xf32>
    %64 = arith.addf %63, %22 : vector<2x8x8xf32>
    %cst_29 = arith.constant dense<0xFF800000> : vector<2x8xf32>
    %65 = vector.multi_reduction <maximumf>, %64, %cst_29 [2] : vector<2x8x8xf32> to vector<2x8xf32>
    %66 = vector.shape_cast %65 : vector<2x8xf32> to vector<2x8x1xf32>
    %67 = vector.broadcast %66 : vector<2x8x1xf32> to vector<2x8x8xf32>
    %68 = arith.subf %64, %67 : vector<2x8x8xf32>
    %69 = math.exp %68 : vector<2x8x8xf32>
    %cst_30 = arith.constant dense<0.000000e+00> : vector<2x8xf32>
    %70 = vector.multi_reduction <add>, %69, %cst_30 [2] : vector<2x8x8xf32> to vector<2x8xf32>
    %71 = vector.shape_cast %70 : vector<2x8xf32> to vector<2x8x1xf32>
    %72 = tpu.reciprocal %71 {approx = true} : vector<2x8x1xf32> -> vector<2x8x1xf32>
    %73 = vector.broadcast %72 : vector<2x8x1xf32> to vector<2x8x8xf32>
    %74 = arith.mulf %69, %73 : vector<2x8x8xf32>
    %75 = vector.extract_strided_slice %35 {offsets = [0, 0, 8], sizes = [2, 8, 8], strides = [1, 1, 1]} : vector<2x8x32xf32> to vector<2x8x8xf32>
    "tpu.trace_start"() <{level = 10 : i32, message = "bqk,bkd->bqd"}> : () -> ()
    %cst_31 = arith.constant dense<0.000000e+00> : vector<2x8x8xf32>
    %76 = tpu.matmul %74, %75, %cst_31 {dimension_numbers = #tpu.dot_dimension_numbers<[2], [1], [1], [2], [0, 0, 0, 1, 1, 2], [0], [0]>} : vector<2x8x8xf32>, vector<2x8x8xf32>, vector<2x8x8xf32> -> vector<2x8x8xf32>
    "tpu.trace_stop"() : () -> ()
    %77 = vector.shape_cast %76 : vector<2x8x8xf32> to vector<16x8xf32>
    %78 = vector.extract_strided_slice %37 {offsets = [8, 0], sizes = [8, 32], strides = [1, 1]} : vector<32x32xf32> to vector<8x32xf32>
    %cst_32 = arith.constant dense<0.000000e+00> : vector<16x32xf32>
    %79 = tpu.matmul %77, %78, %cst_32 {dimension_numbers = #tpu.dot_dimension_numbers<[1], [0], [0], [1], [0, 0, 1, 1], [], []>} : vector<16x8xf32>, vector<8x32xf32>, vector<16x32xf32> -> vector<16x32xf32>
    %80 = arith.addf %58, %79 : vector<16x32xf32>
    %81 = vector.extract_strided_slice %31 {offsets = [0, 0, 16], sizes = [2, 8, 8], strides = [1, 1, 1]} : vector<2x8x32xf32> to vector<2x8x8xf32>
    %82 = vector.extract_strided_slice %33 {offsets = [0, 0, 16], sizes = [2, 8, 8], strides = [1, 1, 1]} : vector<2x8x32xf32> to vector<2x8x8xf32>
    "tpu.trace_start"() <{level = 10 : i32, message = "bqd,bkd->bqk"}> : () -> ()
    %cst_33 = arith.constant dense<0.000000e+00> : vector<2x8x8xf32>
    %83 = tpu.matmul %81, %82, %cst_33 {dimension_numbers = #tpu.dot_dimension_numbers<[2], [2], [1], [1], [0, 0, 0, 1, 1, 1], [0], [0]>} : vector<2x8x8xf32>, vector<2x8x8xf32>, vector<2x8x8xf32> -> vector<2x8x8xf32>
    "tpu.trace_stop"() : () -> ()
    %cst_34 = arith.constant 0.353553385 : f32
    %84 = vector.broadcast %cst_34 : f32 to vector<2x8x8xf32>
    %85 = arith.mulf %83, %84 : vector<2x8x8xf32>
    %86 = arith.addf %85, %22 : vector<2x8x8xf32>
    %cst_35 = arith.constant dense<0xFF800000> : vector<2x8xf32>
    %87 = vector.multi_reduction <maximumf>, %86, %cst_35 [2] : vector<2x8x8xf32> to vector<2x8xf32>
    %88 = vector.shape_cast %87 : vector<2x8xf32> to vector<2x8x1xf32>
    %89 = vector.broadcast %88 : vector<2x8x1xf32> to vector<2x8x8xf32>
    %90 = arith.subf %86, %89 : vector<2x8x8xf32>
    %91 = math.exp %90 : vector<2x8x8xf32>
    %cst_36 = arith.constant dense<0.000000e+00> : vector<2x8xf32>
    %92 = vector.multi_reduction <add>, %91, %cst_36 [2] : vector<2x8x8xf32> to vector<2x8xf32>
    %93 = vector.shape_cast %92 : vector<2x8xf32> to vector<2x8x1xf32>
    %94 = tpu.reciprocal %93 {approx = true} : vector<2x8x1xf32> -> vector<2x8x1xf32>
    %95 = vector.broadcast %94 : vector<2x8x1xf32> to vector<2x8x8xf32>
    %96 = arith.mulf %91, %95 : vector<2x8x8xf32>
    %97 = vector.extract_strided_slice %35 {offsets = [0, 0, 16], sizes = [2, 8, 8], strides = [1, 1, 1]} : vector<2x8x32xf32> to vector<2x8x8xf32>
    "tpu.trace_start"() <{level = 10 : i32, message = "bqk,bkd->bqd"}> : () -> ()
    %cst_37 = arith.constant dense<0.000000e+00> : vector<2x8x8xf32>
    %98 = tpu.matmul %96, %97, %cst_37 {dimension_numbers = #tpu.dot_dimension_numbers<[2], [1], [1], [2], [0, 0, 0, 1, 1, 2], [0], [0]>} : vector<2x8x8xf32>, vector<2x8x8xf32>, vector<2x8x8xf32> -> vector<2x8x8xf32>
    "tpu.trace_stop"() : () -> ()
    %99 = vector.shape_cast %98 : vector<2x8x8xf32> to vector<16x8xf32>
    %100 = vector.extract_strided_slice %37 {offsets = [16, 0], sizes = [8, 32], strides = [1, 1]} : vector<32x32xf32> to vector<8x32xf32>
    %cst_38 = arith.constant dense<0.000000e+00> : vector<16x32xf32>
    %101 = tpu.matmul %99, %100, %cst_38 {dimension_numbers = #tpu.dot_dimension_numbers<[1], [0], [0], [1], [0, 0, 1, 1], [], []>} : vector<16x8xf32>, vector<8x32xf32>, vector<16x32xf32> -> vector<16x32xf32>
    %102 = arith.addf %80, %101 : vector<16x32xf32>
    %103 = vector.extract_strided_slice %31 {offsets = [0, 0, 24], sizes = [2, 8, 8], strides = [1, 1, 1]} : vector<2x8x32xf32> to vector<2x8x8xf32>
    %104 = vector.extract_strided_slice %33 {offsets = [0, 0, 24], sizes = [2, 8, 8], strides = [1, 1, 1]} : vector<2x8x32xf32> to vector<2x8x8xf32>
    "tpu.trace_start"() <{level = 10 : i32, message = "bqd,bkd->bqk"}> : () -> ()
    %cst_39 = arith.constant dense<0.000000e+00> : vector<2x8x8xf32>
    %105 = tpu.matmul %103, %104, %cst_39 {dimension_numbers = #tpu.dot_dimension_numbers<[2], [2], [1], [1], [0, 0, 0, 1, 1, 1], [0], [0]>} : vector<2x8x8xf32>, vector<2x8x8xf32>, vector<2x8x8xf32> -> vector<2x8x8xf32>
    "tpu.trace_stop"() : () -> ()
    %cst_40 = arith.constant 0.353553385 : f32
    %106 = vector.broadcast %cst_40 : f32 to vector<2x8x8xf32>
    %107 = arith.mulf %105, %106 : vector<2x8x8xf32>
    %108 = arith.addf %107, %22 : vector<2x8x8xf32>
    %cst_41 = arith.constant dense<0xFF800000> : vector<2x8xf32>
    %109 = vector.multi_reduction <maximumf>, %108, %cst_41 [2] : vector<2x8x8xf32> to vector<2x8xf32>
    %110 = vector.shape_cast %109 : vector<2x8xf32> to vector<2x8x1xf32>
    %111 = vector.broadcast %110 : vector<2x8x1xf32> to vector<2x8x8xf32>
    %112 = arith.subf %108, %111 : vector<2x8x8xf32>
    %113 = math.exp %112 : vector<2x8x8xf32>
    %cst_42 = arith.constant dense<0.000000e+00> : vector<2x8xf32>
    %114 = vector.multi_reduction <add>, %113, %cst_42 [2] : vector<2x8x8xf32> to vector<2x8xf32>
    %115 = vector.shape_cast %114 : vector<2x8xf32> to vector<2x8x1xf32>
    %116 = tpu.reciprocal %115 {approx = true} : vector<2x8x1xf32> -> vector<2x8x1xf32>
    %117 = vector.broadcast %116 : vector<2x8x1xf32> to vector<2x8x8xf32>
    %118 = arith.mulf %113, %117 : vector<2x8x8xf32>
    %119 = vector.extract_strided_slice %35 {offsets = [0, 0, 24], sizes = [2, 8, 8], strides = [1, 1, 1]} : vector<2x8x32xf32> to vector<2x8x8xf32>
    "tpu.trace_start"() <{level = 10 : i32, message = "bqk,bkd->bqd"}> : () -> ()
    %cst_43 = arith.constant dense<0.000000e+00> : vector<2x8x8xf32>
    %120 = tpu.matmul %118, %119, %cst_43 {dimension_numbers = #tpu.dot_dimension_numbers<[2], [1], [1], [2], [0, 0, 0, 1, 1, 2], [0], [0]>} : vector<2x8x8xf32>, vector<2x8x8xf32>, vector<2x8x8xf32> -> vector<2x8x8xf32>
    "tpu.trace_stop"() : () -> ()
    %121 = vector.shape_cast %120 : vector<2x8x8xf32> to vector<16x8xf32>
    %122 = vector.extract_strided_slice %37 {offsets = [24, 0], sizes = [8, 32], strides = [1, 1]} : vector<32x32xf32> to vector<8x32xf32>
    %cst_44 = arith.constant dense<0.000000e+00> : vector<16x32xf32>
    %123 = tpu.matmul %121, %122, %cst_44 {dimension_numbers = #tpu.dot_dimension_numbers<[1], [0], [0], [1], [0, 0, 1, 1], [], []>} : vector<16x8xf32>, vector<8x32xf32>, vector<16x32xf32> -> vector<16x32xf32>
    %124 = arith.addf %102, %123 : vector<16x32xf32>
    %c0_45 = arith.constant 0 : index
    %c0_46 = arith.constant 0 : index
    %c0_47 = arith.constant 0 : index
    %125 = vector.load %arg8[%c0_45, %c0_46, %c0_47] : memref<2x1x32xf32, #tpu.memory_space<vmem>>, vector<1x1x32xf32>
    %126 = vector.shape_cast %125 : vector<1x1x32xf32> to vector<1x32xf32>
    %127 = vector.broadcast %126 : vector<1x32xf32> to vector<16x32xf32>
    %128 = arith.addf %124, %127 : vector<16x32xf32>
    %129 = arith.addf %16, %128 : vector<16x32xf32>
    %c0_48 = arith.constant 0 : index
    %c0_49 = arith.constant 0 : index
    %c0_50 = arith.constant 0 : index
    %130 = vector.load %arg9[%c0_48, %c0_49, %c0_50] : memref<2x1x32xf32, #tpu.memory_space<vmem>>, vector<1x1x32xf32>
    %131 = vector.shape_cast %130 : vector<1x1x32xf32> to vector<1x32xf32>
    %c0_51 = arith.constant 0 : index
    %c0_52 = arith.constant 0 : index
    %c0_53 = arith.constant 0 : index
    %132 = vector.load %arg10[%c0_51, %c0_52, %c0_53] : memref<2x1x32xf32, #tpu.memory_space<vmem>>, vector<1x1x32xf32>
    %133 = vector.shape_cast %132 : vector<1x1x32xf32> to vector<1x32xf32>
    %cst_54 = arith.constant dense<0.000000e+00> : vector<16xf32>
    %134 = vector.multi_reduction <add>, %129, %cst_54 [1] : vector<16x32xf32> to vector<16xf32>
    %135 = vector.shape_cast %134 : vector<16xf32> to vector<16x1xf32>
    %cst_55 = arith.constant 3.200000e+01 : f32
    %136 = vector.broadcast %cst_55 : f32 to vector<16x1xf32>
    %137 = arith.divf %135, %136 : vector<16x1xf32>
    %138 = vector.broadcast %137 : vector<16x1xf32> to vector<16x32xf32>
    %139 = arith.subf %129, %138 : vector<16x32xf32>
    %140 = arith.mulf %139, %139 : vector<16x32xf32>
    %cst_56 = arith.constant dense<0.000000e+00> : vector<16xf32>
    %141 = vector.multi_reduction <add>, %140, %cst_56 [1] : vector<16x32xf32> to vector<16xf32>
    %142 = vector.shape_cast %141 : vector<16xf32> to vector<16x1xf32>
    %cst_57 = arith.constant 3.200000e+01 : f32
    %143 = vector.broadcast %cst_57 : f32 to vector<16x1xf32>
    %144 = arith.divf %142, %143 : vector<16x1xf32>
    %145 = vector.broadcast %137 : vector<16x1xf32> to vector<16x32xf32>
    %146 = arith.subf %129, %145 : vector<16x32xf32>
    %cst_58 = arith.constant 9.99999974E-6 : f32
    %147 = vector.broadcast %cst_58 : f32 to vector<16x1xf32>
    %148 = arith.addf %144, %147 : vector<16x1xf32>
    %149 = math.rsqrt %148 : vector<16x1xf32>
    %150 = vector.broadcast %149 : vector<16x1xf32> to vector<16x32xf32>
    %151 = arith.mulf %146, %150 : vector<16x32xf32>
    %152 = vector.broadcast %131 : vector<1x32xf32> to vector<16x32xf32>
    %153 = arith.mulf %151, %152 : vector<16x32xf32>
    %154 = vector.broadcast %133 : vector<1x32xf32> to vector<16x32xf32>
    %155 = arith.addf %153, %154 : vector<16x32xf32>
    %c0_59 = arith.constant 0 : index
    %c0_60 = arith.constant 0 : index
    %c0_61 = arith.constant 0 : index
    %156 = vector.load %arg11[%c0_59, %c0_60, %c0_61] : memref<2x2x32xf32, #tpu.memory_space<vmem>>, vector<1x2x32xf32>
    %157 = vector.shape_cast %156 : vector<1x2x32xf32> to vector<2x32xf32>
    %c0_62 = arith.constant 0 : index
    %c0_63 = arith.constant 0 : index
    %c0_64 = arith.constant 0 : index
    %158 = vector.load %arg12[%c0_62, %c0_63, %c0_64] : memref<2x1x2xf32, #tpu.memory_space<vmem>>, vector<1x1x2xf32>
    %159 = vector.shape_cast %158 : vector<1x1x2xf32> to vector<1x2xf32>
    %c0_65 = arith.constant 0 : index
    %c0_66 = arith.constant 0 : index
    %c0_67 = arith.constant 0 : index
    %160 = vector.load %arg13[%c0_65, %c0_66, %c0_67] : memref<2x2x32xf32, #tpu.memory_space<vmem>>, vector<1x2x32xf32>
    %161 = vector.shape_cast %160 : vector<1x2x32xf32> to vector<2x32xf32>
    %162 = vector.extract_strided_slice %157 {offsets = [0, 0], sizes = [1, 32], strides = [1, 1]} : vector<2x32xf32> to vector<1x32xf32>
    %163 = vector.broadcast %162 : vector<1x32xf32> to vector<16x32xf32>
    %164 = arith.mulf %155, %163 : vector<16x32xf32>
    %cst_68 = arith.constant dense<0.000000e+00> : vector<16xf32>
    %165 = vector.multi_reduction <add>, %164, %cst_68 [1] : vector<16x32xf32> to vector<16xf32>
    %166 = vector.shape_cast %165 : vector<16xf32> to vector<16x1xf32>
    %167 = vector.extract_strided_slice %159 {offsets = [0, 0], sizes = [1, 1], strides = [1, 1]} : vector<1x2xf32> to vector<1x1xf32>
    %168 = vector.broadcast %167 : vector<1x1xf32> to vector<16x1xf32>
    %169 = arith.addf %166, %168 : vector<16x1xf32>
    %cst_69 = arith.constant 5.000000e-01 : f32
    %170 = vector.broadcast %cst_69 : f32 to vector<16x1xf32>
    %171 = arith.mulf %170, %169 : vector<16x1xf32>
    %cst_70 = arith.constant 0.707106769 : f32
    %172 = vector.broadcast %cst_70 : f32 to vector<16x1xf32>
    %173 = arith.mulf %169, %172 : vector<16x1xf32>
    %cst_71 = arith.constant 0.000000e+00 : f32
    %174 = vector.broadcast %cst_71 : f32 to vector<16x1xf32>
    %175 = arith.cmpf oge, %173, %174 : vector<16x1xf32>
    %cst_72 = arith.constant 1.000000e+00 : f32
    %cst_73 = arith.constant -1.000000e+00 : f32
    %176 = vector.broadcast %cst_72 : f32 to vector<16x1xf32>
    %177 = vector.broadcast %cst_73 : f32 to vector<16x1xf32>
    %178 = arith.select %175, %176, %177 : vector<16x1xi1>, vector<16x1xf32>
    %179 = math.absf %173 : vector<16x1xf32>
    %cst_74 = arith.constant 0.327591091 : f32
    %180 = vector.broadcast %cst_74 : f32 to vector<16x1xf32>
    %181 = arith.mulf %180, %179 : vector<16x1xf32>
    %cst_75 = arith.constant 1.000000e+00 : f32
    %182 = vector.broadcast %cst_75 : f32 to vector<16x1xf32>
    %183 = arith.addf %182, %181 : vector<16x1xf32>
    %cst_76 = arith.constant 1.000000e+00 : f32
    %184 = vector.broadcast %cst_76 : f32 to vector<16x1xf32>
    %185 = arith.divf %184, %183 : vector<16x1xf32>
    %cst_77 = arith.constant 1.06140542 : f32
    %186 = vector.broadcast %cst_77 : f32 to vector<16x1xf32>
    %187 = arith.mulf %186, %185 : vector<16x1xf32>
    %cst_78 = arith.constant -1.45315206 : f32
    %188 = vector.broadcast %cst_78 : f32 to vector<16x1xf32>
    %189 = arith.addf %187, %188 : vector<16x1xf32>
    %190 = arith.mulf %189, %185 : vector<16x1xf32>
    %cst_79 = arith.constant 1.42141378 : f32
    %191 = vector.broadcast %cst_79 : f32 to vector<16x1xf32>
    %192 = arith.addf %190, %191 : vector<16x1xf32>
    %193 = arith.mulf %192, %185 : vector<16x1xf32>
    %cst_80 = arith.constant -0.284496725 : f32
    %194 = vector.broadcast %cst_80 : f32 to vector<16x1xf32>
    %195 = arith.addf %193, %194 : vector<16x1xf32>
    %196 = arith.mulf %195, %185 : vector<16x1xf32>
    %cst_81 = arith.constant 0.254829586 : f32
    %197 = vector.broadcast %cst_81 : f32 to vector<16x1xf32>
    %198 = arith.addf %196, %197 : vector<16x1xf32>
    %199 = arith.mulf %198, %185 : vector<16x1xf32>
    %cst_82 = arith.constant 0.000000e+00 : f32
    %200 = vector.broadcast %cst_82 : f32 to vector<16x1xf32>
    %201 = arith.subf %200, %179 : vector<16x1xf32>
    %202 = arith.mulf %201, %179 : vector<16x1xf32>
    %203 = math.exp %202 : vector<16x1xf32>
    %204 = arith.mulf %199, %203 : vector<16x1xf32>
    %cst_83 = arith.constant 1.000000e+00 : f32
    %205 = vector.broadcast %cst_83 : f32 to vector<16x1xf32>
    %206 = arith.subf %205, %204 : vector<16x1xf32>
    %207 = arith.mulf %178, %206 : vector<16x1xf32>
    %cst_84 = arith.constant 1.000000e+00 : f32
    %208 = vector.broadcast %cst_84 : f32 to vector<16x1xf32>
    %209 = arith.addf %208, %207 : vector<16x1xf32>
    %210 = arith.mulf %171, %209 : vector<16x1xf32>
    %211 = vector.extract_strided_slice %161 {offsets = [0, 0], sizes = [1, 32], strides = [1, 1]} : vector<2x32xf32> to vector<1x32xf32>
    %212 = vector.broadcast %210 : vector<16x1xf32> to vector<16x32xf32>
    %213 = vector.broadcast %211 : vector<1x32xf32> to vector<16x32xf32>
    %214 = arith.mulf %212, %213 : vector<16x32xf32>
    %215 = vector.extract_strided_slice %157 {offsets = [1, 0], sizes = [1, 32], strides = [1, 1]} : vector<2x32xf32> to vector<1x32xf32>
    %216 = vector.broadcast %215 : vector<1x32xf32> to vector<16x32xf32>
    %217 = arith.mulf %155, %216 : vector<16x32xf32>
    %cst_85 = arith.constant dense<0.000000e+00> : vector<16xf32>
    %218 = vector.multi_reduction <add>, %217, %cst_85 [1] : vector<16x32xf32> to vector<16xf32>
    %219 = vector.shape_cast %218 : vector<16xf32> to vector<16x1xf32>
    %220 = vector.extract_strided_slice %159 {offsets = [0, 1], sizes = [1, 1], strides = [1, 1]} : vector<1x2xf32> to vector<1x1xf32>
    %221 = vector.broadcast %220 : vector<1x1xf32> to vector<16x1xf32>
    %222 = arith.addf %219, %221 : vector<16x1xf32>
    %cst_86 = arith.constant 5.000000e-01 : f32
    %223 = vector.broadcast %cst_86 : f32 to vector<16x1xf32>
    %224 = arith.mulf %223, %222 : vector<16x1xf32>
    %cst_87 = arith.constant 0.707106769 : f32
    %225 = vector.broadcast %cst_87 : f32 to vector<16x1xf32>
    %226 = arith.mulf %222, %225 : vector<16x1xf32>
    %cst_88 = arith.constant 0.000000e+00 : f32
    %227 = vector.broadcast %cst_88 : f32 to vector<16x1xf32>
    %228 = arith.cmpf oge, %226, %227 : vector<16x1xf32>
    %cst_89 = arith.constant 1.000000e+00 : f32
    %cst_90 = arith.constant -1.000000e+00 : f32
    %229 = vector.broadcast %cst_89 : f32 to vector<16x1xf32>
    %230 = vector.broadcast %cst_90 : f32 to vector<16x1xf32>
    %231 = arith.select %228, %229, %230 : vector<16x1xi1>, vector<16x1xf32>
    %232 = math.absf %226 : vector<16x1xf32>
    %cst_91 = arith.constant 0.327591091 : f32
    %233 = vector.broadcast %cst_91 : f32 to vector<16x1xf32>
    %234 = arith.mulf %233, %232 : vector<16x1xf32>
    %cst_92 = arith.constant 1.000000e+00 : f32
    %235 = vector.broadcast %cst_92 : f32 to vector<16x1xf32>
    %236 = arith.addf %235, %234 : vector<16x1xf32>
    %cst_93 = arith.constant 1.000000e+00 : f32
    %237 = vector.broadcast %cst_93 : f32 to vector<16x1xf32>
    %238 = arith.divf %237, %236 : vector<16x1xf32>
    %cst_94 = arith.constant 1.06140542 : f32
    %239 = vector.broadcast %cst_94 : f32 to vector<16x1xf32>
    %240 = arith.mulf %239, %238 : vector<16x1xf32>
    %cst_95 = arith.constant -1.45315206 : f32
    %241 = vector.broadcast %cst_95 : f32 to vector<16x1xf32>
    %242 = arith.addf %240, %241 : vector<16x1xf32>
    %243 = arith.mulf %242, %238 : vector<16x1xf32>
    %cst_96 = arith.constant 1.42141378 : f32
    %244 = vector.broadcast %cst_96 : f32 to vector<16x1xf32>
    %245 = arith.addf %243, %244 : vector<16x1xf32>
    %246 = arith.mulf %245, %238 : vector<16x1xf32>
    %cst_97 = arith.constant -0.284496725 : f32
    %247 = vector.broadcast %cst_97 : f32 to vector<16x1xf32>
    %248 = arith.addf %246, %247 : vector<16x1xf32>
    %249 = arith.mulf %248, %238 : vector<16x1xf32>
    %cst_98 = arith.constant 0.254829586 : f32
    %250 = vector.broadcast %cst_98 : f32 to vector<16x1xf32>
    %251 = arith.addf %249, %250 : vector<16x1xf32>
    %252 = arith.mulf %251, %238 : vector<16x1xf32>
    %cst_99 = arith.constant 0.000000e+00 : f32
    %253 = vector.broadcast %cst_99 : f32 to vector<16x1xf32>
    %254 = arith.subf %253, %232 : vector<16x1xf32>
    %255 = arith.mulf %254, %232 : vector<16x1xf32>
    %256 = math.exp %255 : vector<16x1xf32>
    %257 = arith.mulf %252, %256 : vector<16x1xf32>
    %cst_100 = arith.constant 1.000000e+00 : f32
    %258 = vector.broadcast %cst_100 : f32 to vector<16x1xf32>
    %259 = arith.subf %258, %257 : vector<16x1xf32>
    %260 = arith.mulf %231, %259 : vector<16x1xf32>
    %cst_101 = arith.constant 1.000000e+00 : f32
    %261 = vector.broadcast %cst_101 : f32 to vector<16x1xf32>
    %262 = arith.addf %261, %260 : vector<16x1xf32>
    %263 = arith.mulf %224, %262 : vector<16x1xf32>
    %264 = vector.extract_strided_slice %161 {offsets = [1, 0], sizes = [1, 32], strides = [1, 1]} : vector<2x32xf32> to vector<1x32xf32>
    %265 = vector.broadcast %263 : vector<16x1xf32> to vector<16x32xf32>
    %266 = vector.broadcast %264 : vector<1x32xf32> to vector<16x32xf32>
    %267 = arith.mulf %265, %266 : vector<16x32xf32>
    %268 = arith.addf %214, %267 : vector<16x32xf32>
    %c0_102 = arith.constant 0 : index
    %c0_103 = arith.constant 0 : index
    %c0_104 = arith.constant 0 : index
    %269 = vector.load %arg14[%c0_102, %c0_103, %c0_104] : memref<2x1x32xf32, #tpu.memory_space<vmem>>, vector<1x1x32xf32>
    %270 = vector.shape_cast %269 : vector<1x1x32xf32> to vector<1x32xf32>
    %271 = vector.broadcast %270 : vector<1x32xf32> to vector<16x32xf32>
    %272 = arith.addf %268, %271 : vector<16x32xf32>
    %273 = arith.addf %155, %272 : vector<16x32xf32>
    %c0_105 = arith.constant 0 : index
    %c0_106 = arith.constant 0 : index
    %c0_107 = arith.constant 0 : index
    %274 = vector.load %arg15[%c0_105, %c0_106, %c0_107] : memref<2x1x32xf32, #tpu.memory_space<vmem>>, vector<1x1x32xf32>
    %275 = vector.shape_cast %274 : vector<1x1x32xf32> to vector<1x32xf32>
    %c0_108 = arith.constant 0 : index
    %c0_109 = arith.constant 0 : index
    %c0_110 = arith.constant 0 : index
    %276 = vector.load %arg16[%c0_108, %c0_109, %c0_110] : memref<2x1x32xf32, #tpu.memory_space<vmem>>, vector<1x1x32xf32>
    %277 = vector.shape_cast %276 : vector<1x1x32xf32> to vector<1x32xf32>
    %cst_111 = arith.constant dense<0.000000e+00> : vector<16xf32>
    %278 = vector.multi_reduction <add>, %273, %cst_111 [1] : vector<16x32xf32> to vector<16xf32>
    %279 = vector.shape_cast %278 : vector<16xf32> to vector<16x1xf32>
    %cst_112 = arith.constant 3.200000e+01 : f32
    %280 = vector.broadcast %cst_112 : f32 to vector<16x1xf32>
    %281 = arith.divf %279, %280 : vector<16x1xf32>
    %282 = vector.broadcast %281 : vector<16x1xf32> to vector<16x32xf32>
    %283 = arith.subf %273, %282 : vector<16x32xf32>
    %284 = arith.mulf %283, %283 : vector<16x32xf32>
    %cst_113 = arith.constant dense<0.000000e+00> : vector<16xf32>
    %285 = vector.multi_reduction <add>, %284, %cst_113 [1] : vector<16x32xf32> to vector<16xf32>
    %286 = vector.shape_cast %285 : vector<16xf32> to vector<16x1xf32>
    %cst_114 = arith.constant 3.200000e+01 : f32
    %287 = vector.broadcast %cst_114 : f32 to vector<16x1xf32>
    %288 = arith.divf %286, %287 : vector<16x1xf32>
    %289 = vector.broadcast %281 : vector<16x1xf32> to vector<16x32xf32>
    %290 = arith.subf %273, %289 : vector<16x32xf32>
    %cst_115 = arith.constant 9.99999974E-6 : f32
    %291 = vector.broadcast %cst_115 : f32 to vector<16x1xf32>
    %292 = arith.addf %288, %291 : vector<16x1xf32>
    %293 = math.rsqrt %292 : vector<16x1xf32>
    %294 = vector.broadcast %293 : vector<16x1xf32> to vector<16x32xf32>
    %295 = arith.mulf %290, %294 : vector<16x32xf32>
    %296 = vector.broadcast %275 : vector<1x32xf32> to vector<16x32xf32>
    %297 = arith.mulf %295, %296 : vector<16x32xf32>
    %298 = vector.broadcast %277 : vector<1x32xf32> to vector<16x32xf32>
    %299 = arith.addf %297, %298 : vector<16x32xf32>
    %c1 = arith.constant 1 : index
    %c0_116 = arith.constant 0 : index
    %c0_117 = arith.constant 0 : index
    %300 = vector.load %arg5[%c1, %c0_116, %c0_117] : memref<2x32x96xf32, #tpu.memory_space<vmem>>, vector<1x32x96xf32>
    %301 = vector.shape_cast %300 : vector<1x32x96xf32> to vector<32x96xf32>
    %cst_118 = arith.constant dense<0.000000e+00> : vector<16x96xf32>
    %302 = tpu.matmul %299, %301, %cst_118 {dimension_numbers = #tpu.dot_dimension_numbers<[1], [0], [0], [1], [0, 0, 1, 1], [], []>} : vector<16x32xf32>, vector<32x96xf32>, vector<16x96xf32> -> vector<16x96xf32>
    %c1_119 = arith.constant 1 : index
    %c0_120 = arith.constant 0 : index
    %c0_121 = arith.constant 0 : index
    %303 = vector.load %arg6[%c1_119, %c0_120, %c0_121] : memref<2x1x96xf32, #tpu.memory_space<vmem>>, vector<1x1x96xf32>
    %304 = vector.shape_cast %303 : vector<1x1x96xf32> to vector<1x96xf32>
    %305 = vector.broadcast %304 : vector<1x96xf32> to vector<16x96xf32>
    %306 = arith.addf %302, %305 : vector<16x96xf32>
    %307 = vector.extract_strided_slice %306 {offsets = [0, 0], sizes = [16, 32], strides = [1, 1]} : vector<16x96xf32> to vector<16x32xf32>
    %308 = vector.shape_cast %307 : vector<16x32xf32> to vector<2x8x32xf32>
    %309 = vector.extract_strided_slice %306 {offsets = [0, 32], sizes = [16, 32], strides = [1, 1]} : vector<16x96xf32> to vector<16x32xf32>
    %310 = vector.shape_cast %309 : vector<16x32xf32> to vector<2x8x32xf32>
    %311 = vector.extract_strided_slice %306 {offsets = [0, 64], sizes = [16, 32], strides = [1, 1]} : vector<16x96xf32> to vector<16x32xf32>
    %312 = vector.shape_cast %311 : vector<16x32xf32> to vector<2x8x32xf32>
    %c1_122 = arith.constant 1 : index
    %c0_123 = arith.constant 0 : index
    %c0_124 = arith.constant 0 : index
    %313 = vector.load %arg7[%c1_122, %c0_123, %c0_124] : memref<2x32x32xf32, #tpu.memory_space<vmem>>, vector<1x32x32xf32>
    %314 = vector.shape_cast %313 : vector<1x32x32xf32> to vector<32x32xf32>
    %315 = vector.extract_strided_slice %308 {offsets = [0, 0, 0], sizes = [2, 8, 8], strides = [1, 1, 1]} : vector<2x8x32xf32> to vector<2x8x8xf32>
    %316 = vector.extract_strided_slice %310 {offsets = [0, 0, 0], sizes = [2, 8, 8], strides = [1, 1, 1]} : vector<2x8x32xf32> to vector<2x8x8xf32>
    "tpu.trace_start"() <{level = 10 : i32, message = "bqd,bkd->bqk"}> : () -> ()
    %cst_125 = arith.constant dense<0.000000e+00> : vector<2x8x8xf32>
    %317 = tpu.matmul %315, %316, %cst_125 {dimension_numbers = #tpu.dot_dimension_numbers<[2], [2], [1], [1], [0, 0, 0, 1, 1, 1], [0], [0]>} : vector<2x8x8xf32>, vector<2x8x8xf32>, vector<2x8x8xf32> -> vector<2x8x8xf32>
    "tpu.trace_stop"() : () -> ()
    %cst_126 = arith.constant 0.353553385 : f32
    %318 = vector.broadcast %cst_126 : f32 to vector<2x8x8xf32>
    %319 = arith.mulf %317, %318 : vector<2x8x8xf32>
    %320 = arith.addf %319, %22 : vector<2x8x8xf32>
    %cst_127 = arith.constant dense<0xFF800000> : vector<2x8xf32>
    %321 = vector.multi_reduction <maximumf>, %320, %cst_127 [2] : vector<2x8x8xf32> to vector<2x8xf32>
    %322 = vector.shape_cast %321 : vector<2x8xf32> to vector<2x8x1xf32>
    %323 = vector.broadcast %322 : vector<2x8x1xf32> to vector<2x8x8xf32>
    %324 = arith.subf %320, %323 : vector<2x8x8xf32>
    %325 = math.exp %324 : vector<2x8x8xf32>
    %cst_128 = arith.constant dense<0.000000e+00> : vector<2x8xf32>
    %326 = vector.multi_reduction <add>, %325, %cst_128 [2] : vector<2x8x8xf32> to vector<2x8xf32>
    %327 = vector.shape_cast %326 : vector<2x8xf32> to vector<2x8x1xf32>
    %328 = tpu.reciprocal %327 {approx = true} : vector<2x8x1xf32> -> vector<2x8x1xf32>
    %329 = vector.broadcast %328 : vector<2x8x1xf32> to vector<2x8x8xf32>
    %330 = arith.mulf %325, %329 : vector<2x8x8xf32>
    %331 = vector.extract_strided_slice %312 {offsets = [0, 0, 0], sizes = [2, 8, 8], strides = [1, 1, 1]} : vector<2x8x32xf32> to vector<2x8x8xf32>
    "tpu.trace_start"() <{level = 10 : i32, message = "bqk,bkd->bqd"}> : () -> ()
    %cst_129 = arith.constant dense<0.000000e+00> : vector<2x8x8xf32>
    %332 = tpu.matmul %330, %331, %cst_129 {dimension_numbers = #tpu.dot_dimension_numbers<[2], [1], [1], [2], [0, 0, 0, 1, 1, 2], [0], [0]>} : vector<2x8x8xf32>, vector<2x8x8xf32>, vector<2x8x8xf32> -> vector<2x8x8xf32>
    "tpu.trace_stop"() : () -> ()
    %333 = vector.shape_cast %332 : vector<2x8x8xf32> to vector<16x8xf32>
    %334 = vector.extract_strided_slice %314 {offsets = [0, 0], sizes = [8, 32], strides = [1, 1]} : vector<32x32xf32> to vector<8x32xf32>
    %cst_130 = arith.constant dense<0.000000e+00> : vector<16x32xf32>
    %335 = tpu.matmul %333, %334, %cst_130 {dimension_numbers = #tpu.dot_dimension_numbers<[1], [0], [0], [1], [0, 0, 1, 1], [], []>} : vector<16x8xf32>, vector<8x32xf32>, vector<16x32xf32> -> vector<16x32xf32>
    %336 = vector.extract_strided_slice %308 {offsets = [0, 0, 8], sizes = [2, 8, 8], strides = [1, 1, 1]} : vector<2x8x32xf32> to vector<2x8x8xf32>
    %337 = vector.extract_strided_slice %310 {offsets = [0, 0, 8], sizes = [2, 8, 8], strides = [1, 1, 1]} : vector<2x8x32xf32> to vector<2x8x8xf32>
    "tpu.trace_start"() <{level = 10 : i32, message = "bqd,bkd->bqk"}> : () -> ()
    %cst_131 = arith.constant dense<0.000000e+00> : vector<2x8x8xf32>
    %338 = tpu.matmul %336, %337, %cst_131 {dimension_numbers = #tpu.dot_dimension_numbers<[2], [2], [1], [1], [0, 0, 0, 1, 1, 1], [0], [0]>} : vector<2x8x8xf32>, vector<2x8x8xf32>, vector<2x8x8xf32> -> vector<2x8x8xf32>
    "tpu.trace_stop"() : () -> ()
    %cst_132 = arith.constant 0.353553385 : f32
    %339 = vector.broadcast %cst_132 : f32 to vector<2x8x8xf32>
    %340 = arith.mulf %338, %339 : vector<2x8x8xf32>
    %341 = arith.addf %340, %22 : vector<2x8x8xf32>
    %cst_133 = arith.constant dense<0xFF800000> : vector<2x8xf32>
    %342 = vector.multi_reduction <maximumf>, %341, %cst_133 [2] : vector<2x8x8xf32> to vector<2x8xf32>
    %343 = vector.shape_cast %342 : vector<2x8xf32> to vector<2x8x1xf32>
    %344 = vector.broadcast %343 : vector<2x8x1xf32> to vector<2x8x8xf32>
    %345 = arith.subf %341, %344 : vector<2x8x8xf32>
    %346 = math.exp %345 : vector<2x8x8xf32>
    %cst_134 = arith.constant dense<0.000000e+00> : vector<2x8xf32>
    %347 = vector.multi_reduction <add>, %346, %cst_134 [2] : vector<2x8x8xf32> to vector<2x8xf32>
    %348 = vector.shape_cast %347 : vector<2x8xf32> to vector<2x8x1xf32>
    %349 = tpu.reciprocal %348 {approx = true} : vector<2x8x1xf32> -> vector<2x8x1xf32>
    %350 = vector.broadcast %349 : vector<2x8x1xf32> to vector<2x8x8xf32>
    %351 = arith.mulf %346, %350 : vector<2x8x8xf32>
    %352 = vector.extract_strided_slice %312 {offsets = [0, 0, 8], sizes = [2, 8, 8], strides = [1, 1, 1]} : vector<2x8x32xf32> to vector<2x8x8xf32>
    "tpu.trace_start"() <{level = 10 : i32, message = "bqk,bkd->bqd"}> : () -> ()
    %cst_135 = arith.constant dense<0.000000e+00> : vector<2x8x8xf32>
    %353 = tpu.matmul %351, %352, %cst_135 {dimension_numbers = #tpu.dot_dimension_numbers<[2], [1], [1], [2], [0, 0, 0, 1, 1, 2], [0], [0]>} : vector<2x8x8xf32>, vector<2x8x8xf32>, vector<2x8x8xf32> -> vector<2x8x8xf32>
    "tpu.trace_stop"() : () -> ()
    %354 = vector.shape_cast %353 : vector<2x8x8xf32> to vector<16x8xf32>
    %355 = vector.extract_strided_slice %314 {offsets = [8, 0], sizes = [8, 32], strides = [1, 1]} : vector<32x32xf32> to vector<8x32xf32>
    %cst_136 = arith.constant dense<0.000000e+00> : vector<16x32xf32>
    %356 = tpu.matmul %354, %355, %cst_136 {dimension_numbers = #tpu.dot_dimension_numbers<[1], [0], [0], [1], [0, 0, 1, 1], [], []>} : vector<16x8xf32>, vector<8x32xf32>, vector<16x32xf32> -> vector<16x32xf32>
    %357 = arith.addf %335, %356 : vector<16x32xf32>
    %358 = vector.extract_strided_slice %308 {offsets = [0, 0, 16], sizes = [2, 8, 8], strides = [1, 1, 1]} : vector<2x8x32xf32> to vector<2x8x8xf32>
    %359 = vector.extract_strided_slice %310 {offsets = [0, 0, 16], sizes = [2, 8, 8], strides = [1, 1, 1]} : vector<2x8x32xf32> to vector<2x8x8xf32>
    "tpu.trace_start"() <{level = 10 : i32, message = "bqd,bkd->bqk"}> : () -> ()
    %cst_137 = arith.constant dense<0.000000e+00> : vector<2x8x8xf32>
    %360 = tpu.matmul %358, %359, %cst_137 {dimension_numbers = #tpu.dot_dimension_numbers<[2], [2], [1], [1], [0, 0, 0, 1, 1, 1], [0], [0]>} : vector<2x8x8xf32>, vector<2x8x8xf32>, vector<2x8x8xf32> -> vector<2x8x8xf32>
    "tpu.trace_stop"() : () -> ()
    %cst_138 = arith.constant 0.353553385 : f32
    %361 = vector.broadcast %cst_138 : f32 to vector<2x8x8xf32>
    %362 = arith.mulf %360, %361 : vector<2x8x8xf32>
    %363 = arith.addf %362, %22 : vector<2x8x8xf32>
    %cst_139 = arith.constant dense<0xFF800000> : vector<2x8xf32>
    %364 = vector.multi_reduction <maximumf>, %363, %cst_139 [2] : vector<2x8x8xf32> to vector<2x8xf32>
    %365 = vector.shape_cast %364 : vector<2x8xf32> to vector<2x8x1xf32>
    %366 = vector.broadcast %365 : vector<2x8x1xf32> to vector<2x8x8xf32>
    %367 = arith.subf %363, %366 : vector<2x8x8xf32>
    %368 = math.exp %367 : vector<2x8x8xf32>
    %cst_140 = arith.constant dense<0.000000e+00> : vector<2x8xf32>
    %369 = vector.multi_reduction <add>, %368, %cst_140 [2] : vector<2x8x8xf32> to vector<2x8xf32>
    %370 = vector.shape_cast %369 : vector<2x8xf32> to vector<2x8x1xf32>
    %371 = tpu.reciprocal %370 {approx = true} : vector<2x8x1xf32> -> vector<2x8x1xf32>
    %372 = vector.broadcast %371 : vector<2x8x1xf32> to vector<2x8x8xf32>
    %373 = arith.mulf %368, %372 : vector<2x8x8xf32>
    %374 = vector.extract_strided_slice %312 {offsets = [0, 0, 16], sizes = [2, 8, 8], strides = [1, 1, 1]} : vector<2x8x32xf32> to vector<2x8x8xf32>
    "tpu.trace_start"() <{level = 10 : i32, message = "bqk,bkd->bqd"}> : () -> ()
    %cst_141 = arith.constant dense<0.000000e+00> : vector<2x8x8xf32>
    %375 = tpu.matmul %373, %374, %cst_141 {dimension_numbers = #tpu.dot_dimension_numbers<[2], [1], [1], [2], [0, 0, 0, 1, 1, 2], [0], [0]>} : vector<2x8x8xf32>, vector<2x8x8xf32>, vector<2x8x8xf32> -> vector<2x8x8xf32>
    "tpu.trace_stop"() : () -> ()
    %376 = vector.shape_cast %375 : vector<2x8x8xf32> to vector<16x8xf32>
    %377 = vector.extract_strided_slice %314 {offsets = [16, 0], sizes = [8, 32], strides = [1, 1]} : vector<32x32xf32> to vector<8x32xf32>
    %cst_142 = arith.constant dense<0.000000e+00> : vector<16x32xf32>
    %378 = tpu.matmul %376, %377, %cst_142 {dimension_numbers = #tpu.dot_dimension_numbers<[1], [0], [0], [1], [0, 0, 1, 1], [], []>} : vector<16x8xf32>, vector<8x32xf32>, vector<16x32xf32> -> vector<16x32xf32>
    %379 = arith.addf %357, %378 : vector<16x32xf32>
    %380 = vector.extract_strided_slice %308 {offsets = [0, 0, 24], sizes = [2, 8, 8], strides = [1, 1, 1]} : vector<2x8x32xf32> to vector<2x8x8xf32>
    %381 = vector.extract_strided_slice %310 {offsets = [0, 0, 24], sizes = [2, 8, 8], strides = [1, 1, 1]} : vector<2x8x32xf32> to vector<2x8x8xf32>
    "tpu.trace_start"() <{level = 10 : i32, message = "bqd,bkd->bqk"}> : () -> ()
    %cst_143 = arith.constant dense<0.000000e+00> : vector<2x8x8xf32>
    %382 = tpu.matmul %380, %381, %cst_143 {dimension_numbers = #tpu.dot_dimension_numbers<[2], [2], [1], [1], [0, 0, 0, 1, 1, 1], [0], [0]>} : vector<2x8x8xf32>, vector<2x8x8xf32>, vector<2x8x8xf32> -> vector<2x8x8xf32>
    "tpu.trace_stop"() : () -> ()
    %cst_144 = arith.constant 0.353553385 : f32
    %383 = vector.broadcast %cst_144 : f32 to vector<2x8x8xf32>
    %384 = arith.mulf %382, %383 : vector<2x8x8xf32>
    %385 = arith.addf %384, %22 : vector<2x8x8xf32>
    %cst_145 = arith.constant dense<0xFF800000> : vector<2x8xf32>
    %386 = vector.multi_reduction <maximumf>, %385, %cst_145 [2] : vector<2x8x8xf32> to vector<2x8xf32>
    %387 = vector.shape_cast %386 : vector<2x8xf32> to vector<2x8x1xf32>
    %388 = vector.broadcast %387 : vector<2x8x1xf32> to vector<2x8x8xf32>
    %389 = arith.subf %385, %388 : vector<2x8x8xf32>
    %390 = math.exp %389 : vector<2x8x8xf32>
    %cst_146 = arith.constant dense<0.000000e+00> : vector<2x8xf32>
    %391 = vector.multi_reduction <add>, %390, %cst_146 [2] : vector<2x8x8xf32> to vector<2x8xf32>
    %392 = vector.shape_cast %391 : vector<2x8xf32> to vector<2x8x1xf32>
    %393 = tpu.reciprocal %392 {approx = true} : vector<2x8x1xf32> -> vector<2x8x1xf32>
    %394 = vector.broadcast %393 : vector<2x8x1xf32> to vector<2x8x8xf32>
    %395 = arith.mulf %390, %394 : vector<2x8x8xf32>
    %396 = vector.extract_strided_slice %312 {offsets = [0, 0, 24], sizes = [2, 8, 8], strides = [1, 1, 1]} : vector<2x8x32xf32> to vector<2x8x8xf32>
    "tpu.trace_start"() <{level = 10 : i32, message = "bqk,bkd->bqd"}> : () -> ()
    %cst_147 = arith.constant dense<0.000000e+00> : vector<2x8x8xf32>
    %397 = tpu.matmul %395, %396, %cst_147 {dimension_numbers = #tpu.dot_dimension_numbers<[2], [1], [1], [2], [0, 0, 0, 1, 1, 2], [0], [0]>} : vector<2x8x8xf32>, vector<2x8x8xf32>, vector<2x8x8xf32> -> vector<2x8x8xf32>
    "tpu.trace_stop"() : () -> ()
    %398 = vector.shape_cast %397 : vector<2x8x8xf32> to vector<16x8xf32>
    %399 = vector.extract_strided_slice %314 {offsets = [24, 0], sizes = [8, 32], strides = [1, 1]} : vector<32x32xf32> to vector<8x32xf32>
    %cst_148 = arith.constant dense<0.000000e+00> : vector<16x32xf32>
    %400 = tpu.matmul %398, %399, %cst_148 {dimension_numbers = #tpu.dot_dimension_numbers<[1], [0], [0], [1], [0, 0, 1, 1], [], []>} : vector<16x8xf32>, vector<8x32xf32>, vector<16x32xf32> -> vector<16x32xf32>
    %401 = arith.addf %379, %400 : vector<16x32xf32>
    %c1_149 = arith.constant 1 : index
    %c0_150 = arith.constant 0 : index
    %c0_151 = arith.constant 0 : index
    %402 = vector.load %arg8[%c1_149, %c0_150, %c0_151] : memref<2x1x32xf32, #tpu.memory_space<vmem>>, vector<1x1x32xf32>
    %403 = vector.shape_cast %402 : vector<1x1x32xf32> to vector<1x32xf32>
    %404 = vector.broadcast %403 : vector<1x32xf32> to vector<16x32xf32>
    %405 = arith.addf %401, %404 : vector<16x32xf32>
    %406 = arith.addf %299, %405 : vector<16x32xf32>
    %c1_152 = arith.constant 1 : index
    %c0_153 = arith.constant 0 : index
    %c0_154 = arith.constant 0 : index
    %407 = vector.load %arg9[%c1_152, %c0_153, %c0_154] : memref<2x1x32xf32, #tpu.memory_space<vmem>>, vector<1x1x32xf32>
    %408 = vector.shape_cast %407 : vector<1x1x32xf32> to vector<1x32xf32>
    %c1_155 = arith.constant 1 : index
    %c0_156 = arith.constant 0 : index
    %c0_157 = arith.constant 0 : index
    %409 = vector.load %arg10[%c1_155, %c0_156, %c0_157] : memref<2x1x32xf32, #tpu.memory_space<vmem>>, vector<1x1x32xf32>
    %410 = vector.shape_cast %409 : vector<1x1x32xf32> to vector<1x32xf32>
    %cst_158 = arith.constant dense<0.000000e+00> : vector<16xf32>
    %411 = vector.multi_reduction <add>, %406, %cst_158 [1] : vector<16x32xf32> to vector<16xf32>
    %412 = vector.shape_cast %411 : vector<16xf32> to vector<16x1xf32>
    %cst_159 = arith.constant 3.200000e+01 : f32
    %413 = vector.broadcast %cst_159 : f32 to vector<16x1xf32>
    %414 = arith.divf %412, %413 : vector<16x1xf32>
    %415 = vector.broadcast %414 : vector<16x1xf32> to vector<16x32xf32>
    %416 = arith.subf %406, %415 : vector<16x32xf32>
    %417 = arith.mulf %416, %416 : vector<16x32xf32>
    %cst_160 = arith.constant dense<0.000000e+00> : vector<16xf32>
    %418 = vector.multi_reduction <add>, %417, %cst_160 [1] : vector<16x32xf32> to vector<16xf32>
    %419 = vector.shape_cast %418 : vector<16xf32> to vector<16x1xf32>
    %cst_161 = arith.constant 3.200000e+01 : f32
    %420 = vector.broadcast %cst_161 : f32 to vector<16x1xf32>
    %421 = arith.divf %419, %420 : vector<16x1xf32>
    %422 = vector.broadcast %414 : vector<16x1xf32> to vector<16x32xf32>
    %423 = arith.subf %406, %422 : vector<16x32xf32>
    %cst_162 = arith.constant 9.99999974E-6 : f32
    %424 = vector.broadcast %cst_162 : f32 to vector<16x1xf32>
    %425 = arith.addf %421, %424 : vector<16x1xf32>
    %426 = math.rsqrt %425 : vector<16x1xf32>
    %427 = vector.broadcast %426 : vector<16x1xf32> to vector<16x32xf32>
    %428 = arith.mulf %423, %427 : vector<16x32xf32>
    %429 = vector.broadcast %408 : vector<1x32xf32> to vector<16x32xf32>
    %430 = arith.mulf %428, %429 : vector<16x32xf32>
    %431 = vector.broadcast %410 : vector<1x32xf32> to vector<16x32xf32>
    %432 = arith.addf %430, %431 : vector<16x32xf32>
    %c1_163 = arith.constant 1 : index
    %c0_164 = arith.constant 0 : index
    %c0_165 = arith.constant 0 : index
    %433 = vector.load %arg11[%c1_163, %c0_164, %c0_165] : memref<2x2x32xf32, #tpu.memory_space<vmem>>, vector<1x2x32xf32>
    %434 = vector.shape_cast %433 : vector<1x2x32xf32> to vector<2x32xf32>
    %c1_166 = arith.constant 1 : index
    %c0_167 = arith.constant 0 : index
    %c0_168 = arith.constant 0 : index
    %435 = vector.load %arg12[%c1_166, %c0_167, %c0_168] : memref<2x1x2xf32, #tpu.memory_space<vmem>>, vector<1x1x2xf32>
    %436 = vector.shape_cast %435 : vector<1x1x2xf32> to vector<1x2xf32>
    %c1_169 = arith.constant 1 : index
    %c0_170 = arith.constant 0 : index
    %c0_171 = arith.constant 0 : index
    %437 = vector.load %arg13[%c1_169, %c0_170, %c0_171] : memref<2x2x32xf32, #tpu.memory_space<vmem>>, vector<1x2x32xf32>
    %438 = vector.shape_cast %437 : vector<1x2x32xf32> to vector<2x32xf32>
    %439 = vector.extract_strided_slice %434 {offsets = [0, 0], sizes = [1, 32], strides = [1, 1]} : vector<2x32xf32> to vector<1x32xf32>
    %440 = vector.broadcast %439 : vector<1x32xf32> to vector<16x32xf32>
    %441 = arith.mulf %432, %440 : vector<16x32xf32>
    %cst_172 = arith.constant dense<0.000000e+00> : vector<16xf32>
    %442 = vector.multi_reduction <add>, %441, %cst_172 [1] : vector<16x32xf32> to vector<16xf32>
    %443 = vector.shape_cast %442 : vector<16xf32> to vector<16x1xf32>
    %444 = vector.extract_strided_slice %436 {offsets = [0, 0], sizes = [1, 1], strides = [1, 1]} : vector<1x2xf32> to vector<1x1xf32>
    %445 = vector.broadcast %444 : vector<1x1xf32> to vector<16x1xf32>
    %446 = arith.addf %443, %445 : vector<16x1xf32>
    %cst_173 = arith.constant 5.000000e-01 : f32
    %447 = vector.broadcast %cst_173 : f32 to vector<16x1xf32>
    %448 = arith.mulf %447, %446 : vector<16x1xf32>
    %cst_174 = arith.constant 0.707106769 : f32
    %449 = vector.broadcast %cst_174 : f32 to vector<16x1xf32>
    %450 = arith.mulf %446, %449 : vector<16x1xf32>
    %cst_175 = arith.constant 0.000000e+00 : f32
    %451 = vector.broadcast %cst_175 : f32 to vector<16x1xf32>
    %452 = arith.cmpf oge, %450, %451 : vector<16x1xf32>
    %cst_176 = arith.constant 1.000000e+00 : f32
    %cst_177 = arith.constant -1.000000e+00 : f32
    %453 = vector.broadcast %cst_176 : f32 to vector<16x1xf32>
    %454 = vector.broadcast %cst_177 : f32 to vector<16x1xf32>
    %455 = arith.select %452, %453, %454 : vector<16x1xi1>, vector<16x1xf32>
    %456 = math.absf %450 : vector<16x1xf32>
    %cst_178 = arith.constant 0.327591091 : f32
    %457 = vector.broadcast %cst_178 : f32 to vector<16x1xf32>
    %458 = arith.mulf %457, %456 : vector<16x1xf32>
    %cst_179 = arith.constant 1.000000e+00 : f32
    %459 = vector.broadcast %cst_179 : f32 to vector<16x1xf32>
    %460 = arith.addf %459, %458 : vector<16x1xf32>
    %cst_180 = arith.constant 1.000000e+00 : f32
    %461 = vector.broadcast %cst_180 : f32 to vector<16x1xf32>
    %462 = arith.divf %461, %460 : vector<16x1xf32>
    %cst_181 = arith.constant 1.06140542 : f32
    %463 = vector.broadcast %cst_181 : f32 to vector<16x1xf32>
    %464 = arith.mulf %463, %462 : vector<16x1xf32>
    %cst_182 = arith.constant -1.45315206 : f32
    %465 = vector.broadcast %cst_182 : f32 to vector<16x1xf32>
    %466 = arith.addf %464, %465 : vector<16x1xf32>
    %467 = arith.mulf %466, %462 : vector<16x1xf32>
    %cst_183 = arith.constant 1.42141378 : f32
    %468 = vector.broadcast %cst_183 : f32 to vector<16x1xf32>
    %469 = arith.addf %467, %468 : vector<16x1xf32>
    %470 = arith.mulf %469, %462 : vector<16x1xf32>
    %cst_184 = arith.constant -0.284496725 : f32
    %471 = vector.broadcast %cst_184 : f32 to vector<16x1xf32>
    %472 = arith.addf %470, %471 : vector<16x1xf32>
    %473 = arith.mulf %472, %462 : vector<16x1xf32>
    %cst_185 = arith.constant 0.254829586 : f32
    %474 = vector.broadcast %cst_185 : f32 to vector<16x1xf32>
    %475 = arith.addf %473, %474 : vector<16x1xf32>
    %476 = arith.mulf %475, %462 : vector<16x1xf32>
    %cst_186 = arith.constant 0.000000e+00 : f32
    %477 = vector.broadcast %cst_186 : f32 to vector<16x1xf32>
    %478 = arith.subf %477, %456 : vector<16x1xf32>
    %479 = arith.mulf %478, %456 : vector<16x1xf32>
    %480 = math.exp %479 : vector<16x1xf32>
    %481 = arith.mulf %476, %480 : vector<16x1xf32>
    %cst_187 = arith.constant 1.000000e+00 : f32
    %482 = vector.broadcast %cst_187 : f32 to vector<16x1xf32>
    %483 = arith.subf %482, %481 : vector<16x1xf32>
    %484 = arith.mulf %455, %483 : vector<16x1xf32>
    %cst_188 = arith.constant 1.000000e+00 : f32
    %485 = vector.broadcast %cst_188 : f32 to vector<16x1xf32>
    %486 = arith.addf %485, %484 : vector<16x1xf32>
    %487 = arith.mulf %448, %486 : vector<16x1xf32>
    %488 = vector.extract_strided_slice %438 {offsets = [0, 0], sizes = [1, 32], strides = [1, 1]} : vector<2x32xf32> to vector<1x32xf32>
    %489 = vector.broadcast %487 : vector<16x1xf32> to vector<16x32xf32>
    %490 = vector.broadcast %488 : vector<1x32xf32> to vector<16x32xf32>
    %491 = arith.mulf %489, %490 : vector<16x32xf32>
    %492 = vector.extract_strided_slice %434 {offsets = [1, 0], sizes = [1, 32], strides = [1, 1]} : vector<2x32xf32> to vector<1x32xf32>
    %493 = vector.broadcast %492 : vector<1x32xf32> to vector<16x32xf32>
    %494 = arith.mulf %432, %493 : vector<16x32xf32>
    %cst_189 = arith.constant dense<0.000000e+00> : vector<16xf32>
    %495 = vector.multi_reduction <add>, %494, %cst_189 [1] : vector<16x32xf32> to vector<16xf32>
    %496 = vector.shape_cast %495 : vector<16xf32> to vector<16x1xf32>
    %497 = vector.extract_strided_slice %436 {offsets = [0, 1], sizes = [1, 1], strides = [1, 1]} : vector<1x2xf32> to vector<1x1xf32>
    %498 = vector.broadcast %497 : vector<1x1xf32> to vector<16x1xf32>
    %499 = arith.addf %496, %498 : vector<16x1xf32>
    %cst_190 = arith.constant 5.000000e-01 : f32
    %500 = vector.broadcast %cst_190 : f32 to vector<16x1xf32>
    %501 = arith.mulf %500, %499 : vector<16x1xf32>
    %cst_191 = arith.constant 0.707106769 : f32
    %502 = vector.broadcast %cst_191 : f32 to vector<16x1xf32>
    %503 = arith.mulf %499, %502 : vector<16x1xf32>
    %cst_192 = arith.constant 0.000000e+00 : f32
    %504 = vector.broadcast %cst_192 : f32 to vector<16x1xf32>
    %505 = arith.cmpf oge, %503, %504 : vector<16x1xf32>
    %cst_193 = arith.constant 1.000000e+00 : f32
    %cst_194 = arith.constant -1.000000e+00 : f32
    %506 = vector.broadcast %cst_193 : f32 to vector<16x1xf32>
    %507 = vector.broadcast %cst_194 : f32 to vector<16x1xf32>
    %508 = arith.select %505, %506, %507 : vector<16x1xi1>, vector<16x1xf32>
    %509 = math.absf %503 : vector<16x1xf32>
    %cst_195 = arith.constant 0.327591091 : f32
    %510 = vector.broadcast %cst_195 : f32 to vector<16x1xf32>
    %511 = arith.mulf %510, %509 : vector<16x1xf32>
    %cst_196 = arith.constant 1.000000e+00 : f32
    %512 = vector.broadcast %cst_196 : f32 to vector<16x1xf32>
    %513 = arith.addf %512, %511 : vector<16x1xf32>
    %cst_197 = arith.constant 1.000000e+00 : f32
    %514 = vector.broadcast %cst_197 : f32 to vector<16x1xf32>
    %515 = arith.divf %514, %513 : vector<16x1xf32>
    %cst_198 = arith.constant 1.06140542 : f32
    %516 = vector.broadcast %cst_198 : f32 to vector<16x1xf32>
    %517 = arith.mulf %516, %515 : vector<16x1xf32>
    %cst_199 = arith.constant -1.45315206 : f32
    %518 = vector.broadcast %cst_199 : f32 to vector<16x1xf32>
    %519 = arith.addf %517, %518 : vector<16x1xf32>
    %520 = arith.mulf %519, %515 : vector<16x1xf32>
    %cst_200 = arith.constant 1.42141378 : f32
    %521 = vector.broadcast %cst_200 : f32 to vector<16x1xf32>
    %522 = arith.addf %520, %521 : vector<16x1xf32>
    %523 = arith.mulf %522, %515 : vector<16x1xf32>
    %cst_201 = arith.constant -0.284496725 : f32
    %524 = vector.broadcast %cst_201 : f32 to vector<16x1xf32>
    %525 = arith.addf %523, %524 : vector<16x1xf32>
    %526 = arith.mulf %525, %515 : vector<16x1xf32>
    %cst_202 = arith.constant 0.254829586 : f32
    %527 = vector.broadcast %cst_202 : f32 to vector<16x1xf32>
    %528 = arith.addf %526, %527 : vector<16x1xf32>
    %529 = arith.mulf %528, %515 : vector<16x1xf32>
    %cst_203 = arith.constant 0.000000e+00 : f32
    %530 = vector.broadcast %cst_203 : f32 to vector<16x1xf32>
    %531 = arith.subf %530, %509 : vector<16x1xf32>
    %532 = arith.mulf %531, %509 : vector<16x1xf32>
    %533 = math.exp %532 : vector<16x1xf32>
    %534 = arith.mulf %529, %533 : vector<16x1xf32>
    %cst_204 = arith.constant 1.000000e+00 : f32
    %535 = vector.broadcast %cst_204 : f32 to vector<16x1xf32>
    %536 = arith.subf %535, %534 : vector<16x1xf32>
    %537 = arith.mulf %508, %536 : vector<16x1xf32>
    %cst_205 = arith.constant 1.000000e+00 : f32
    %538 = vector.broadcast %cst_205 : f32 to vector<16x1xf32>
    %539 = arith.addf %538, %537 : vector<16x1xf32>
    %540 = arith.mulf %501, %539 : vector<16x1xf32>
    %541 = vector.extract_strided_slice %438 {offsets = [1, 0], sizes = [1, 32], strides = [1, 1]} : vector<2x32xf32> to vector<1x32xf32>
    %542 = vector.broadcast %540 : vector<16x1xf32> to vector<16x32xf32>
    %543 = vector.broadcast %541 : vector<1x32xf32> to vector<16x32xf32>
    %544 = arith.mulf %542, %543 : vector<16x32xf32>
    %545 = arith.addf %491, %544 : vector<16x32xf32>
    %c1_206 = arith.constant 1 : index
    %c0_207 = arith.constant 0 : index
    %c0_208 = arith.constant 0 : index
    %546 = vector.load %arg14[%c1_206, %c0_207, %c0_208] : memref<2x1x32xf32, #tpu.memory_space<vmem>>, vector<1x1x32xf32>
    %547 = vector.shape_cast %546 : vector<1x1x32xf32> to vector<1x32xf32>
    %548 = vector.broadcast %547 : vector<1x32xf32> to vector<16x32xf32>
    %549 = arith.addf %545, %548 : vector<16x32xf32>
    %550 = arith.addf %432, %549 : vector<16x32xf32>
    %c1_209 = arith.constant 1 : index
    %c0_210 = arith.constant 0 : index
    %c0_211 = arith.constant 0 : index
    %551 = vector.load %arg15[%c1_209, %c0_210, %c0_211] : memref<2x1x32xf32, #tpu.memory_space<vmem>>, vector<1x1x32xf32>
    %552 = vector.shape_cast %551 : vector<1x1x32xf32> to vector<1x32xf32>
    %c1_212 = arith.constant 1 : index
    %c0_213 = arith.constant 0 : index
    %c0_214 = arith.constant 0 : index
    %553 = vector.load %arg16[%c1_212, %c0_213, %c0_214] : memref<2x1x32xf32, #tpu.memory_space<vmem>>, vector<1x1x32xf32>
    %554 = vector.shape_cast %553 : vector<1x1x32xf32> to vector<1x32xf32>
    %cst_215 = arith.constant dense<0.000000e+00> : vector<16xf32>
    %555 = vector.multi_reduction <add>, %550, %cst_215 [1] : vector<16x32xf32> to vector<16xf32>
    %556 = vector.shape_cast %555 : vector<16xf32> to vector<16x1xf32>
    %cst_216 = arith.constant 3.200000e+01 : f32
    %557 = vector.broadcast %cst_216 : f32 to vector<16x1xf32>
    %558 = arith.divf %556, %557 : vector<16x1xf32>
    %559 = vector.broadcast %558 : vector<16x1xf32> to vector<16x32xf32>
    %560 = arith.subf %550, %559 : vector<16x32xf32>
    %561 = arith.mulf %560, %560 : vector<16x32xf32>
    %cst_217 = arith.constant dense<0.000000e+00> : vector<16xf32>
    %562 = vector.multi_reduction <add>, %561, %cst_217 [1] : vector<16x32xf32> to vector<16xf32>
    %563 = vector.shape_cast %562 : vector<16xf32> to vector<16x1xf32>
    %cst_218 = arith.constant 3.200000e+01 : f32
    %564 = vector.broadcast %cst_218 : f32 to vector<16x1xf32>
    %565 = arith.divf %563, %564 : vector<16x1xf32>
    %566 = vector.broadcast %558 : vector<16x1xf32> to vector<16x32xf32>
    %567 = arith.subf %550, %566 : vector<16x32xf32>
    %cst_219 = arith.constant 9.99999974E-6 : f32
    %568 = vector.broadcast %cst_219 : f32 to vector<16x1xf32>
    %569 = arith.addf %565, %568 : vector<16x1xf32>
    %570 = math.rsqrt %569 : vector<16x1xf32>
    %571 = vector.broadcast %570 : vector<16x1xf32> to vector<16x32xf32>
    %572 = arith.mulf %567, %571 : vector<16x32xf32>
    %573 = vector.broadcast %552 : vector<1x32xf32> to vector<16x32xf32>
    %574 = arith.mulf %572, %573 : vector<16x32xf32>
    %575 = vector.broadcast %554 : vector<1x32xf32> to vector<16x32xf32>
    %576 = arith.addf %574, %575 : vector<16x32xf32>
    %cst_220 = arith.constant 1.000000e+00 : f32
    %577 = vector.broadcast %cst_220 : f32 to vector<2x8xf32>
    %578 = arith.subf %577, %17 : vector<2x8xf32>
    %579 = vector.shape_cast %578 : vector<2x8xf32> to vector<2x8x1xf32>
    %580 = vector.shape_cast %576 : vector<16x32xf32> to vector<2x8x32xf32>
    %581 = vector.broadcast %579 : vector<2x8x1xf32> to vector<2x8x32xf32>
    %582 = arith.mulf %580, %581 : vector<2x8x32xf32>
    %cst_221 = arith.constant dense<0.000000e+00> : vector<2x32xf32>
    %583 = vector.multi_reduction <add>, %582, %cst_221 [1] : vector<2x8x32xf32> to vector<2x32xf32>
    %cst_222 = arith.constant 1.000000e+00 : f32
    %584 = vector.broadcast %cst_222 : f32 to vector<2x8xf32>
    %585 = arith.subf %584, %17 : vector<2x8xf32>
    %cst_223 = arith.constant dense<0.000000e+00> : vector<2xf32>
    %586 = vector.multi_reduction <add>, %585, %cst_223 [1] : vector<2x8xf32> to vector<2xf32>
    %587 = vector.shape_cast %586 : vector<2xf32> to vector<2x1xf32>
    %588 = tpu.reciprocal %587 {approx = true} : vector<2x1xf32> -> vector<2x1xf32>
    %589 = vector.broadcast %588 : vector<2x1xf32> to vector<2x32xf32>
    %590 = arith.mulf %583, %589 : vector<2x32xf32>
    %c0_224 = arith.constant 0 : index
    %c0_225 = arith.constant 0 : index
    %591 = vector.load %arg17[%c0_224, %c0_225] : memref<32x5xf32, #tpu.memory_space<vmem>>, vector<32x5xf32>
    %cst_226 = arith.constant dense<0.000000e+00> : vector<2x5xf32>
    %592 = tpu.matmul %590, %591, %cst_226 {dimension_numbers = #tpu.dot_dimension_numbers<[1], [0], [0], [1], [0, 0, 1, 1], [], []>} : vector<2x32xf32>, vector<32x5xf32>, vector<2x5xf32> -> vector<2x5xf32>
    %c0_227 = arith.constant 0 : index
    %c0_228 = arith.constant 0 : index
    %593 = vector.load %arg18[%c0_227, %c0_228] : memref<1x5xf32, #tpu.memory_space<vmem>>, vector<1x5xf32>
    %594 = vector.broadcast %593 : vector<1x5xf32> to vector<2x5xf32>
    %595 = arith.addf %592, %594 : vector<2x5xf32>
    %c0_229 = arith.constant 0 : index
    %c0_230 = arith.constant 0 : index
    %596 = vector.load %arg19[%c0_229, %c0_230] : memref<2x5xf32, #tpu.memory_space<vmem>>, vector<2x5xf32>
    tpu.vector_store %arg19[%c0_229, %c0_230], %595 {strides = array<i32>} : memref<2x5xf32, #tpu.memory_space<vmem>>, vector<2x5xf32>,
    return
  }
}

</mosaic_0001>

<llo_original>
// kernel: tpu_custom_call.1
$region0: #{tpu_custom_call.1}
  #allocation0 [shape = 'u32[]', space=smem, size = 0x4, offset = 0x4, fixed_abs, tag = 'smem constant byte address 0x4 - core index']
  #allocation1 [shape = 'u32[144,128]{1,0:T(1,128)}', space=vmem, size = 0x12000, scoped, tag = 'internal scratch']
  %s0 = inlined_call_operand.vmem [shape: s32[16,1], index: 0, kind: input, shape index: {}]
  %s1 = inlined_call_operand.vmem [shape: s32[16,1], index: 1, kind: input, shape index: {}]
  %s2 = inlined_call_operand.hbm [shape: f32[2,8], index: 2, kind: input, shape index: {}]
  %s3 = inlined_call_operand.vmem [shape: f32[20,32], index: 3, kind: input, shape index: {}]
  %s4 = inlined_call_operand.hbm [shape: f32[8,32], index: 4, kind: input, shape index: {}]
  %s5 = inlined_call_operand.vmem [shape: f32[2,32,96], index: 5, kind: input, shape index: {}]
  %s6 = inlined_call_operand.hbm [shape: f32[2,1,96], index: 6, kind: input, shape index: {}]
  %s7 = inlined_call_operand.hbm [shape: f32[2,32,32], index: 7, kind: input, shape index: {}]
  %s8 = inlined_call_operand.hbm [shape: f32[2,1,32], index: 8, kind: input, shape index: {}]
  %s9 = inlined_call_operand.vmem [shape: f32[2,1,32], index: 9, kind: input, shape index: {}]
  %s10 = inlined_call_operand.vmem [shape: f32[2,1,32], index: 10, kind: input, shape index: {}]
  %s11 = inlined_call_operand.vmem [shape: f32[2,2,32], index: 11, kind: input, shape index: {}]
  %s12 = inlined_call_operand.vmem [shape: f32[2,1,2], index: 12, kind: input, shape index: {}]
  %s13 = inlined_call_operand.vmem [shape: f32[2,2,32], index: 13, kind: input, shape index: {}]
  %s14 = inlined_call_operand.vmem [shape: f32[2,1,32], index: 14, kind: input, shape index: {}]
  %s15 = inlined_call_operand.vmem [shape: f32[2,1,32], index: 15, kind: input, shape index: {}]
  %s16 = inlined_call_operand.vmem [shape: f32[2,1,32], index: 16, kind: input, shape index: {}]
  %s17 = inlined_call_operand.vmem [shape: f32[32,5], index: 17, kind: input, shape index: {}]
  %s18 = inlined_call_operand.vmem [shape: f32[1,5], index: 18, kind: input, shape index: {}]
  %s19 = inlined_call_operand.hbm [shape: f32[2,5], index: 19, kind: output, shape index: {}]
  %s20 = sld [smem:[#allocation0]]
  $region106: #{tpu_custom_call.1} parent=0
    _
  %s22 = ssub.s32 1, %s20
  %s23 = scalar_select 0, %s22, %s20
  $region1: #{tpu_custom_call.1} parent=0
    #allocation2 [shape = 'u8[1024]{0}', space=vmem, size = 0x400, scoped, tag = 'input window, operand 2, single buffered']
    #allocation3 [shape = 's32[1]{0}', space=sflag, size = 0x4, scoped, tag = 'scoped memory for tpu_custom_call.1']
    #allocation4 [shape = 's32[1]{0}', space=sflag, size = 0x4, scoped, tag = 'scoped memory for tpu_custom_call.1']
    #allocation5 [shape = 'u8[4096]{0}', space=vmem, size = 0x1000, scoped, tag = 'input window, operand 4, single buffered']
    #allocation6 [shape = 's32[1]{0}', space=sflag, size = 0x4, scoped, tag = 'scoped memory for tpu_custom_call.1']
    #allocation7 [shape = 'u8[1024]{0}', space=vmem, size = 0x400, scoped, tag = 'input window, operand 6, single buffered']
    #allocation8 [shape = 'u8[32768]{0}', space=vmem, size = 0x8000, scoped, tag = 'input window, operand 7, single buffered']
    #allocation9 [shape = 's32[1]{0}', space=sflag, size = 0x4, scoped, tag = 'scoped memory for tpu_custom_call.1']
    #allocation10 [shape = 'u8[1024]{0}', space=vmem, size = 0x400, scoped, tag = 'input window, operand 8, single buffered']
    #allocation11 [shape = 'u8[1024]{0}', space=vmem, size = 0x400, scoped, tag = 'output window, operand 0, single buffered']
    %24 = vsyncpa [#allocation3], 0
    %25 = vsyncpa [#allocation6], 0
    %26 = vsyncpa [#allocation9], 0
    %27 = vsyncpa [#allocation4], 0
    // Predicated region
    $region2: #{tpu_custom_call.1} parent=1 // pred_check
      _
    $region3: #{tpu_custom_call.1} parent=1 // pred_check_branch
      %29 = sbr.rel (0) target = $region5
    $region4: #{tpu_custom_call.1} parent=1 // pred_region
      _
    $region5: #{tpu_custom_call.1} parent=1 // pred_fallthru
      _
    // Predicated region
    $region6: #{tpu_custom_call.1} parent=1 // pred_check
      _
    $region7: #{tpu_custom_call.1} parent=1 // pred_check_branch
      %31 = sbr.rel (0) target = $region9
    $region8: #{tpu_custom_call.1} parent=1 // pred_region
      _
    $region9: #{tpu_custom_call.1} parent=1 // pred_fallthru
      _
    // Predicated region
    $region10: #{tpu_custom_call.1} parent=1 // pred_check
      _
    $region11: #{tpu_custom_call.1} parent=1 // pred_check_branch
      %33 = sbr.rel (0) target = $region13
    $region12: #{tpu_custom_call.1} parent=1 // pred_region
      %s35 = ssub.s32 32, 32
      %36 = vsyncadd [#allocation3], %s35
      %s38 = sshll.u32 [#allocation2], 4
      %s39 = int_to_ptr.vmem [resolvable:$true] %s38
      %41 = dma.hbm_to_vmem [thread:$0]  %s2, 32, %s39, [#allocation3]
    $region13: #{tpu_custom_call.1} parent=1 // pred_fallthru
      _
    // Predicated region
    $region14: #{tpu_custom_call.1} parent=1 // pred_check
      _
    $region15: #{tpu_custom_call.1} parent=1 // pred_check_branch
      %43 = sbr.rel (0) target = $region17
    $region16: #{tpu_custom_call.1} parent=1 // pred_region
      _
    $region17: #{tpu_custom_call.1} parent=1 // pred_fallthru
      _
    // Predicated region
    $region18: #{tpu_custom_call.1} parent=1 // pred_check
      _
    $region19: #{tpu_custom_call.1} parent=1 // pred_check_branch
      %45 = sbr.rel (0) target = $region21
    $region20: #{tpu_custom_call.1} parent=1 // pred_region
      %s47 = ssub.s32 128, 128
      %48 = vsyncadd [#allocation6], %s47
      %s50 = sshll.u32 [#allocation5], 4
      %s51 = int_to_ptr.vmem [resolvable:$true] %s50
      %53 = dma.hbm_to_vmem [thread:$0]  %s4, 128, %s51, [#allocation6]
    $region21: #{tpu_custom_call.1} parent=1 // pred_fallthru
      _
    // Predicated region
    $region22: #{tpu_custom_call.1} parent=1 // pred_check
      _
    $region23: #{tpu_custom_call.1} parent=1 // pred_check_branch
      %55 = sbr.rel (0) target = $region25
    $region24: #{tpu_custom_call.1} parent=1 // pred_region
      _
    $region25: #{tpu_custom_call.1} parent=1 // pred_fallthru
      _
    // Predicated region
    $region26: #{tpu_custom_call.1} parent=1 // pred_check
      _
    $region27: #{tpu_custom_call.1} parent=1 // pred_check_branch
      %57 = sbr.rel (0) target = $region29
    $region28: #{tpu_custom_call.1} parent=1 // pred_region
      %s59 = ssub.s32 32, 32
      %60 = vsyncadd [#allocation6], %s59
      %s61 = sshll.u32 [#allocation7], 4
      %s62 = int_to_ptr.vmem [resolvable:$true] %s61
      %67 = dma.hbm_to_vmem [thread:$0]  %s6, 32, %s62, [#allocation6], 16, 16, 1
    $region29: #{tpu_custom_call.1} parent=1 // pred_fallthru
      _
    // Predicated region
    $region30: #{tpu_custom_call.1} parent=1 // pred_check
      _
    $region31: #{tpu_custom_call.1} parent=1 // pred_check_branch
      %69 = sbr.rel (0) target = $region33
    $region32: #{tpu_custom_call.1} parent=1 // pred_region
      %s71 = ssub.s32 1024, 1024
      %72 = vsyncadd [#allocation9], %s71
      %s73 = sshll.u32 [#allocation8], 4
      %s74 = int_to_ptr.vmem [resolvable:$true] %s73
      %79 = dma.hbm_to_vmem [thread:$0]  %s7, 1024, %s74, [#allocation9], 128, 128, 8
    $region33: #{tpu_custom_call.1} parent=1 // pred_fallthru
      _
    // Predicated region
    $region34: #{tpu_custom_call.1} parent=1 // pred_check
      _
    $region35: #{tpu_custom_call.1} parent=1 // pred_check_branch
      %81 = sbr.rel (0) target = $region37
    $region36: #{tpu_custom_call.1} parent=1 // pred_region
      %s83 = ssub.s32 32, 32
      %84 = vsyncadd [#allocation9], %s83
      %s85 = sshll.u32 [#allocation10], 4
      %s86 = int_to_ptr.vmem [resolvable:$true] %s85
      %91 = dma.hbm_to_vmem [thread:$0]  %s8, 32, %s86, [#allocation9], 16, 16, 1
    $region37: #{tpu_custom_call.1} parent=1 // pred_fallthru
      _
    // Predicated region
    $region38: #{tpu_custom_call.1} parent=1 // pred_check
      _
    $region39: #{tpu_custom_call.1} parent=1 // pred_check_branch
      %93 = sbr.rel (0) target = $region41
    $region40: #{tpu_custom_call.1} parent=1 // pred_region
      _
    $region41: #{tpu_custom_call.1} parent=1 // pred_fallthru
      _
    // Predicated region
    $region42: #{tpu_custom_call.1} parent=1 // pred_check
      _
    $region43: #{tpu_custom_call.1} parent=1 // pred_check_branch
      %95 = sbr.rel (0) target = $region45
    $region44: #{tpu_custom_call.1} parent=1 // pred_region
      _
    $region45: #{tpu_custom_call.1} parent=1 // pred_fallthru
      _
    // Predicated region
    $region46: #{tpu_custom_call.1} parent=1 // pred_check
      _
    $region47: #{tpu_custom_call.1} parent=1 // pred_check_branch
      %97 = sbr.rel (0) target = $region49
    $region48: #{tpu_custom_call.1} parent=1 // pred_region
      _
    $region49: #{tpu_custom_call.1} parent=1 // pred_fallthru
      _
    // Predicated region
    $region50: #{tpu_custom_call.1} parent=1 // pred_check
      _
    $region51: #{tpu_custom_call.1} parent=1 // pred_check_branch
      %99 = sbr.rel (0) target = $region53
    $region52: #{tpu_custom_call.1} parent=1 // pred_region
      _
    $region53: #{tpu_custom_call.1} parent=1 // pred_fallthru
      _
    // Predicated region
    $region54: #{tpu_custom_call.1} parent=1 // pred_check
      _
    $region55: #{tpu_custom_call.1} parent=1 // pred_check_branch
      %101 = sbr.rel (0) target = $region57
    $region56: #{tpu_custom_call.1} parent=1 // pred_region
      _
    $region57: #{tpu_custom_call.1} parent=1 // pred_fallthru
      _
    // Predicated region
    $region58: #{tpu_custom_call.1} parent=1 // pred_check
      _
    $region59: #{tpu_custom_call.1} parent=1 // pred_check_branch
      %103 = sbr.rel (0) target = $region61
    $region60: #{tpu_custom_call.1} parent=1 // pred_region
      _
    $region61: #{tpu_custom_call.1} parent=1 // pred_fallthru
      _
    // Predicated region
    $region62: #{tpu_custom_call.1} parent=1 // pred_check
      _
    $region63: #{tpu_custom_call.1} parent=1 // pred_check_branch
      %105 = sbr.rel (0) target = $region65
    $region64: #{tpu_custom_call.1} parent=1 // pred_region
      _
    $region65: #{tpu_custom_call.1} parent=1 // pred_fallthru
      _
    // Predicated region
    $region66: #{tpu_custom_call.1} parent=1 // pred_check
      _
    $region67: #{tpu_custom_call.1} parent=1 // pred_check_branch
      %107 = sbr.rel (0) target = $region69
    $region68: #{tpu_custom_call.1} parent=1 // pred_region
      _
    $region69: #{tpu_custom_call.1} parent=1 // pred_fallthru
      _
    // Predicated region
    $region70: #{tpu_custom_call.1} parent=1 // pred_check
      _
    $region71: #{tpu_custom_call.1} parent=1 // pred_check_branch
      %109 = sbr.rel (0) target = $region73
    $region72: #{tpu_custom_call.1} parent=1 // pred_region
      _
    $region73: #{tpu_custom_call.1} parent=1 // pred_fallthru
      _
    // Predicated region
    $region74: #{tpu_custom_call.1} parent=1 // pred_check
      _
    $region75: #{tpu_custom_call.1} parent=1 // pred_check_branch
      %111 = sbr.rel (0) target = $region77
    $region76: #{tpu_custom_call.1} parent=1 // pred_region
      _
    $region77: #{tpu_custom_call.1} parent=1 // pred_fallthru
      _
    // Predicated region
    $region78: #{tpu_custom_call.1} parent=1 // pred_check
      _
    $region79: #{tpu_custom_call.1} parent=1 // pred_check_branch
      %113 = sbr.rel (0) target = $region81
    $region80: #{tpu_custom_call.1} parent=1 // pred_region
      %114 = dma.done [#allocation3], 32
    $region81: #{tpu_custom_call.1} parent=1 // pred_fallthru
      _
    // Predicated region
    $region82: #{tpu_custom_call.1} parent=1 // pred_check
      _
    $region83: #{tpu_custom_call.1} parent=1 // pred_check_branch
      %116 = sbr.rel (0) target = $region85
    $region84: #{tpu_custom_call.1} parent=1 // pred_region
      %117 = dma.done [#allocation6], 128
    $region85: #{tpu_custom_call.1} parent=1 // pred_fallthru
      _
    // Predicated region
    $region86: #{tpu_custom_call.1} parent=1 // pred_check
      _
    $region87: #{tpu_custom_call.1} parent=1 // pred_check_branch
      %119 = sbr.rel (0) target = $region89
    $region88: #{tpu_custom_call.1} parent=1 // pred_region
      %120 = dma.done [#allocation6], 32
    $region89: #{tpu_custom_call.1} parent=1 // pred_fallthru
      _
    // Predicated region
    $region90: #{tpu_custom_call.1} parent=1 // pred_check
      _
    $region91: #{tpu_custom_call.1} parent=1 // pred_check_branch
      %122 = sbr.rel (0) target = $region93
    $region92: #{tpu_custom_call.1} parent=1 // pred_region
      %123 = dma.done [#allocation9], 1024
    $region93: #{tpu_custom_call.1} parent=1 // pred_fallthru
      _
    // Predicated region
    $region94: #{tpu_custom_call.1} parent=1 // pred_check
      _
    $region95: #{tpu_custom_call.1} parent=1 // pred_check_branch
      %125 = sbr.rel (0) target = $region97
    $region96: #{tpu_custom_call.1} parent=1 // pred_region
      %126 = dma.done [#allocation9], 32
    $region97: #{tpu_custom_call.1} parent=1 // pred_fallthru
      _
    %v127 = vld [vmem:[%s0] sm:$0xff]
    %v128 = vld [vmem:[%s0 + $0x8] sm:$0xff]
    %v129 = vld [vmem:[%s1] sm:$0xff]
    %v130 = vld [vmem:[%s1 + $0x8] sm:$0xff]
    %v131 = vlaneseq
    %v132 = vand.u32 %v131, 127
    %133 = vset.pattern.permute.xlu0 0
    %134 = vperm.xlu0 %133, %v127
    %v135 = vpop.permute.xlu0 %134
    %136 = vset.pattern.permute.xlu0 0
    %137 = vperm.xlu0 %136, %v128
    %v138 = vpop.permute.xlu0 %137
    %vm139 = vcmp.eq.s32.totalorder %v132, %v135
    %vm140 = vcmp.eq.s32.totalorder %v132, %v138
    %v141 = vsel %vm139, 1, 0
    %v142 = vsel %vm140, 1, 0
    %v143 = vcvt.s32.f32 %v141
    %v144 = vcvt.s32.f32 %v142
    %145 = vset.pattern.permute.xlu0 0
    %146 = vperm.xlu0 %145, %v129
    %v147 = vpop.permute.xlu0 %146
    %148 = vset.pattern.permute.xlu0 0
    %149 = vperm.xlu0 %148, %v130
    %v150 = vpop.permute.xlu0 %149
    %vm151 = vcmp.eq.s32.totalorder %v132, %v147
    %vm152 = vcmp.eq.s32.totalorder %v132, %v150
    %v153 = vsel %vm151, 1, 0
    %v154 = vsel %vm152, 1, 0
    %v155 = vcvt.s32.f32 %v153
    %v156 = vcvt.s32.f32 %v154
    %v157 = vld [vmem:[%s3] sm:$0xff]
    %v158 = vld [vmem:[%s3 + $0x8] sm:$0xff]
    %v159 = vld [vmem:[%s3 + $0x10] sm:$0xf]
    %v160 = vld [vmem:[#allocation5] sm:$0xff]
    %vm161 = vcmask 64512
    %v163 = vsel %vm161, %v155, 0
    %v166 = vsel %vm161, %v156, 0
    %168 = vmatprep.subr.mxu0 0.0
    %169 = vmatpush1.msra.mxu0 %v160
    %170 = vmatprep.subr.mxu0 0.0
    %171 = vmatpush1.msra.mxu0 0.0
    %172 = vmatprep.subr.mxu0 0.0
    %173 = vmatpush1.msra.mxu0 0.0
    %174 = vmatprep.subr.mxu0 0.0
    %175 = vmatpush1.msra.mxu0 0.0
    %176 = vmatprep.subr.mxu0 0.0
    %177 = vmatpush1.msra.mxu0 0.0
    %178 = vmatprep.subr.mxu0 0.0
    %179 = vmatpush1.msra.mxu0 0.0
    %180 = vmatprep.subr.mxu0 0.0
    %181 = vmatpush1.msra.mxu0 0.0
    %182 = vmatprep.subr.mxu0 0.0
    %183 = vmatpush1.msra.mxu0 0.0
    %184 = vmatprep.subr.mxu0 0.0
    %185 = vmatpush1.msra.mxu0 0.0
    %186 = vmatprep.subr.mxu0 0.0
    %187 = vmatpush1.msra.mxu0 0.0
    %188 = vmatprep.subr.mxu0 0.0
    %189 = vmatpush1.msra.mxu0 0.0
    %190 = vmatprep.subr.mxu0 0.0
    %191 = vmatpush1.msra.mxu0 0.0
    %192 = vmatprep.subr.mxu0 0.0
    %193 = vmatpush1.msra.mxu0 0.0
    %194 = vmatprep.subr.mxu0 0.0
    %195 = vmatpush1.msra.mxu0 0.0
    %196 = vmatprep.subr.mxu0 0.0
    %197 = vmatpush1.msra.mxu0 0.0
    %198 = vmatprep.subr.mxu0 0.0
    %199 = vmatpush1.msra.mxu0 0.0
    %200 = vmatprep.subr.mxu0 0.0
    %201 = vmatpush1.msra.mxu0 0.0
    %202 = vmatprep.subr.mxu0 0.0
    %203 = vmatpush1.msra.mxu0 0.0
    %204 = vmatprep.subr.mxu0 0.0
    %205 = vmatpush1.msra.mxu0 0.0
    %206 = vmatprep.subr.mxu0 0.0
    %207 = vmatpush1.msra.mxu0 0.0
    %208 = vmatprep.subr.mxu0 0.0
    %209 = vmatpush1.msra.mxu0 0.0
    %210 = vmatprep.subr.mxu0 0.0
    %211 = vmatpush1.msra.mxu0 0.0
    %212 = vmatprep.subr.mxu0 0.0
    %213 = vmatpush1.msra.mxu0 0.0
    %214 = vmatprep.subr.mxu0 0.0
    %215 = vmatpush1.msra.mxu0 0.0
    %216 = vmatprep.subr.mxu0 0.0
    %217 = vmatpush1.msra.mxu0 0.0
    %218 = vmatprep.subr.mxu0 0.0
    %219 = vmatpush1.msra.mxu0 0.0
    %220 = vmatprep.subr.mxu0 0.0
    %221 = vmatpush1.msra.mxu0 0.0
    %222 = vmatprep.subr.mxu0 0.0
    %223 = vmatpush1.msra.mxu0 0.0
    %224 = vmatprep.subr.mxu0 0.0
    %225 = vmatpush1.msra.mxu0 0.0
    %226 = vmatprep.subr.mxu0 0.0
    %227 = vmatpush1.msra.mxu0 0.0
    %228 = vmatprep.subr.mxu0 0.0
    %229 = vmatpush1.msra.mxu0 0.0
    %230 = vmatprep.subr.mxu0 0.0
    %231 = vmatpush1.msra.mxu0 0.0
    %232 = vmatprep.mubr.f32.mxu0 0.0
    %233 = vmatmul.mubr.f32.gmra.mrb[0].mxu0 %v163
    %v234 = vpop.f32.mrb[0].mxu0
    %v235 = vadd.f32 0.0, %v234
    %v236 = vpop.f32.mrb[0].mxu0
    %237 = vmatprep.mubr.f32.mxu0 0.0
    %238 = vmatmul.mubr.f32.gmra.mrb[0].mxu0 %v166
    %v239 = vpop.f32.mrb[0].mxu0
    %v240 = vadd.f32 0.0, %v239
    %v241 = vpop.f32.mrb[0].mxu0
    %242 = vdwg.mxu0
    %vm243 = vcmask 162816
    %v245 = vsel %vm243, %v143, 0
    %v248 = vsel %vm243, %v144, 0
    %vm250 = vcmask 1043456
    %v252 = vsel %vm250, %v159, 0
    %254 = vmatprep.subr.mxu0 0.0
    %255 = vmatpush1.msra.mxu0 %v157
    %256 = vmatprep.subr.mxu0 0.0
    %257 = vmatpush1.msra.mxu0 %v158
    %258 = vmatprep.subr.mxu0 0.0
    %259 = vmatpush1.msra.mxu0 %v252
    %260 = vmatprep.subr.mxu0 0.0
    %261 = vmatpush1.msra.mxu0 0.0
    %262 = vmatprep.subr.mxu0 0.0
    %263 = vmatpush1.msra.mxu0 0.0
    %264 = vmatprep.subr.mxu0 0.0
    %265 = vmatpush1.msra.mxu0 0.0
    %266 = vmatprep.subr.mxu0 0.0
    %267 = vmatpush1.msra.mxu0 0.0
    %268 = vmatprep.subr.mxu0 0.0
    %269 = vmatpush1.msra.mxu0 0.0
    %270 = vmatprep.subr.mxu0 0.0
    %271 = vmatpush1.msra.mxu0 0.0
    %272 = vmatprep.subr.mxu0 0.0
    %273 = vmatpush1.msra.mxu0 0.0
    %274 = vmatprep.subr.mxu0 0.0
    %275 = vmatpush1.msra.mxu0 0.0
    %276 = vmatprep.subr.mxu0 0.0
    %277 = vmatpush1.msra.mxu0 0.0
    %278 = vmatprep.subr.mxu0 0.0
    %279 = vmatpush1.msra.mxu0 0.0
    %280 = vmatprep.subr.mxu0 0.0
    %281 = vmatpush1.msra.mxu0 0.0
    %282 = vmatprep.subr.mxu0 0.0
    %283 = vmatpush1.msra.mxu0 0.0
    %284 = vmatprep.subr.mxu0 0.0
    %285 = vmatpush1.msra.mxu0 0.0
    %286 = vmatprep.subr.mxu0 0.0
    %287 = vmatpush1.msra.mxu0 0.0
    %288 = vmatprep.subr.mxu0 0.0
    %289 = vmatpush1.msra.mxu0 0.0
    %290 = vmatprep.subr.mxu0 0.0
    %291 = vmatpush1.msra.mxu0 0.0
    %292 = vmatprep.subr.mxu0 0.0
    %293 = vmatpush1.msra.mxu0 0.0
    %294 = vmatprep.subr.mxu0 0.0
    %295 = vmatpush1.msra.mxu0 0.0
    %296 = vmatprep.subr.mxu0 0.0
    %297 = vmatpush1.msra.mxu0 0.0
    %298 = vmatprep.subr.mxu0 0.0
    %299 = vmatpush1.msra.mxu0 0.0
    %300 = vmatprep.subr.mxu0 0.0
    %301 = vmatpush1.msra.mxu0 0.0
    %302 = vmatprep.subr.mxu0 0.0
    %303 = vmatpush1.msra.mxu0 0.0
    %304 = vmatprep.subr.mxu0 0.0
    %305 = vmatpush1.msra.mxu0 0.0
    %306 = vmatprep.subr.mxu0 0.0
    %307 = vmatpush1.msra.mxu0 0.0
    %308 = vmatprep.subr.mxu0 0.0
    %309 = vmatpush1.msra.mxu0 0.0
    %310 = vmatprep.subr.mxu0 0.0
    %311 = vmatpush1.msra.mxu0 0.0
    %312 = vmatprep.subr.mxu0 0.0
    %313 = vmatpush1.msra.mxu0 0.0
    %314 = vmatprep.subr.mxu0 0.0
    %315 = vmatpush1.msra.mxu0 0.0
    %316 = vmatprep.subr.mxu0 0.0
    %317 = vmatpush1.msra.mxu0 0.0
    %318 = vmatprep.mubr.f32.mxu0 0.0
    %319 = vmatmul.mubr.f32.gmra.mrb[0].mxu0 %v245
    %v320 = vpop.f32.mrb[0].mxu0
    %v321 = vadd.f32 %v235, %v320
    %v322 = vpop.f32.mrb[0].mxu0
    %323 = vmatprep.mubr.f32.mxu0 0.0
    %324 = vmatmul.mubr.f32.gmra.mrb[0].mxu0 %v248
    %v325 = vpop.f32.mrb[0].mxu0
    %v326 = vadd.f32 %v240, %v325
    %v327 = vpop.f32.mrb[0].mxu0
    %328 = vdwg.mxu0
    %v329 = vld [vmem:[#allocation2] sm:$0x3]
    %v330 = vmul.f32 %v329, -1e+09
    %v333 = vunpack.c.l.s4 1966171168
    %v334 = vunpack.c.0.s8 %v333
    %v335 = vlaneseq
    %v336 = vshrl.u32 %v335, 7
    %v337 = vsub.s32 %v334, %v336
    %v338 = vrot.slane %v330, %v337
    %v339 = vcombine.high %v338, %v338
    %v341 = vunpack.c.l.s4 1966171168
    %v342 = vunpack.c.0.s8 %v341
    %v343 = vlaneseq
    %v344 = vshrl.u32 %v343, 7
    %v345 = vsub.s32 %v342, %v344
    %v346 = vrot.slane %v338, %v345
    %v348 = vunpack.c.l.s4 1966171168
    %v349 = vunpack.c.0.s8 %v348
    %v350 = vlaneseq
    %v351 = vshrl.u32 %v350, 7
    %v352 = vsub.s32 %v349, %v351
    %v353 = vrot.slane %v339, %v352
    %v354 = vlaneseq
    %v355 = vshrl.u32 %v354, 7
    %v356 = vsub.s32 0, %v355
    %v357 = vrot.slane %v346, %v356
    %v358 = vlaneseq
    %v359 = vshrl.u32 %v358, 7
    %v360 = vsub.s32 0, %v359
    %v361 = vrot.slane %v353, %v360
    %v364 = vld [vmem:[%s5] sm:$0xff]
    %v365 = vld [vmem:[%s5 + $0x8] sm:$0xff]
    %v366 = vld [vmem:[%s5 + $0x10] sm:$0xff]
    %v367 = vld [vmem:[%s5 + $0x18] sm:$0xff]
    %v368 = vld [vmem:[#allocation7] sm:$0x1]
    %v370 = vlaneseq
    %v371 = vshrl.u32 %v370, 7
    %v372 = vsub.s32 0, %v371
    %v373 = vrot.slane %v368, %v372
    %vm375 = vcmask 261120
    %v377 = vsel %vm375, %v321, 0
    %v380 = vsel %vm375, %v326, 0
    %382 = vmatprep.subr.mxu0 0.0
    %383 = vmatpush1.msra.mxu0 %v364
    %384 = vmatprep.subr.mxu0 0.0
    %385 = vmatpush1.msra.mxu0 %v365
    %386 = vmatprep.subr.mxu0 0.0
    %387 = vmatpush1.msra.mxu0 %v366
    %388 = vmatprep.subr.mxu0 0.0
    %389 = vmatpush1.msra.mxu0 %v367
    %390 = vmatprep.subr.mxu0 0.0
    %391 = vmatpush1.msra.mxu0 0.0
    %392 = vmatprep.subr.mxu0 0.0
    %393 = vmatpush1.msra.mxu0 0.0
    %394 = vmatprep.subr.mxu0 0.0
    %395 = vmatpush1.msra.mxu0 0.0
    %396 = vmatprep.subr.mxu0 0.0
    %397 = vmatpush1.msra.mxu0 0.0
    %398 = vmatprep.subr.mxu0 0.0
    %399 = vmatpush1.msra.mxu0 0.0
    %400 = vmatprep.subr.mxu0 0.0
    %401 = vmatpush1.msra.mxu0 0.0
    %402 = vmatprep.subr.mxu0 0.0
    %403 = vmatpush1.msra.mxu0 0.0
    %404 = vmatprep.subr.mxu0 0.0
    %405 = vmatpush1.msra.mxu0 0.0
    %406 = vmatprep.subr.mxu0 0.0
    %407 = vmatpush1.msra.mxu0 0.0
    %408 = vmatprep.subr.mxu0 0.0
    %409 = vmatpush1.msra.mxu0 0.0
    %410 = vmatprep.subr.mxu0 0.0
    %411 = vmatpush1.msra.mxu0 0.0
    %412 = vmatprep.subr.mxu0 0.0
    %413 = vmatpush1.msra.mxu0 0.0
    %414 = vmatprep.subr.mxu0 0.0
    %415 = vmatpush1.msra.mxu0 0.0
    %416 = vmatprep.subr.mxu0 0.0
    %417 = vmatpush1.msra.mxu0 0.0
    %418 = vmatprep.subr.mxu0 0.0
    %419 = vmatpush1.msra.mxu0 0.0
    %420 = vmatprep.subr.mxu0 0.0
    %421 = vmatpush1.msra.mxu0 0.0
    %422 = vmatprep.subr.mxu0 0.0
    %423 = vmatpush1.msra.mxu0 0.0
    %424 = vmatprep.subr.mxu0 0.0
    %425 = vmatpush1.msra.mxu0 0.0
    %426 = vmatprep.subr.mxu0 0.0
    %427 = vmatpush1.msra.mxu0 0.0
    %428 = vmatprep.subr.mxu0 0.0
    %429 = vmatpush1.msra.mxu0 0.0
    %430 = vmatprep.subr.mxu0 0.0
    %431 = vmatpush1.msra.mxu0 0.0
    %432 = vmatprep.subr.mxu0 0.0
    %433 = vmatpush1.msra.mxu0 0.0
    %434 = vmatprep.subr.mxu0 0.0
    %435 = vmatpush1.msra.mxu0 0.0
    %436 = vmatprep.subr.mxu0 0.0
    %437 = vmatpush1.msra.mxu0 0.0
    %438 = vmatprep.subr.mxu0 0.0
    %439 = vmatpush1.msra.mxu0 0.0
    %440 = vmatprep.subr.mxu0 0.0
    %441 = vmatpush1.msra.mxu0 0.0
    %442 = vmatprep.subr.mxu0 0.0
    %443 = vmatpush1.msra.mxu0 0.0
    %444 = vmatprep.subr.mxu0 0.0
    %445 = vmatpush1.msra.mxu0 0.0
    %446 = vmatprep.mubr.f32.mxu0 0.0
    %447 = vmatmul.mubr.f32.gmra.mrb[0].mxu0 %v377
    %v448 = vpop.f32.mrb[0].mxu0
    %v449 = vadd.f32 %v373, %v448
    %v450 = vpop.f32.mrb[0].mxu0
    %451 = vmatprep.mubr.f32.mxu0 0.0
    %452 = vmatmul.mubr.f32.gmra.mrb[0].mxu0 %v380
    %v453 = vpop.f32.mrb[0].mxu0
    %v454 = vadd.f32 %v373, %v453
    %v455 = vpop.f32.mrb[0].mxu0
    %456 = vdwg.mxu0
    %v457 = vld [vmem:[#allocation8] sm:$0xff]
    %v458 = vld [vmem:[#allocation8 + $0x8] sm:$0xff]
    %v459 = vld [vmem:[#allocation8 + $0x10] sm:$0xff]
    %v460 = vld [vmem:[#allocation8 + $0x18] sm:$0xff]
    %462 = vrot.lane.b32.xlu0 %v449, 96
    %v463 = vpop.permute.xlu0 %462
    %v464 = vsel %vm161, %v449, 0
    %v466 = vsel %vm161, %v463, 0
    %468 = vmatprep.subr.mxu0 0.0
    %469 = vmatpush1.xpose.msra.mxu0 %v466
    %470 = vmatprep.subr.mxu0 0.0
    %471 = vmatpush1.xpose.msra.mxu0 0.0
    %472 = vmatprep.subr.mxu0 0.0
    %473 = vmatpush1.xpose.msra.mxu0 0.0
    %474 = vmatprep.subr.mxu0 0.0
    %475 = vmatpush1.xpose.msra.mxu0 0.0
    %476 = vmatprep.subr.mxu0 0.0
    %477 = vmatpush1.xpose.msra.mxu0 0.0
    %478 = vmatprep.subr.mxu0 0.0
    %479 = vmatpush1.xpose.msra.mxu0 0.0
    %480 = vmatprep.subr.mxu0 0.0
    %481 = vmatpush1.xpose.msra.mxu0 0.0
    %482 = vmatprep.subr.mxu0 0.0
    %483 = vmatpush1.xpose.msra.mxu0 0.0
    %484 = vmatprep.subr.mxu0 0.0
    %485 = vmatpush1.xpose.msra.mxu0 0.0
    %486 = vmatprep.subr.mxu0 0.0
    %487 = vmatpush1.xpose.msra.mxu0 0.0
    %488 = vmatprep.subr.mxu0 0.0
    %489 = vmatpush1.xpose.msra.mxu0 0.0
    %490 = vmatprep.subr.mxu0 0.0
    %491 = vmatpush1.xpose.msra.mxu0 0.0
    %492 = vmatprep.subr.mxu0 0.0
    %493 = vmatpush1.xpose.msra.mxu0 0.0
    %494 = vmatprep.subr.mxu0 0.0
    %495 = vmatpush1.xpose.msra.mxu0 0.0
    %496 = vmatprep.subr.mxu0 0.0
    %497 = vmatpush1.xpose.msra.mxu0 0.0
    %498 = vmatprep.subr.mxu0 0.0
    %499 = vmatpush1.xpose.msra.mxu0 0.0
    %500 = vmatprep.subr.mxu0 0.0
    %501 = vmatpush1.xpose.msra.mxu0 0.0
    %502 = vmatprep.subr.mxu0 0.0
    %503 = vmatpush1.xpose.msra.mxu0 0.0
    %504 = vmatprep.subr.mxu0 0.0
    %505 = vmatpush1.xpose.msra.mxu0 0.0
    %506 = vmatprep.subr.mxu0 0.0
    %507 = vmatpush1.xpose.msra.mxu0 0.0
    %508 = vmatprep.subr.mxu0 0.0
    %509 = vmatpush1.xpose.msra.mxu0 0.0
    %510 = vmatprep.subr.mxu0 0.0
    %511 = vmatpush1.xpose.msra.mxu0 0.0
    %512 = vmatprep.subr.mxu0 0.0
    %513 = vmatpush1.xpose.msra.mxu0 0.0
    %514 = vmatprep.subr.mxu0 0.0
    %515 = vmatpush1.xpose.msra.mxu0 0.0
    %516 = vmatprep.subr.mxu0 0.0
    %517 = vmatpush1.xpose.msra.mxu0 0.0
    %518 = vmatprep.subr.mxu0 0.0
    %519 = vmatpush1.xpose.msra.mxu0 0.0
    %520 = vmatprep.subr.mxu0 0.0
    %521 = vmatpush1.xpose.msra.mxu0 0.0
    %522 = vmatprep.subr.mxu0 0.0
    %523 = vmatpush1.xpose.msra.mxu0 0.0
    %524 = vmatprep.subr.mxu0 0.0
    %525 = vmatpush1.xpose.msra.mxu0 0.0
    %526 = vmatprep.subr.mxu0 0.0
    %527 = vmatpush1.xpose.msra.mxu0 0.0
    %528 = vmatprep.subr.mxu0 0.0
    %529 = vmatpush1.xpose.msra.mxu0 0.0
    %530 = vmatprep.subr.mxu0 0.0
    %531 = vmatpush1.xpose.msra.mxu0 0.0
    %532 = vmatprep.mubr.f32.mxu0 0.0
    %533 = vmatmul.mubr.f32.gmra.mrb[0].mxu0 %v464
    %v534 = vpop.f32.mrb[0].mxu0
    %v535 = vadd.f32 0.0, %v534
    %v536 = vpop.f32.mrb[0].mxu0
    %537 = vdwg.mxu0
    %539 = vrot.lane.b32.xlu0 %v454, 96
    %v540 = vpop.permute.xlu0 %539
    %v541 = vsel %vm161, %v454, 0
    %v543 = vsel %vm161, %v540, 0
    %545 = vmatprep.subr.mxu0 0.0
    %546 = vmatpush1.xpose.msra.mxu0 %v543
    %547 = vmatprep.subr.mxu0 0.0
    %548 = vmatpush1.xpose.msra.mxu0 0.0
    %549 = vmatprep.subr.mxu0 0.0
    %550 = vmatpush1.xpose.msra.mxu0 0.0
    %551 = vmatprep.subr.mxu0 0.0
    %552 = vmatpush1.xpose.msra.mxu0 0.0
    %553 = vmatprep.subr.mxu0 0.0
    %554 = vmatpush1.xpose.msra.mxu0 0.0
    %555 = vmatprep.subr.mxu0 0.0
    %556 = vmatpush1.xpose.msra.mxu0 0.0
    %557 = vmatprep.subr.mxu0 0.0
    %558 = vmatpush1.xpose.msra.mxu0 0.0
    %559 = vmatprep.subr.mxu0 0.0
    %560 = vmatpush1.xpose.msra.mxu0 0.0
    %561 = vmatprep.subr.mxu0 0.0
    %562 = vmatpush1.xpose.msra.mxu0 0.0
    %563 = vmatprep.subr.mxu0 0.0
    %564 = vmatpush1.xpose.msra.mxu0 0.0
    %565 = vmatprep.subr.mxu0 0.0
    %566 = vmatpush1.xpose.msra.mxu0 0.0
    %567 = vmatprep.subr.mxu0 0.0
    %568 = vmatpush1.xpose.msra.mxu0 0.0
    %569 = vmatprep.subr.mxu0 0.0
    %570 = vmatpush1.xpose.msra.mxu0 0.0
    %571 = vmatprep.subr.mxu0 0.0
    %572 = vmatpush1.xpose.msra.mxu0 0.0
    %573 = vmatprep.subr.mxu0 0.0
    %574 = vmatpush1.xpose.msra.mxu0 0.0
    %575 = vmatprep.subr.mxu0 0.0
    %576 = vmatpush1.xpose.msra.mxu0 0.0
    %577 = vmatprep.subr.mxu0 0.0
    %578 = vmatpush1.xpose.msra.mxu0 0.0
    %579 = vmatprep.subr.mxu0 0.0
    %580 = vmatpush1.xpose.msra.mxu0 0.0
    %581 = vmatprep.subr.mxu0 0.0
    %582 = vmatpush1.xpose.msra.mxu0 0.0
    %583 = vmatprep.subr.mxu0 0.0
    %584 = vmatpush1.xpose.msra.mxu0 0.0
    %585 = vmatprep.subr.mxu0 0.0
    %586 = vmatpush1.xpose.msra.mxu0 0.0
    %587 = vmatprep.subr.mxu0 0.0
    %588 = vmatpush1.xpose.msra.mxu0 0.0
    %589 = vmatprep.subr.mxu0 0.0
    %590 = vmatpush1.xpose.msra.mxu0 0.0
    %591 = vmatprep.subr.mxu0 0.0
    %592 = vmatpush1.xpose.msra.mxu0 0.0
    %593 = vmatprep.subr.mxu0 0.0
    %594 = vmatpush1.xpose.msra.mxu0 0.0
    %595 = vmatprep.subr.mxu0 0.0
    %596 = vmatpush1.xpose.msra.mxu0 0.0
    %597 = vmatprep.subr.mxu0 0.0
    %598 = vmatpush1.xpose.msra.mxu0 0.0
    %599 = vmatprep.subr.mxu0 0.0
    %600 = vmatpush1.xpose.msra.mxu0 0.0
    %601 = vmatprep.subr.mxu0 0.0
    %602 = vmatpush1.xpose.msra.mxu0 0.0
    %603 = vmatprep.subr.mxu0 0.0
    %604 = vmatpush1.xpose.msra.mxu0 0.0
    %605 = vmatprep.subr.mxu0 0.0
    %606 = vmatpush1.xpose.msra.mxu0 0.0
    %607 = vmatprep.subr.mxu0 0.0
    %608 = vmatpush1.xpose.msra.mxu0 0.0
    %609 = vmatprep.mubr.f32.mxu0 0.0
    %610 = vmatmul.mubr.f32.gmra.mrb[0].mxu0 %v541
    %v611 = vpop.f32.mrb[0].mxu0
    %v612 = vadd.f32 0.0, %v611
    %v613 = vpop.f32.mrb[0].mxu0
    %614 = vdwg.mxu0
    %v615 = vmul.f32 %v535, 0.35355338
    %v616 = vmul.f32 %v612, 0.35355338
    %v617 = vadd.f32 %v615, %v357
    %v618 = vadd.f32 %v616, %v361
    %v619 = vsel %vm161, %v617, -inf
    %620 = vmax.xlane.f32.xlu0 %v619
    %v621 = vpop.xlane.xlu0 %620
    %v622 = vsel %vm161, %v618, -inf
    %623 = vmax.xlane.f32.xlu0 %v622
    %v624 = vpop.xlane.xlu0 %623
    %v625 = vsub.f32 %v617, %v621
    %v626 = vsub.f32 %v618, %v624
    %v627 = vmul.f32 %v625, 1.442695
    %v628 = vpow.pop %v627
    %v629 = vmul.f32 %v626, 1.442695
    %v630 = vpow.pop %v629
    %v631 = vsel %vm161, %v628, 0.0
    %632 = vadd.xlane.f32.xlu0 %v631
    %v633 = vpop.xlane.xlu0 %632
    %v634 = vsel %vm161, %v630, 0.0
    %635 = vadd.xlane.f32.xlu0 %v634
    %v636 = vpop.xlane.xlu0 %635
    %v637 = vrcp.pop %v633
    %v638 = vrcp.pop %v636
    %v639 = vmul.f32 %v628, %v637
    %v640 = vmul.f32 %v630, %v638
    %641 = vrot.lane.b32.xlu0 %v449, 64
    %v642 = vpop.permute.xlu0 %641
    %v645 = vsel %vm161, %v639, 0
    %647 = vmatprep.subr.mxu0 0.0
    %648 = vmatpush1.msra.mxu0 %v642
    %649 = vmatprep.subr.mxu0 0.0
    %650 = vmatpush1.msra.mxu0 0.0
    %651 = vmatprep.subr.mxu0 0.0
    %652 = vmatpush1.msra.mxu0 0.0
    %653 = vmatprep.subr.mxu0 0.0
    %654 = vmatpush1.msra.mxu0 0.0
    %655 = vmatprep.subr.mxu0 0.0
    %656 = vmatpush1.msra.mxu0 0.0
    %657 = vmatprep.subr.mxu0 0.0
    %658 = vmatpush1.msra.mxu0 0.0
    %659 = vmatprep.subr.mxu0 0.0
    %660 = vmatpush1.msra.mxu0 0.0
    %661 = vmatprep.subr.mxu0 0.0
    %662 = vmatpush1.msra.mxu0 0.0
    %663 = vmatprep.subr.mxu0 0.0
    %664 = vmatpush1.msra.mxu0 0.0
    %665 = vmatprep.subr.mxu0 0.0
    %666 = vmatpush1.msra.mxu0 0.0
    %667 = vmatprep.subr.mxu0 0.0
    %668 = vmatpush1.msra.mxu0 0.0
    %669 = vmatprep.subr.mxu0 0.0
    %670 = vmatpush1.msra.mxu0 0.0
    %671 = vmatprep.subr.mxu0 0.0
    %672 = vmatpush1.msra.mxu0 0.0
    %673 = vmatprep.subr.mxu0 0.0
    %674 = vmatpush1.msra.mxu0 0.0
    %675 = vmatprep.subr.mxu0 0.0
    %676 = vmatpush1.msra.mxu0 0.0
    %677 = vmatprep.subr.mxu0 0.0
    %678 = vmatpush1.msra.mxu0 0.0
    %679 = vmatprep.subr.mxu0 0.0
    %680 = vmatpush1.msra.mxu0 0.0
    %681 = vmatprep.subr.mxu0 0.0
    %682 = vmatpush1.msra.mxu0 0.0
    %683 = vmatprep.subr.mxu0 0.0
    %684 = vmatpush1.msra.mxu0 0.0
    %685 = vmatprep.subr.mxu0 0.0
    %686 = vmatpush1.msra.mxu0 0.0
    %687 = vmatprep.subr.mxu0 0.0
    %688 = vmatpush1.msra.mxu0 0.0
    %689 = vmatprep.subr.mxu0 0.0
    %690 = vmatpush1.msra.mxu0 0.0
    %691 = vmatprep.subr.mxu0 0.0
    %692 = vmatpush1.msra.mxu0 0.0
    %693 = vmatprep.subr.mxu0 0.0
    %694 = vmatpush1.msra.mxu0 0.0
    %695 = vmatprep.subr.mxu0 0.0
    %696 = vmatpush1.msra.mxu0 0.0
    %697 = vmatprep.subr.mxu0 0.0
    %698 = vmatpush1.msra.mxu0 0.0
    %699 = vmatprep.subr.mxu0 0.0
    %700 = vmatpush1.msra.mxu0 0.0
    %701 = vmatprep.subr.mxu0 0.0
    %702 = vmatpush1.msra.mxu0 0.0
    %703 = vmatprep.subr.mxu0 0.0
    %704 = vmatpush1.msra.mxu0 0.0
    %705 = vmatprep.subr.mxu0 0.0
    %706 = vmatpush1.msra.mxu0 0.0
    %707 = vmatprep.subr.mxu0 0.0
    %708 = vmatpush1.msra.mxu0 0.0
    %709 = vmatprep.subr.mxu0 0.0
    %710 = vmatpush1.msra.mxu0 0.0
    %711 = vmatprep.mubr.f32.mxu0 0.0
    %712 = vmatmul.mubr.f32.gmra.mrb[0].mxu0 %v645
    %v713 = vpop.f32.mrb[0].mxu0
    %v714 = vadd.f32 0.0, %v713
    %v715 = vpop.f32.mrb[0].mxu0
    %716 = vdwg.mxu0
    %717 = vrot.lane.b32.xlu0 %v454, 64
    %v718 = vpop.permute.xlu0 %717
    %v721 = vsel %vm161, %v640, 0
    %723 = vmatprep.subr.mxu0 0.0
    %724 = vmatpush1.msra.mxu0 %v718
    %725 = vmatprep.subr.mxu0 0.0
    %726 = vmatpush1.msra.mxu0 0.0
    %727 = vmatprep.subr.mxu0 0.0
    %728 = vmatpush1.msra.mxu0 0.0
    %729 = vmatprep.subr.mxu0 0.0
    %730 = vmatpush1.msra.mxu0 0.0
    %731 = vmatprep.subr.mxu0 0.0
    %732 = vmatpush1.msra.mxu0 0.0
    %733 = vmatprep.subr.mxu0 0.0
    %734 = vmatpush1.msra.mxu0 0.0
    %735 = vmatprep.subr.mxu0 0.0
    %736 = vmatpush1.msra.mxu0 0.0
    %737 = vmatprep.subr.mxu0 0.0
    %738 = vmatpush1.msra.mxu0 0.0
    %739 = vmatprep.subr.mxu0 0.0
    %740 = vmatpush1.msra.mxu0 0.0
    %741 = vmatprep.subr.mxu0 0.0
    %742 = vmatpush1.msra.mxu0 0.0
    %743 = vmatprep.subr.mxu0 0.0
    %744 = vmatpush1.msra.mxu0 0.0
    %745 = vmatprep.subr.mxu0 0.0
    %746 = vmatpush1.msra.mxu0 0.0
    %747 = vmatprep.subr.mxu0 0.0
    %748 = vmatpush1.msra.mxu0 0.0
    %749 = vmatprep.subr.mxu0 0.0
    %750 = vmatpush1.msra.mxu0 0.0
    %751 = vmatprep.subr.mxu0 0.0
    %752 = vmatpush1.msra.mxu0 0.0
    %753 = vmatprep.subr.mxu0 0.0
    %754 = vmatpush1.msra.mxu0 0.0
    %755 = vmatprep.subr.mxu0 0.0
    %756 = vmatpush1.msra.mxu0 0.0
    %757 = vmatprep.subr.mxu0 0.0
    %758 = vmatpush1.msra.mxu0 0.0
    %759 = vmatprep.subr.mxu0 0.0
    %760 = vmatpush1.msra.mxu0 0.0
    %761 = vmatprep.subr.mxu0 0.0
    %762 = vmatpush1.msra.mxu0 0.0
    %763 = vmatprep.subr.mxu0 0.0
    %764 = vmatpush1.msra.mxu0 0.0
    %765 = vmatprep.subr.mxu0 0.0
    %766 = vmatpush1.msra.mxu0 0.0
    %767 = vmatprep.subr.mxu0 0.0
    %768 = vmatpush1.msra.mxu0 0.0
    %769 = vmatprep.subr.mxu0 0.0
    %770 = vmatpush1.msra.mxu0 0.0
    %771 = vmatprep.subr.mxu0 0.0
    %772 = vmatpush1.msra.mxu0 0.0
    %773 = vmatprep.subr.mxu0 0.0
    %774 = vmatpush1.msra.mxu0 0.0
    %775 = vmatprep.subr.mxu0 0.0
    %776 = vmatpush1.msra.mxu0 0.0
    %777 = vmatprep.subr.mxu0 0.0
    %778 = vmatpush1.msra.mxu0 0.0
    %779 = vmatprep.subr.mxu0 0.0
    %780 = vmatpush1.msra.mxu0 0.0
    %781 = vmatprep.subr.mxu0 0.0
    %782 = vmatpush1.msra.mxu0 0.0
    %783 = vmatprep.subr.mxu0 0.0
    %784 = vmatpush1.msra.mxu0 0.0
    %785 = vmatprep.subr.mxu0 0.0
    %786 = vmatpush1.msra.mxu0 0.0
    %787 = vmatprep.mubr.f32.mxu0 0.0
    %788 = vmatmul.mubr.f32.gmra.mrb[0].mxu0 %v721
    %v789 = vpop.f32.mrb[0].mxu0
    %v790 = vadd.f32 0.0, %v789
    %v791 = vpop.f32.mrb[0].mxu0
    %792 = vdwg.mxu0
    %793 = vrot.lane.b32.xlu0 %v449, 120
    %v794 = vpop.permute.xlu0 %793
    %795 = vrot.lane.b32.xlu0 %v449, 88
    %v796 = vpop.permute.xlu0 %795
    %v797 = vsel %vm161, %v794, 0
    %v799 = vsel %vm161, %v796, 0
    %801 = vmatprep.subr.mxu0 0.0
    %802 = vmatpush1.xpose.msra.mxu0 %v799
    %803 = vmatprep.subr.mxu0 0.0
    %804 = vmatpush1.xpose.msra.mxu0 0.0
    %805 = vmatprep.subr.mxu0 0.0
    %806 = vmatpush1.xpose.msra.mxu0 0.0
    %807 = vmatprep.subr.mxu0 0.0
    %808 = vmatpush1.xpose.msra.mxu0 0.0
    %809 = vmatprep.subr.mxu0 0.0
    %810 = vmatpush1.xpose.msra.mxu0 0.0
    %811 = vmatprep.subr.mxu0 0.0
    %812 = vmatpush1.xpose.msra.mxu0 0.0
    %813 = vmatprep.subr.mxu0 0.0
    %814 = vmatpush1.xpose.msra.mxu0 0.0
    %815 = vmatprep.subr.mxu0 0.0
    %816 = vmatpush1.xpose.msra.mxu0 0.0
    %817 = vmatprep.subr.mxu0 0.0
    %818 = vmatpush1.xpose.msra.mxu0 0.0
    %819 = vmatprep.subr.mxu0 0.0
    %820 = vmatpush1.xpose.msra.mxu0 0.0
    %821 = vmatprep.subr.mxu0 0.0
    %822 = vmatpush1.xpose.msra.mxu0 0.0
    %823 = vmatprep.subr.mxu0 0.0
    %824 = vmatpush1.xpose.msra.mxu0 0.0
    %825 = vmatprep.subr.mxu0 0.0
    %826 = vmatpush1.xpose.msra.mxu0 0.0
    %827 = vmatprep.subr.mxu0 0.0
    %828 = vmatpush1.xpose.msra.mxu0 0.0
    %829 = vmatprep.subr.mxu0 0.0
    %830 = vmatpush1.xpose.msra.mxu0 0.0
    %831 = vmatprep.subr.mxu0 0.0
    %832 = vmatpush1.xpose.msra.mxu0 0.0
    %833 = vmatprep.subr.mxu0 0.0
    %834 = vmatpush1.xpose.msra.mxu0 0.0
    %835 = vmatprep.subr.mxu0 0.0
    %836 = vmatpush1.xpose.msra.mxu0 0.0
    %837 = vmatprep.subr.mxu0 0.0
    %838 = vmatpush1.xpose.msra.mxu0 0.0
    %839 = vmatprep.subr.mxu0 0.0
    %840 = vmatpush1.xpose.msra.mxu0 0.0
    %841 = vmatprep.subr.mxu0 0.0
    %842 = vmatpush1.xpose.msra.mxu0 0.0
    %843 = vmatprep.subr.mxu0 0.0
    %844 = vmatpush1.xpose.msra.mxu0 0.0
    %845 = vmatprep.subr.mxu0 0.0
    %846 = vmatpush1.xpose.msra.mxu0 0.0
    %847 = vmatprep.subr.mxu0 0.0
    %848 = vmatpush1.xpose.msra.mxu0 0.0
    %849 = vmatprep.subr.mxu0 0.0
    %850 = vmatpush1.xpose.msra.mxu0 0.0
    %851 = vmatprep.subr.mxu0 0.0
    %852 = vmatpush1.xpose.msra.mxu0 0.0
    %853 = vmatprep.subr.mxu0 0.0
    %854 = vmatpush1.xpose.msra.mxu0 0.0
    %855 = vmatprep.subr.mxu0 0.0
    %856 = vmatpush1.xpose.msra.mxu0 0.0
    %857 = vmatprep.subr.mxu0 0.0
    %858 = vmatpush1.xpose.msra.mxu0 0.0
    %859 = vmatprep.subr.mxu0 0.0
    %860 = vmatpush1.xpose.msra.mxu0 0.0
    %861 = vmatprep.subr.mxu0 0.0
    %862 = vmatpush1.xpose.msra.mxu0 0.0
    %863 = vmatprep.subr.mxu0 0.0
    %864 = vmatpush1.xpose.msra.mxu0 0.0
    %865 = vmatprep.mubr.f32.mxu0 0.0
    %866 = vmatmul.mubr.f32.gmra.mrb[0].mxu0 %v797
    %v867 = vpop.f32.mrb[0].mxu0
    %v868 = vadd.f32 0.0, %v867
    %v869 = vpop.f32.mrb[0].mxu0
    %870 = vdwg.mxu0
    %871 = vrot.lane.b32.xlu0 %v454, 120
    %v872 = vpop.permute.xlu0 %871
    %873 = vrot.lane.b32.xlu0 %v454, 88
    %v874 = vpop.permute.xlu0 %873
    %v875 = vsel %vm161, %v872, 0
    %v877 = vsel %vm161, %v874, 0
    %879 = vmatprep.subr.mxu0 0.0
    %880 = vmatpush1.xpose.msra.mxu0 %v877
    %881 = vmatprep.subr.mxu0 0.0
    %882 = vmatpush1.xpose.msra.mxu0 0.0
    %883 = vmatprep.subr.mxu0 0.0
    %884 = vmatpush1.xpose.msra.mxu0 0.0
    %885 = vmatprep.subr.mxu0 0.0
    %886 = vmatpush1.xpose.msra.mxu0 0.0
    %887 = vmatprep.subr.mxu0 0.0
    %888 = vmatpush1.xpose.msra.mxu0 0.0
    %889 = vmatprep.subr.mxu0 0.0
    %890 = vmatpush1.xpose.msra.mxu0 0.0
    %891 = vmatprep.subr.mxu0 0.0
    %892 = vmatpush1.xpose.msra.mxu0 0.0
    %893 = vmatprep.subr.mxu0 0.0
    %894 = vmatpush1.xpose.msra.mxu0 0.0
    %895 = vmatprep.subr.mxu0 0.0
    %896 = vmatpush1.xpose.msra.mxu0 0.0
    %897 = vmatprep.subr.mxu0 0.0
    %898 = vmatpush1.xpose.msra.mxu0 0.0
    %899 = vmatprep.subr.mxu0 0.0
    %900 = vmatpush1.xpose.msra.mxu0 0.0
    %901 = vmatprep.subr.mxu0 0.0
    %902 = vmatpush1.xpose.msra.mxu0 0.0
    %903 = vmatprep.subr.mxu0 0.0
    %904 = vmatpush1.xpose.msra.mxu0 0.0
    %905 = vmatprep.subr.mxu0 0.0
    %906 = vmatpush1.xpose.msra.mxu0 0.0
    %907 = vmatprep.subr.mxu0 0.0
    %908 = vmatpush1.xpose.msra.mxu0 0.0
    %909 = vmatprep.subr.mxu0 0.0
    %910 = vmatpush1.xpose.msra.mxu0 0.0
    %911 = vmatprep.subr.mxu0 0.0
    %912 = vmatpush1.xpose.msra.mxu0 0.0
    %913 = vmatprep.subr.mxu0 0.0
    %914 = vmatpush1.xpose.msra.mxu0 0.0
    %915 = vmatprep.subr.mxu0 0.0
    %916 = vmatpush1.xpose.msra.mxu0 0.0
    %917 = vmatprep.subr.mxu0 0.0
    %918 = vmatpush1.xpose.msra.mxu0 0.0
    %919 = vmatprep.subr.mxu0 0.0
    %920 = vmatpush1.xpose.msra.mxu0 0.0
    %921 = vmatprep.subr.mxu0 0.0
    %922 = vmatpush1.xpose.msra.mxu0 0.0
    %923 = vmatprep.subr.mxu0 0.0
    %924 = vmatpush1.xpose.msra.mxu0 0.0
    %925 = vmatprep.subr.mxu0 0.0
    %926 = vmatpush1.xpose.msra.mxu0 0.0
    %927 = vmatprep.subr.mxu0 0.0
    %928 = vmatpush1.xpose.msra.mxu0 0.0
    %929 = vmatprep.subr.mxu0 0.0
    %930 = vmatpush1.xpose.msra.mxu0 0.0
    %931 = vmatprep.subr.mxu0 0.0
    %932 = vmatpush1.xpose.msra.mxu0 0.0
    %933 = vmatprep.subr.mxu0 0.0
    %934 = vmatpush1.xpose.msra.mxu0 0.0
    %935 = vmatprep.subr.mxu0 0.0
    %936 = vmatpush1.xpose.msra.mxu0 0.0
    %937 = vmatprep.subr.mxu0 0.0
    %938 = vmatpush1.xpose.msra.mxu0 0.0
    %939 = vmatprep.subr.mxu0 0.0
    %940 = vmatpush1.xpose.msra.mxu0 0.0
    %941 = vmatprep.subr.mxu0 0.0
    %942 = vmatpush1.xpose.msra.mxu0 0.0
    %943 = vmatprep.mubr.f32.mxu0 0.0
    %944 = vmatmul.mubr.f32.gmra.mrb[0].mxu0 %v875
    %v945 = vpop.f32.mrb[0].mxu0
    %v946 = vadd.f32 0.0, %v945
    %v947 = vpop.f32.mrb[0].mxu0
    %948 = vdwg.mxu0
    %v949 = vmul.f32 %v868, 0.35355338
    %v950 = vmul.f32 %v946, 0.35355338
    %v951 = vadd.f32 %v949, %v357
    %v952 = vadd.f32 %v950, %v361
    %v953 = vsel %vm161, %v951, -inf
    %954 = vmax.xlane.f32.xlu0 %v953
    %v955 = vpop.xlane.xlu0 %954
    %v956 = vsel %vm161, %v952, -inf
    %957 = vmax.xlane.f32.xlu0 %v956
    %v958 = vpop.xlane.xlu0 %957
    %v959 = vsub.f32 %v951, %v955
    %v960 = vsub.f32 %v952, %v958
    %v961 = vmul.f32 %v959, 1.442695
    %v962 = vpow.pop %v961
    %v963 = vmul.f32 %v960, 1.442695
    %v964 = vpow.pop %v963
    %v965 = vsel %vm161, %v962, 0.0
    %966 = vadd.xlane.f32.xlu0 %v965
    %v967 = vpop.xlane.xlu0 %966
    %v968 = vsel %vm161, %v964, 0.0
    %969 = vadd.xlane.f32.xlu0 %v968
    %v970 = vpop.xlane.xlu0 %969
    %v971 = vrcp.pop %v967
    %v972 = vrcp.pop %v970
    %v973 = vmul.f32 %v962, %v971
    %v974 = vmul.f32 %v964, %v972
    %975 = vrot.lane.b32.xlu0 %v449, 56
    %v976 = vpop.permute.xlu0 %975
    %v979 = vsel %vm161, %v973, 0
    %981 = vmatprep.subr.mxu0 0.0
    %982 = vmatpush1.msra.mxu0 %v976
    %983 = vmatprep.subr.mxu0 0.0
    %984 = vmatpush1.msra.mxu0 0.0
    %985 = vmatprep.subr.mxu0 0.0
    %986 = vmatpush1.msra.mxu0 0.0
    %987 = vmatprep.subr.mxu0 0.0
    %988 = vmatpush1.msra.mxu0 0.0
    %989 = vmatprep.subr.mxu0 0.0
    %990 = vmatpush1.msra.mxu0 0.0
    %991 = vmatprep.subr.mxu0 0.0
    %992 = vmatpush1.msra.mxu0 0.0
    %993 = vmatprep.subr.mxu0 0.0
    %994 = vmatpush1.msra.mxu0 0.0
    %995 = vmatprep.subr.mxu0 0.0
    %996 = vmatpush1.msra.mxu0 0.0
    %997 = vmatprep.subr.mxu0 0.0
    %998 = vmatpush1.msra.mxu0 0.0
    %999 = vmatprep.subr.mxu0 0.0
    %1000 = vmatpush1.msra.mxu0 0.0
    %1001 = vmatprep.subr.mxu0 0.0
    %1002 = vmatpush1.msra.mxu0 0.0
    %1003 = vmatprep.subr.mxu0 0.0
    %1004 = vmatpush1.msra.mxu0 0.0
    %1005 = vmatprep.subr.mxu0 0.0
    %1006 = vmatpush1.msra.mxu0 0.0
    %1007 = vmatprep.subr.mxu0 0.0
    %1008 = vmatpush1.msra.mxu0 0.0
    %1009 = vmatprep.subr.mxu0 0.0
    %1010 = vmatpush1.msra.mxu0 0.0
    %1011 = vmatprep.subr.mxu0 0.0
    %1012 = vmatpush1.msra.mxu0 0.0
    %1013 = vmatprep.subr.mxu0 0.0
    %1014 = vmatpush1.msra.mxu0 0.0
    %1015 = vmatprep.subr.mxu0 0.0
    %1016 = vmatpush1.msra.mxu0 0.0
    %1017 = vmatprep.subr.mxu0 0.0
    %1018 = vmatpush1.msra.mxu0 0.0
    %1019 = vmatprep.subr.mxu0 0.0
    %1020 = vmatpush1.msra.mxu0 0.0
    %1021 = vmatprep.subr.mxu0 0.0
    %1022 = vmatpush1.msra.mxu0 0.0
    %1023 = vmatprep.subr.mxu0 0.0
    %1024 = vmatpush1.msra.mxu0 0.0
    %1025 = vmatprep.subr.mxu0 0.0
    %1026 = vmatpush1.msra.mxu0 0.0
    %1027 = vmatprep.subr.mxu0 0.0
    %1028 = vmatpush1.msra.mxu0 0.0
    %1029 = vmatprep.subr.mxu0 0.0
    %1030 = vmatpush1.msra.mxu0 0.0
    %1031 = vmatprep.subr.mxu0 0.0
    %1032 = vmatpush1.msra.mxu0 0.0
    %1033 = vmatprep.subr.mxu0 0.0
    %1034 = vmatpush1.msra.mxu0 0.0
    %1035 = vmatprep.subr.mxu0 0.0
    %1036 = vmatpush1.msra.mxu0 0.0
    %1037 = vmatprep.subr.mxu0 0.0
    %1038 = vmatpush1.msra.mxu0 0.0
    %1039 = vmatprep.subr.mxu0 0.0
    %1040 = vmatpush1.msra.mxu0 0.0
    %1041 = vmatprep.subr.mxu0 0.0
    %1042 = vmatpush1.msra.mxu0 0.0
    %1043 = vmatprep.subr.mxu0 0.0
    %1044 = vmatpush1.msra.mxu0 0.0
    %1045 = vmatprep.mubr.f32.mxu0 0.0
    %1046 = vmatmul.mubr.f32.gmra.mrb[0].mxu0 %v979
    %v1047 = vpop.f32.mrb[0].mxu0
    %v1048 = vadd.f32 0.0, %v1047
    %v1049 = vpop.f32.mrb[0].mxu0
    %1050 = vdwg.mxu0
    %1051 = vrot.lane.b32.xlu0 %v454, 56
    %v1052 = vpop.permute.xlu0 %1051
    %v1055 = vsel %vm161, %v974, 0
    %1057 = vmatprep.subr.mxu0 0.0
    %1058 = vmatpush1.msra.mxu0 %v1052
    %1059 = vmatprep.subr.mxu0 0.0
    %1060 = vmatpush1.msra.mxu0 0.0
    %1061 = vmatprep.subr.mxu0 0.0
    %1062 = vmatpush1.msra.mxu0 0.0
    %1063 = vmatprep.subr.mxu0 0.0
    %1064 = vmatpush1.msra.mxu0 0.0
    %1065 = vmatprep.subr.mxu0 0.0
    %1066 = vmatpush1.msra.mxu0 0.0
    %1067 = vmatprep.subr.mxu0 0.0
    %1068 = vmatpush1.msra.mxu0 0.0
    %1069 = vmatprep.subr.mxu0 0.0
    %1070 = vmatpush1.msra.mxu0 0.0
    %1071 = vmatprep.subr.mxu0 0.0
    %1072 = vmatpush1.msra.mxu0 0.0
    %1073 = vmatprep.subr.mxu0 0.0
    %1074 = vmatpush1.msra.mxu0 0.0
    %1075 = vmatprep.subr.mxu0 0.0
    %1076 = vmatpush1.msra.mxu0 0.0
    %1077 = vmatprep.subr.mxu0 0.0
    %1078 = vmatpush1.msra.mxu0 0.0
    %1079 = vmatprep.subr.mxu0 0.0
    %1080 = vmatpush1.msra.mxu0 0.0
    %1081 = vmatprep.subr.mxu0 0.0
    %1082 = vmatpush1.msra.mxu0 0.0
    %1083 = vmatprep.subr.mxu0 0.0
    %1084 = vmatpush1.msra.mxu0 0.0
    %1085 = vmatprep.subr.mxu0 0.0
    %1086 = vmatpush1.msra.mxu0 0.0
    %1087 = vmatprep.subr.mxu0 0.0
    %1088 = vmatpush1.msra.mxu0 0.0
    %1089 = vmatprep.subr.mxu0 0.0
    %1090 = vmatpush1.msra.mxu0 0.0
    %1091 = vmatprep.subr.mxu0 0.0
    %1092 = vmatpush1.msra.mxu0 0.0
    %1093 = vmatprep.subr.mxu0 0.0
    %1094 = vmatpush1.msra.mxu0 0.0
    %1095 = vmatprep.subr.mxu0 0.0
    %1096 = vmatpush1.msra.mxu0 0.0
    %1097 = vmatprep.subr.mxu0 0.0
    %1098 = vmatpush1.msra.mxu0 0.0
    %1099 = vmatprep.subr.mxu0 0.0
    %1100 = vmatpush1.msra.mxu0 0.0
    %1101 = vmatprep.subr.mxu0 0.0
    %1102 = vmatpush1.msra.mxu0 0.0
    %1103 = vmatprep.subr.mxu0 0.0
    %1104 = vmatpush1.msra.mxu0 0.0
    %1105 = vmatprep.subr.mxu0 0.0
    %1106 = vmatpush1.msra.mxu0 0.0
    %1107 = vmatprep.subr.mxu0 0.0
    %1108 = vmatpush1.msra.mxu0 0.0
    %1109 = vmatprep.subr.mxu0 0.0
    %1110 = vmatpush1.msra.mxu0 0.0
    %1111 = vmatprep.subr.mxu0 0.0
    %1112 = vmatpush1.msra.mxu0 0.0
    %1113 = vmatprep.subr.mxu0 0.0
    %1114 = vmatpush1.msra.mxu0 0.0
    %1115 = vmatprep.subr.mxu0 0.0
    %1116 = vmatpush1.msra.mxu0 0.0
    %1117 = vmatprep.subr.mxu0 0.0
    %1118 = vmatpush1.msra.mxu0 0.0
    %1119 = vmatprep.subr.mxu0 0.0
    %1120 = vmatpush1.msra.mxu0 0.0
    %1121 = vmatprep.mubr.f32.mxu0 0.0
    %1122 = vmatmul.mubr.f32.gmra.mrb[0].mxu0 %v1055
    %v1123 = vpop.f32.mrb[0].mxu0
    %v1124 = vadd.f32 0.0, %v1123
    %v1125 = vpop.f32.mrb[0].mxu0
    %1126 = vdwg.mxu0
    %v1128 = vsel %vm161, %v1048, 0
    %v1131 = vsel %vm161, %v1124, 0
    %1133 = vmatprep.subr.mxu0 0.0
    %1134 = vmatpush1.msra.mxu0 %v458
    %1135 = vmatprep.subr.mxu0 0.0
    %1136 = vmatpush1.msra.mxu0 0.0
    %1137 = vmatprep.subr.mxu0 0.0
    %1138 = vmatpush1.msra.mxu0 0.0
    %1139 = vmatprep.subr.mxu0 0.0
    %1140 = vmatpush1.msra.mxu0 0.0
    %1141 = vmatprep.subr.mxu0 0.0
    %1142 = vmatpush1.msra.mxu0 0.0
    %1143 = vmatprep.subr.mxu0 0.0
    %1144 = vmatpush1.msra.mxu0 0.0
    %1145 = vmatprep.subr.mxu0 0.0
    %1146 = vmatpush1.msra.mxu0 0.0
    %1147 = vmatprep.subr.mxu0 0.0
    %1148 = vmatpush1.msra.mxu0 0.0
    %1149 = vmatprep.subr.mxu0 0.0
    %1150 = vmatpush1.msra.mxu0 0.0
    %1151 = vmatprep.subr.mxu0 0.0
    %1152 = vmatpush1.msra.mxu0 0.0
    %1153 = vmatprep.subr.mxu0 0.0
    %1154 = vmatpush1.msra.mxu0 0.0
    %1155 = vmatprep.subr.mxu0 0.0
    %1156 = vmatpush1.msra.mxu0 0.0
    %1157 = vmatprep.subr.mxu0 0.0
    %1158 = vmatpush1.msra.mxu0 0.0
    %1159 = vmatprep.subr.mxu0 0.0
    %1160 = vmatpush1.msra.mxu0 0.0
    %1161 = vmatprep.subr.mxu0 0.0
    %1162 = vmatpush1.msra.mxu0 0.0
    %1163 = vmatprep.subr.mxu0 0.0
    %1164 = vmatpush1.msra.mxu0 0.0
    %1165 = vmatprep.subr.mxu0 0.0
    %1166 = vmatpush1.msra.mxu0 0.0
    %1167 = vmatprep.subr.mxu0 0.0
    %1168 = vmatpush1.msra.mxu0 0.0
    %1169 = vmatprep.subr.mxu0 0.0
    %1170 = vmatpush1.msra.mxu0 0.0
    %1171 = vmatprep.subr.mxu0 0.0
    %1172 = vmatpush1.msra.mxu0 0.0
    %1173 = vmatprep.subr.mxu0 0.0
    %1174 = vmatpush1.msra.mxu0 0.0
    %1175 = vmatprep.subr.mxu0 0.0
    %1176 = vmatpush1.msra.mxu0 0.0
    %1177 = vmatprep.subr.mxu0 0.0
    %1178 = vmatpush1.msra.mxu0 0.0
    %1179 = vmatprep.subr.mxu0 0.0
    %1180 = vmatpush1.msra.mxu0 0.0
    %1181 = vmatprep.subr.mxu0 0.0
    %1182 = vmatpush1.msra.mxu0 0.0
    %1183 = vmatprep.subr.mxu0 0.0
    %1184 = vmatpush1.msra.mxu0 0.0
    %1185 = vmatprep.subr.mxu0 0.0
    %1186 = vmatpush1.msra.mxu0 0.0
    %1187 = vmatprep.subr.mxu0 0.0
    %1188 = vmatpush1.msra.mxu0 0.0
    %1189 = vmatprep.subr.mxu0 0.0
    %1190 = vmatpush1.msra.mxu0 0.0
    %1191 = vmatprep.subr.mxu0 0.0
    %1192 = vmatpush1.msra.mxu0 0.0
    %1193 = vmatprep.subr.mxu0 0.0
    %1194 = vmatpush1.msra.mxu0 0.0
    %1195 = vmatprep.subr.mxu0 0.0
    %1196 = vmatpush1.msra.mxu0 0.0
    %1197 = vmatprep.mubr.f32.mxu0 0.0
    %1198 = vmatmul.mubr.f32.gmra.mrb[0].mxu0 %v1128
    %v1199 = vpop.f32.mrb[0].mxu0
    %v1200 = vadd.f32 0.0, %v1199
    %v1201 = vpop.f32.mrb[0].mxu0
    %1202 = vmatprep.mubr.f32.mxu0 0.0
    %1203 = vmatmul.mubr.f32.gmra.mrb[0].mxu0 %v1131
    %v1204 = vpop.f32.mrb[0].mxu0
    %v1205 = vadd.f32 0.0, %v1204
    %v1206 = vpop.f32.mrb[0].mxu0
    %1207 = vdwg.mxu0
    %v1209 = vsel %vm161, %v714, 0
    %v1212 = vsel %vm161, %v790, 0
    %1214 = vmatprep.subr.mxu0 0.0
    %1215 = vmatpush1.msra.mxu0 %v457
    %1216 = vmatprep.subr.mxu0 0.0
    %1217 = vmatpush1.msra.mxu0 0.0
    %1218 = vmatprep.subr.mxu0 0.0
    %1219 = vmatpush1.msra.mxu0 0.0
    %1220 = vmatprep.subr.mxu0 0.0
    %1221 = vmatpush1.msra.mxu0 0.0
    %1222 = vmatprep.subr.mxu0 0.0
    %1223 = vmatpush1.msra.mxu0 0.0
    %1224 = vmatprep.subr.mxu0 0.0
    %1225 = vmatpush1.msra.mxu0 0.0
    %1226 = vmatprep.subr.mxu0 0.0
    %1227 = vmatpush1.msra.mxu0 0.0
    %1228 = vmatprep.subr.mxu0 0.0
    %1229 = vmatpush1.msra.mxu0 0.0
    %1230 = vmatprep.subr.mxu0 0.0
    %1231 = vmatpush1.msra.mxu0 0.0
    %1232 = vmatprep.subr.mxu0 0.0
    %1233 = vmatpush1.msra.mxu0 0.0
    %1234 = vmatprep.subr.mxu0 0.0
    %1235 = vmatpush1.msra.mxu0 0.0
    %1236 = vmatprep.subr.mxu0 0.0
    %1237 = vmatpush1.msra.mxu0 0.0
    %1238 = vmatprep.subr.mxu0 0.0
    %1239 = vmatpush1.msra.mxu0 0.0
    %1240 = vmatprep.subr.mxu0 0.0
    %1241 = vmatpush1.msra.mxu0 0.0
    %1242 = vmatprep.subr.mxu0 0.0
    %1243 = vmatpush1.msra.mxu0 0.0
    %1244 = vmatprep.subr.mxu0 0.0
    %1245 = vmatpush1.msra.mxu0 0.0
    %1246 = vmatprep.subr.mxu0 0.0
    %1247 = vmatpush1.msra.mxu0 0.0
    %1248 = vmatprep.subr.mxu0 0.0
    %1249 = vmatpush1.msra.mxu0 0.0
    %1250 = vmatprep.subr.mxu0 0.0
    %1251 = vmatpush1.msra.mxu0 0.0
    %1252 = vmatprep.subr.mxu0 0.0
    %1253 = vmatpush1.msra.mxu0 0.0
    %1254 = vmatprep.subr.mxu0 0.0
    %1255 = vmatpush1.msra.mxu0 0.0
    %1256 = vmatprep.subr.mxu0 0.0
    %1257 = vmatpush1.msra.mxu0 0.0
    %1258 = vmatprep.subr.mxu0 0.0
    %1259 = vmatpush1.msra.mxu0 0.0
    %1260 = vmatprep.subr.mxu0 0.0
    %1261 = vmatpush1.msra.mxu0 0.0
    %1262 = vmatprep.subr.mxu0 0.0
    %1263 = vmatpush1.msra.mxu0 0.0
    %1264 = vmatprep.subr.mxu0 0.0
    %1265 = vmatpush1.msra.mxu0 0.0
    %1266 = vmatprep.subr.mxu0 0.0
    %1267 = vmatpush1.msra.mxu0 0.0
    %1268 = vmatprep.subr.mxu0 0.0
    %1269 = vmatpush1.msra.mxu0 0.0
    %1270 = vmatprep.subr.mxu0 0.0
    %1271 = vmatpush1.msra.mxu0 0.0
    %1272 = vmatprep.subr.mxu0 0.0
    %1273 = vmatpush1.msra.mxu0 0.0
    %1274 = vmatprep.subr.mxu0 0.0
    %1275 = vmatpush1.msra.mxu0 0.0
    %1276 = vmatprep.subr.mxu0 0.0
    %1277 = vmatpush1.msra.mxu0 0.0
    %1278 = vmatprep.mubr.f32.mxu0 0.0
    %1279 = vmatmul.mubr.f32.gmra.mrb[0].mxu0 %v1209
    %v1280 = vpop.f32.mrb[0].mxu0
    %v1281 = vadd.f32 %v1200, %v1280
    %v1282 = vpop.f32.mrb[0].mxu0
    %1283 = vmatprep.mubr.f32.mxu0 0.0
    %1284 = vmatmul.mubr.f32.gmra.mrb[0].mxu0 %v1212
    %v1285 = vpop.f32.mrb[0].mxu0
    %v1286 = vadd.f32 %v1205, %v1285
    %v1287 = vpop.f32.mrb[0].mxu0
    %1288 = vdwg.mxu0
    %1289 = vrot.lane.b32.xlu0 %v449, 112
    %v1290 = vpop.permute.xlu0 %1289
    %1291 = vrot.lane.b32.xlu0 %v449, 80
    %v1292 = vpop.permute.xlu0 %1291
    %v1293 = vsel %vm161, %v1290, 0
    %v1295 = vsel %vm161, %v1292, 0
    %1297 = vmatprep.subr.mxu0 0.0
    %1298 = vmatpush1.xpose.msra.mxu0 %v1295
    %1299 = vmatprep.subr.mxu0 0.0
    %1300 = vmatpush1.xpose.msra.mxu0 0.0
    %1301 = vmatprep.subr.mxu0 0.0
    %1302 = vmatpush1.xpose.msra.mxu0 0.0
    %1303 = vmatprep.subr.mxu0 0.0
    %1304 = vmatpush1.xpose.msra.mxu0 0.0
    %1305 = vmatprep.subr.mxu0 0.0
    %1306 = vmatpush1.xpose.msra.mxu0 0.0
    %1307 = vmatprep.subr.mxu0 0.0
    %1308 = vmatpush1.xpose.msra.mxu0 0.0
    %1309 = vmatprep.subr.mxu0 0.0
    %1310 = vmatpush1.xpose.msra.mxu0 0.0
    %1311 = vmatprep.subr.mxu0 0.0
    %1312 = vmatpush1.xpose.msra.mxu0 0.0
    %1313 = vmatprep.subr.mxu0 0.0
    %1314 = vmatpush1.xpose.msra.mxu0 0.0
    %1315 = vmatprep.subr.mxu0 0.0
    %1316 = vmatpush1.xpose.msra.mxu0 0.0
    %1317 = vmatprep.subr.mxu0 0.0
    %1318 = vmatpush1.xpose.msra.mxu0 0.0
    %1319 = vmatprep.subr.mxu0 0.0
    %1320 = vmatpush1.xpose.msra.mxu0 0.0
    %1321 = vmatprep.subr.mxu0 0.0
    %1322 = vmatpush1.xpose.msra.mxu0 0.0
    %1323 = vmatprep.subr.mxu0 0.0
    %1324 = vmatpush1.xpose.msra.mxu0 0.0
    %1325 = vmatprep.subr.mxu0 0.0
    %1326 = vmatpush1.xpose.msra.mxu0 0.0
    %1327 = vmatprep.subr.mxu0 0.0
    %1328 = vmatpush1.xpose.msra.mxu0 0.0
    %1329 = vmatprep.subr.mxu0 0.0
    %1330 = vmatpush1.xpose.msra.mxu0 0.0
    %1331 = vmatprep.subr.mxu0 0.0
    %1332 = vmatpush1.xpose.msra.mxu0 0.0
    %1333 = vmatprep.subr.mxu0 0.0
    %1334 = vmatpush1.xpose.msra.mxu0 0.0
    %1335 = vmatprep.subr.mxu0 0.0
    %1336 = vmatpush1.xpose.msra.mxu0 0.0
    %1337 = vmatprep.subr.mxu0 0.0
    %1338 = vmatpush1.xpose.msra.mxu0 0.0
    %1339 = vmatprep.subr.mxu0 0.0
    %1340 = vmatpush1.xpose.msra.mxu0 0.0
    %1341 = vmatprep.subr.mxu0 0.0
    %1342 = vmatpush1.xpose.msra.mxu0 0.0
    %1343 = vmatprep.subr.mxu0 0.0
    %1344 = vmatpush1.xpose.msra.mxu0 0.0
    %1345 = vmatprep.subr.mxu0 0.0
    %1346 = vmatpush1.xpose.msra.mxu0 0.0
    %1347 = vmatprep.subr.mxu0 0.0
    %1348 = vmatpush1.xpose.msra.mxu0 0.0
    %1349 = vmatprep.subr.mxu0 0.0
    %1350 = vmatpush1.xpose.msra.mxu0 0.0
    %1351 = vmatprep.subr.mxu0 0.0
    %1352 = vmatpush1.xpose.msra.mxu0 0.0
    %1353 = vmatprep.subr.mxu0 0.0
    %1354 = vmatpush1.xpose.msra.mxu0 0.0
    %1355 = vmatprep.subr.mxu0 0.0
    %1356 = vmatpush1.xpose.msra.mxu0 0.0
    %1357 = vmatprep.subr.mxu0 0.0
    %1358 = vmatpush1.xpose.msra.mxu0 0.0
    %1359 = vmatprep.subr.mxu0 0.0
    %1360 = vmatpush1.xpose.msra.mxu0 0.0
    %1361 = vmatprep.mubr.f32.mxu0 0.0
    %1362 = vmatmul.mubr.f32.gmra.mrb[0].mxu0 %v1293
    %v1363 = vpop.f32.mrb[0].mxu0
    %v1364 = vadd.f32 0.0, %v1363
    %v1365 = vpop.f32.mrb[0].mxu0
    %1366 = vdwg.mxu0
    %1367 = vrot.lane.b32.xlu0 %v454, 112
    %v1368 = vpop.permute.xlu0 %1367
    %1369 = vrot.lane.b32.xlu0 %v454, 80
    %v1370 = vpop.permute.xlu0 %1369
    %v1371 = vsel %vm161, %v1368, 0
    %v1373 = vsel %vm161, %v1370, 0
    %1375 = vmatprep.subr.mxu0 0.0
    %1376 = vmatpush1.xpose.msra.mxu0 %v1373
    %1377 = vmatprep.subr.mxu0 0.0
    %1378 = vmatpush1.xpose.msra.mxu0 0.0
    %1379 = vmatprep.subr.mxu0 0.0
    %1380 = vmatpush1.xpose.msra.mxu0 0.0
    %1381 = vmatprep.subr.mxu0 0.0
    %1382 = vmatpush1.xpose.msra.mxu0 0.0
    %1383 = vmatprep.subr.mxu0 0.0
    %1384 = vmatpush1.xpose.msra.mxu0 0.0
    %1385 = vmatprep.subr.mxu0 0.0
    %1386 = vmatpush1.xpose.msra.mxu0 0.0
    %1387 = vmatprep.subr.mxu0 0.0
    %1388 = vmatpush1.xpose.msra.mxu0 0.0
    %1389 = vmatprep.subr.mxu0 0.0
    %1390 = vmatpush1.xpose.msra.mxu0 0.0
    %1391 = vmatprep.subr.mxu0 0.0
    %1392 = vmatpush1.xpose.msra.mxu0 0.0
    %1393 = vmatprep.subr.mxu0 0.0
    %1394 = vmatpush1.xpose.msra.mxu0 0.0
    %1395 = vmatprep.subr.mxu0 0.0
    %1396 = vmatpush1.xpose.msra.mxu0 0.0
    %1397 = vmatprep.subr.mxu0 0.0
    %1398 = vmatpush1.xpose.msra.mxu0 0.0
    %1399 = vmatprep.subr.mxu0 0.0
    %1400 = vmatpush1.xpose.msra.mxu0 0.0
    %1401 = vmatprep.subr.mxu0 0.0
    %1402 = vmatpush1.xpose.msra.mxu0 0.0
    %1403 = vmatprep.subr.mxu0 0.0
    %1404 = vmatpush1.xpose.msra.mxu0 0.0
    %1405 = vmatprep.subr.mxu0 0.0
    %1406 = vmatpush1.xpose.msra.mxu0 0.0
    %1407 = vmatprep.subr.mxu0 0.0
    %1408 = vmatpush1.xpose.msra.mxu0 0.0
    %1409 = vmatprep.subr.mxu0 0.0
    %1410 = vmatpush1.xpose.msra.mxu0 0.0
    %1411 = vmatprep.subr.mxu0 0.0
    %1412 = vmatpush1.xpose.msra.mxu0 0.0
    %1413 = vmatprep.subr.mxu0 0.0
    %1414 = vmatpush1.xpose.msra.mxu0 0.0
    %1415 = vmatprep.subr.mxu0 0.0
    %1416 = vmatpush1.xpose.msra.mxu0 0.0
    %1417 = vmatprep.subr.mxu0 0.0
    %1418 = vmatpush1.xpose.msra.mxu0 0.0
    %1419 = vmatprep.subr.mxu0 0.0
    %1420 = vmatpush1.xpose.msra.mxu0 0.0
    %1421 = vmatprep.subr.mxu0 0.0
    %1422 = vmatpush1.xpose.msra.mxu0 0.0
    %1423 = vmatprep.subr.mxu0 0.0
    %1424 = vmatpush1.xpose.msra.mxu0 0.0
    %1425 = vmatprep.subr.mxu0 0.0
    %1426 = vmatpush1.xpose.msra.mxu0 0.0
    %1427 = vmatprep.subr.mxu0 0.0
    %1428 = vmatpush1.xpose.msra.mxu0 0.0
    %1429 = vmatprep.subr.mxu0 0.0
    %1430 = vmatpush1.xpose.msra.mxu0 0.0
    %1431 = vmatprep.subr.mxu0 0.0
    %1432 = vmatpush1.xpose.msra.mxu0 0.0
    %1433 = vmatprep.subr.mxu0 0.0
    %1434 = vmatpush1.xpose.msra.mxu0 0.0
    %1435 = vmatprep.subr.mxu0 0.0
    %1436 = vmatpush1.xpose.msra.mxu0 0.0
    %1437 = vmatprep.subr.mxu0 0.0
    %1438 = vmatpush1.xpose.msra.mxu0 0.0
    %1439 = vmatprep.mubr.f32.mxu0 0.0
    %1440 = vmatmul.mubr.f32.gmra.mrb[0].mxu0 %v1371
    %v1441 = vpop.f32.mrb[0].mxu0
    %v1442 = vadd.f32 0.0, %v1441
    %v1443 = vpop.f32.mrb[0].mxu0
    %1444 = vdwg.mxu0
    %v1445 = vmul.f32 %v1364, 0.35355338
    %v1446 = vmul.f32 %v1442, 0.35355338
    %v1447 = vadd.f32 %v1445, %v357
    %v1448 = vadd.f32 %v1446, %v361
    %v1449 = vsel %vm161, %v1447, -inf
    %1450 = vmax.xlane.f32.xlu0 %v1449
    %v1451 = vpop.xlane.xlu0 %1450
    %v1452 = vsel %vm161, %v1448, -inf
    %1453 = vmax.xlane.f32.xlu0 %v1452
    %v1454 = vpop.xlane.xlu0 %1453
    %v1455 = vsub.f32 %v1447, %v1451
    %v1456 = vsub.f32 %v1448, %v1454
    %v1457 = vmul.f32 %v1455, 1.442695
    %v1458 = vpow.pop %v1457
    %v1459 = vmul.f32 %v1456, 1.442695
    %v1460 = vpow.pop %v1459
    %v1461 = vsel %vm161, %v1458, 0.0
    %1462 = vadd.xlane.f32.xlu0 %v1461
    %v1463 = vpop.xlane.xlu0 %1462
    %v1464 = vsel %vm161, %v1460, 0.0
    %1465 = vadd.xlane.f32.xlu0 %v1464
    %v1466 = vpop.xlane.xlu0 %1465
    %v1467 = vrcp.pop %v1463
    %v1468 = vrcp.pop %v1466
    %v1469 = vmul.f32 %v1458, %v1467
    %v1470 = vmul.f32 %v1460, %v1468
    %1471 = vrot.lane.b32.xlu0 %v449, 48
    %v1472 = vpop.permute.xlu0 %1471
    %v1475 = vsel %vm161, %v1469, 0
    %1477 = vmatprep.subr.mxu0 0.0
    %1478 = vmatpush1.msra.mxu0 %v1472
    %1479 = vmatprep.subr.mxu0 0.0
    %1480 = vmatpush1.msra.mxu0 0.0
    %1481 = vmatprep.subr.mxu0 0.0
    %1482 = vmatpush1.msra.mxu0 0.0
    %1483 = vmatprep.subr.mxu0 0.0
    %1484 = vmatpush1.msra.mxu0 0.0
    %1485 = vmatprep.subr.mxu0 0.0
    %1486 = vmatpush1.msra.mxu0 0.0
    %1487 = vmatprep.subr.mxu0 0.0
    %1488 = vmatpush1.msra.mxu0 0.0
    %1489 = vmatprep.subr.mxu0 0.0
    %1490 = vmatpush1.msra.mxu0 0.0
    %1491 = vmatprep.subr.mxu0 0.0
    %1492 = vmatpush1.msra.mxu0 0.0
    %1493 = vmatprep.subr.mxu0 0.0
    %1494 = vmatpush1.msra.mxu0 0.0
    %1495 = vmatprep.subr.mxu0 0.0
    %1496 = vmatpush1.msra.mxu0 0.0
    %1497 = vmatprep.subr.mxu0 0.0
    %1498 = vmatpush1.msra.mxu0 0.0
    %1499 = vmatprep.subr.mxu0 0.0
    %1500 = vmatpush1.msra.mxu0 0.0
    %1501 = vmatprep.subr.mxu0 0.0
    %1502 = vmatpush1.msra.mxu0 0.0
    %1503 = vmatprep.subr.mxu0 0.0
    %1504 = vmatpush1.msra.mxu0 0.0
    %1505 = vmatprep.subr.mxu0 0.0
    %1506 = vmatpush1.msra.mxu0 0.0
    %1507 = vmatprep.subr.mxu0 0.0
    %1508 = vmatpush1.msra.mxu0 0.0
    %1509 = vmatprep.subr.mxu0 0.0
    %1510 = vmatpush1.msra.mxu0 0.0
    %1511 = vmatprep.subr.mxu0 0.0
    %1512 = vmatpush1.msra.mxu0 0.0
    %1513 = vmatprep.subr.mxu0 0.0
    %1514 = vmatpush1.msra.mxu0 0.0
    %1515 = vmatprep.subr.mxu0 0.0
    %1516 = vmatpush1.msra.mxu0 0.0
    %1517 = vmatprep.subr.mxu0 0.0
    %1518 = vmatpush1.msra.mxu0 0.0
    %1519 = vmatprep.subr.mxu0 0.0
    %1520 = vmatpush1.msra.mxu0 0.0
    %1521 = vmatprep.subr.mxu0 0.0
    %1522 = vmatpush1.msra.mxu0 0.0
    %1523 = vmatprep.subr.mxu0 0.0
    %1524 = vmatpush1.msra.mxu0 0.0
    %1525 = vmatprep.subr.mxu0 0.0
    %1526 = vmatpush1.msra.mxu0 0.0
    %1527 = vmatprep.subr.mxu0 0.0
    %1528 = vmatpush1.msra.mxu0 0.0
    %1529 = vmatprep.subr.mxu0 0.0
    %1530 = vmatpush1.msra.mxu0 0.0
    %1531 = vmatprep.subr.mxu0 0.0
    %1532 = vmatpush1.msra.mxu0 0.0
    %1533 = vmatprep.subr.mxu0 0.0
    %1534 = vmatpush1.msra.mxu0 0.0
    %1535 = vmatprep.subr.mxu0 0.0
    %1536 = vmatpush1.msra.mxu0 0.0
    %1537 = vmatprep.subr.mxu0 0.0
    %1538 = vmatpush1.msra.mxu0 0.0
    %1539 = vmatprep.subr.mxu0 0.0
    %1540 = vmatpush1.msra.mxu0 0.0
    %1541 = vmatprep.mubr.f32.mxu0 0.0
    %1542 = vmatmul.mubr.f32.gmra.mrb[0].mxu0 %v1475
    %v1543 = vpop.f32.mrb[0].mxu0
    %v1544 = vadd.f32 0.0, %v1543
    %v1545 = vpop.f32.mrb[0].mxu0
    %1546 = vdwg.mxu0
    %1547 = vrot.lane.b32.xlu0 %v454, 48
    %v1548 = vpop.permute.xlu0 %1547
    %v1551 = vsel %vm161, %v1470, 0
    %1553 = vmatprep.subr.mxu0 0.0
    %1554 = vmatpush1.msra.mxu0 %v1548
    %1555 = vmatprep.subr.mxu0 0.0
    %1556 = vmatpush1.msra.mxu0 0.0
    %1557 = vmatprep.subr.mxu0 0.0
    %1558 = vmatpush1.msra.mxu0 0.0
    %1559 = vmatprep.subr.mxu0 0.0
    %1560 = vmatpush1.msra.mxu0 0.0
    %1561 = vmatprep.subr.mxu0 0.0
    %1562 = vmatpush1.msra.mxu0 0.0
    %1563 = vmatprep.subr.mxu0 0.0
    %1564 = vmatpush1.msra.mxu0 0.0
    %1565 = vmatprep.subr.mxu0 0.0
    %1566 = vmatpush1.msra.mxu0 0.0
    %1567 = vmatprep.subr.mxu0 0.0
    %1568 = vmatpush1.msra.mxu0 0.0
    %1569 = vmatprep.subr.mxu0 0.0
    %1570 = vmatpush1.msra.mxu0 0.0
    %1571 = vmatprep.subr.mxu0 0.0
    %1572 = vmatpush1.msra.mxu0 0.0
    %1573 = vmatprep.subr.mxu0 0.0
    %1574 = vmatpush1.msra.mxu0 0.0
    %1575 = vmatprep.subr.mxu0 0.0
    %1576 = vmatpush1.msra.mxu0 0.0
    %1577 = vmatprep.subr.mxu0 0.0
    %1578 = vmatpush1.msra.mxu0 0.0
    %1579 = vmatprep.subr.mxu0 0.0
    %1580 = vmatpush1.msra.mxu0 0.0
    %1581 = vmatprep.subr.mxu0 0.0
    %1582 = vmatpush1.msra.mxu0 0.0
    %1583 = vmatprep.subr.mxu0 0.0
    %1584 = vmatpush1.msra.mxu0 0.0
    %1585 = vmatprep.subr.mxu0 0.0
    %1586 = vmatpush1.msra.mxu0 0.0
    %1587 = vmatprep.subr.mxu0 0.0
    %1588 = vmatpush1.msra.mxu0 0.0
    %1589 = vmatprep.subr.mxu0 0.0
    %1590 = vmatpush1.msra.mxu0 0.0
    %1591 = vmatprep.subr.mxu0 0.0
    %1592 = vmatpush1.msra.mxu0 0.0
    %1593 = vmatprep.subr.mxu0 0.0
    %1594 = vmatpush1.msra.mxu0 0.0
    %1595 = vmatprep.subr.mxu0 0.0
    %1596 = vmatpush1.msra.mxu0 0.0
    %1597 = vmatprep.subr.mxu0 0.0
    %1598 = vmatpush1.msra.mxu0 0.0
    %1599 = vmatprep.subr.mxu0 0.0
    %1600 = vmatpush1.msra.mxu0 0.0
    %1601 = vmatprep.subr.mxu0 0.0
    %1602 = vmatpush1.msra.mxu0 0.0
    %1603 = vmatprep.subr.mxu0 0.0
    %1604 = vmatpush1.msra.mxu0 0.0
    %1605 = vmatprep.subr.mxu0 0.0
    %1606 = vmatpush1.msra.mxu0 0.0
    %1607 = vmatprep.subr.mxu0 0.0
    %1608 = vmatpush1.msra.mxu0 0.0
    %1609 = vmatprep.subr.mxu0 0.0
    %1610 = vmatpush1.msra.mxu0 0.0
    %1611 = vmatprep.subr.mxu0 0.0
    %1612 = vmatpush1.msra.mxu0 0.0
    %1613 = vmatprep.subr.mxu0 0.0
    %1614 = vmatpush1.msra.mxu0 0.0
    %1615 = vmatprep.subr.mxu0 0.0
    %1616 = vmatpush1.msra.mxu0 0.0
    %1617 = vmatprep.mubr.f32.mxu0 0.0
    %1618 = vmatmul.mubr.f32.gmra.mrb[0].mxu0 %v1551
    %v1619 = vpop.f32.mrb[0].mxu0
    %v1620 = vadd.f32 0.0, %v1619
    %v1621 = vpop.f32.mrb[0].mxu0
    %1622 = vdwg.mxu0
    %v1624 = vsel %vm161, %v1544, 0
    %v1627 = vsel %vm161, %v1620, 0
    %1629 = vmatprep.subr.mxu0 0.0
    %1630 = vmatpush1.msra.mxu0 %v459
    %1631 = vmatprep.subr.mxu0 0.0
    %1632 = vmatpush1.msra.mxu0 0.0
    %1633 = vmatprep.subr.mxu0 0.0
    %1634 = vmatpush1.msra.mxu0 0.0
    %1635 = vmatprep.subr.mxu0 0.0
    %1636 = vmatpush1.msra.mxu0 0.0
    %1637 = vmatprep.subr.mxu0 0.0
    %1638 = vmatpush1.msra.mxu0 0.0
    %1639 = vmatprep.subr.mxu0 0.0
    %1640 = vmatpush1.msra.mxu0 0.0
    %1641 = vmatprep.subr.mxu0 0.0
    %1642 = vmatpush1.msra.mxu0 0.0
    %1643 = vmatprep.subr.mxu0 0.0
    %1644 = vmatpush1.msra.mxu0 0.0
    %1645 = vmatprep.subr.mxu0 0.0
    %1646 = vmatpush1.msra.mxu0 0.0
    %1647 = vmatprep.subr.mxu0 0.0
    %1648 = vmatpush1.msra.mxu0 0.0
    %1649 = vmatprep.subr.mxu0 0.0
    %1650 = vmatpush1.msra.mxu0 0.0
    %1651 = vmatprep.subr.mxu0 0.0
    %1652 = vmatpush1.msra.mxu0 0.0
    %1653 = vmatprep.subr.mxu0 0.0
    %1654 = vmatpush1.msra.mxu0 0.0
    %1655 = vmatprep.subr.mxu0 0.0
    %1656 = vmatpush1.msra.mxu0 0.0
    %1657 = vmatprep.subr.mxu0 0.0
    %1658 = vmatpush1.msra.mxu0 0.0
    %1659 = vmatprep.subr.mxu0 0.0
    %1660 = vmatpush1.msra.mxu0 0.0
    %1661 = vmatprep.subr.mxu0 0.0
    %1662 = vmatpush1.msra.mxu0 0.0
    %1663 = vmatprep.subr.mxu0 0.0
    %1664 = vmatpush1.msra.mxu0 0.0
    %1665 = vmatprep.subr.mxu0 0.0
    %1666 = vmatpush1.msra.mxu0 0.0
    %1667 = vmatprep.subr.mxu0 0.0
    %1668 = vmatpush1.msra.mxu0 0.0
    %1669 = vmatprep.subr.mxu0 0.0
    %1670 = vmatpush1.msra.mxu0 0.0
    %1671 = vmatprep.subr.mxu0 0.0
    %1672 = vmatpush1.msra.mxu0 0.0
    %1673 = vmatprep.subr.mxu0 0.0
    %1674 = vmatpush1.msra.mxu0 0.0
    %1675 = vmatprep.subr.mxu0 0.0
    %1676 = vmatpush1.msra.mxu0 0.0
    %1677 = vmatprep.subr.mxu0 0.0
    %1678 = vmatpush1.msra.mxu0 0.0
    %1679 = vmatprep.subr.mxu0 0.0
    %1680 = vmatpush1.msra.mxu0 0.0
    %1681 = vmatprep.subr.mxu0 0.0
    %1682 = vmatpush1.msra.mxu0 0.0
    %1683 = vmatprep.subr.mxu0 0.0
    %1684 = vmatpush1.msra.mxu0 0.0
    %1685 = vmatprep.subr.mxu0 0.0
    %1686 = vmatpush1.msra.mxu0 0.0
    %1687 = vmatprep.subr.mxu0 0.0
    %1688 = vmatpush1.msra.mxu0 0.0
    %1689 = vmatprep.subr.mxu0 0.0
    %1690 = vmatpush1.msra.mxu0 0.0
    %1691 = vmatprep.subr.mxu0 0.0
    %1692 = vmatpush1.msra.mxu0 0.0
    %1693 = vmatprep.mubr.f32.mxu0 0.0
    %1694 = vmatmul.mubr.f32.gmra.mrb[0].mxu0 %v1624
    %v1695 = vpop.f32.mrb[0].mxu0
    %v1696 = vadd.f32 0.0, %v1695
    %v1697 = vpop.f32.mrb[0].mxu0
    %1698 = vmatprep.mubr.f32.mxu0 0.0
    %1699 = vmatmul.mubr.f32.gmra.mrb[0].mxu0 %v1627
    %v1700 = vpop.f32.mrb[0].mxu0
    %v1701 = vadd.f32 0.0, %v1700
    %v1702 = vpop.f32.mrb[0].mxu0
    %1703 = vdwg.mxu0
    %v1704 = vadd.f32 %v1281, %v1696
    %v1705 = vadd.f32 %v1286, %v1701
    %1706 = vrot.lane.b32.xlu0 %v449, 104
    %v1707 = vpop.permute.xlu0 %1706
    %1708 = vrot.lane.b32.xlu0 %v449, 72
    %v1709 = vpop.permute.xlu0 %1708
    %v1710 = vsel %vm161, %v1707, 0
    %v1712 = vsel %vm161, %v1709, 0
    %1714 = vmatprep.subr.mxu0 0.0
    %1715 = vmatpush1.xpose.msra.mxu0 %v1712
    %1716 = vmatprep.subr.mxu0 0.0
    %1717 = vmatpush1.xpose.msra.mxu0 0.0
    %1718 = vmatprep.subr.mxu0 0.0
    %1719 = vmatpush1.xpose.msra.mxu0 0.0
    %1720 = vmatprep.subr.mxu0 0.0
    %1721 = vmatpush1.xpose.msra.mxu0 0.0
    %1722 = vmatprep.subr.mxu0 0.0
    %1723 = vmatpush1.xpose.msra.mxu0 0.0
    %1724 = vmatprep.subr.mxu0 0.0
    %1725 = vmatpush1.xpose.msra.mxu0 0.0
    %1726 = vmatprep.subr.mxu0 0.0
    %1727 = vmatpush1.xpose.msra.mxu0 0.0
    %1728 = vmatprep.subr.mxu0 0.0
    %1729 = vmatpush1.xpose.msra.mxu0 0.0
    %1730 = vmatprep.subr.mxu0 0.0
    %1731 = vmatpush1.xpose.msra.mxu0 0.0
    %1732 = vmatprep.subr.mxu0 0.0
    %1733 = vmatpush1.xpose.msra.mxu0 0.0
    %1734 = vmatprep.subr.mxu0 0.0
    %1735 = vmatpush1.xpose.msra.mxu0 0.0
    %1736 = vmatprep.subr.mxu0 0.0
    %1737 = vmatpush1.xpose.msra.mxu0 0.0
    %1738 = vmatprep.subr.mxu0 0.0
    %1739 = vmatpush1.xpose.msra.mxu0 0.0
    %1740 = vmatprep.subr.mxu0 0.0
    %1741 = vmatpush1.xpose.msra.mxu0 0.0
    %1742 = vmatprep.subr.mxu0 0.0
    %1743 = vmatpush1.xpose.msra.mxu0 0.0
    %1744 = vmatprep.subr.mxu0 0.0
    %1745 = vmatpush1.xpose.msra.mxu0 0.0
    %1746 = vmatprep.subr.mxu0 0.0
    %1747 = vmatpush1.xpose.msra.mxu0 0.0
    %1748 = vmatprep.subr.mxu0 0.0
    %1749 = vmatpush1.xpose.msra.mxu0 0.0
    %1750 = vmatprep.subr.mxu0 0.0
    %1751 = vmatpush1.xpose.msra.mxu0 0.0
    %1752 = vmatprep.subr.mxu0 0.0
    %1753 = vmatpush1.xpose.msra.mxu0 0.0
    %1754 = vmatprep.subr.mxu0 0.0
    %1755 = vmatpush1.xpose.msra.mxu0 0.0
    %1756 = vmatprep.subr.mxu0 0.0
    %1757 = vmatpush1.xpose.msra.mxu0 0.0
    %1758 = vmatprep.subr.mxu0 0.0
    %1759 = vmatpush1.xpose.msra.mxu0 0.0
    %1760 = vmatprep.subr.mxu0 0.0
    %1761 = vmatpush1.xpose.msra.mxu0 0.0
    %1762 = vmatprep.subr.mxu0 0.0
    %1763 = vmatpush1.xpose.msra.mxu0 0.0
    %1764 = vmatprep.subr.mxu0 0.0
    %1765 = vmatpush1.xpose.msra.mxu0 0.0
    %1766 = vmatprep.subr.mxu0 0.0
    %1767 = vmatpush1.xpose.msra.mxu0 0.0
    %1768 = vmatprep.subr.mxu0 0.0
    %1769 = vmatpush1.xpose.msra.mxu0 0.0
    %1770 = vmatprep.subr.mxu0 0.0
    %1771 = vmatpush1.xpose.msra.mxu0 0.0
    %1772 = vmatprep.subr.mxu0 0.0
    %1773 = vmatpush1.xpose.msra.mxu0 0.0
    %1774 = vmatprep.subr.mxu0 0.0
    %1775 = vmatpush1.xpose.msra.mxu0 0.0
    %1776 = vmatprep.subr.mxu0 0.0
    %1777 = vmatpush1.xpose.msra.mxu0 0.0
    %1778 = vmatprep.mubr.f32.mxu0 0.0
    %1779 = vmatmul.mubr.f32.gmra.mrb[0].mxu0 %v1710
    %v1780 = vpop.f32.mrb[0].mxu0
    %v1781 = vadd.f32 0.0, %v1780
    %v1782 = vpop.f32.mrb[0].mxu0
    %1783 = vdwg.mxu0
    %1784 = vrot.lane.b32.xlu0 %v454, 104
    %v1785 = vpop.permute.xlu0 %1784
    %1786 = vrot.lane.b32.xlu0 %v454, 72
    %v1787 = vpop.permute.xlu0 %1786
    %v1788 = vsel %vm161, %v1785, 0
    %v1790 = vsel %vm161, %v1787, 0
    %1792 = vmatprep.subr.mxu0 0.0
    %1793 = vmatpush1.xpose.msra.mxu0 %v1790
    %1794 = vmatprep.subr.mxu0 0.0
    %1795 = vmatpush1.xpose.msra.mxu0 0.0
    %1796 = vmatprep.subr.mxu0 0.0
    %1797 = vmatpush1.xpose.msra.mxu0 0.0
    %1798 = vmatprep.subr.mxu0 0.0
    %1799 = vmatpush1.xpose.msra.mxu0 0.0
    %1800 = vmatprep.subr.mxu0 0.0
    %1801 = vmatpush1.xpose.msra.mxu0 0.0
    %1802 = vmatprep.subr.mxu0 0.0
    %1803 = vmatpush1.xpose.msra.mxu0 0.0
    %1804 = vmatprep.subr.mxu0 0.0
    %1805 = vmatpush1.xpose.msra.mxu0 0.0
    %1806 = vmatprep.subr.mxu0 0.0
    %1807 = vmatpush1.xpose.msra.mxu0 0.0
    %1808 = vmatprep.subr.mxu0 0.0
    %1809 = vmatpush1.xpose.msra.mxu0 0.0
    %1810 = vmatprep.subr.mxu0 0.0
    %1811 = vmatpush1.xpose.msra.mxu0 0.0
    %1812 = vmatprep.subr.mxu0 0.0
    %1813 = vmatpush1.xpose.msra.mxu0 0.0
    %1814 = vmatprep.subr.mxu0 0.0
    %1815 = vmatpush1.xpose.msra.mxu0 0.0
    %1816 = vmatprep.subr.mxu0 0.0
    %1817 = vmatpush1.xpose.msra.mxu0 0.0
    %1818 = vmatprep.subr.mxu0 0.0
    %1819 = vmatpush1.xpose.msra.mxu0 0.0
    %1820 = vmatprep.subr.mxu0 0.0
    %1821 = vmatpush1.xpose.msra.mxu0 0.0
    %1822 = vmatprep.subr.mxu0 0.0
    %1823 = vmatpush1.xpose.msra.mxu0 0.0
    %1824 = vmatprep.subr.mxu0 0.0
    %1825 = vmatpush1.xpose.msra.mxu0 0.0
    %1826 = vmatprep.subr.mxu0 0.0
    %1827 = vmatpush1.xpose.msra.mxu0 0.0
    %1828 = vmatprep.subr.mxu0 0.0
    %1829 = vmatpush1.xpose.msra.mxu0 0.0
    %1830 = vmatprep.subr.mxu0 0.0
    %1831 = vmatpush1.xpose.msra.mxu0 0.0
    %1832 = vmatprep.subr.mxu0 0.0
    %1833 = vmatpush1.xpose.msra.mxu0 0.0
    %1834 = vmatprep.subr.mxu0 0.0
    %1835 = vmatpush1.xpose.msra.mxu0 0.0
    %1836 = vmatprep.subr.mxu0 0.0
    %1837 = vmatpush1.xpose.msra.mxu0 0.0
    %1838 = vmatprep.subr.mxu0 0.0
    %1839 = vmatpush1.xpose.msra.mxu0 0.0
    %1840 = vmatprep.subr.mxu0 0.0
    %1841 = vmatpush1.xpose.msra.mxu0 0.0
    %1842 = vmatprep.subr.mxu0 0.0
    %1843 = vmatpush1.xpose.msra.mxu0 0.0
    %1844 = vmatprep.subr.mxu0 0.0
    %1845 = vmatpush1.xpose.msra.mxu0 0.0
    %1846 = vmatprep.subr.mxu0 0.0
    %1847 = vmatpush1.xpose.msra.mxu0 0.0
    %1848 = vmatprep.subr.mxu0 0.0
    %1849 = vmatpush1.xpose.msra.mxu0 0.0
    %1850 = vmatprep.subr.mxu0 0.0
    %1851 = vmatpush1.xpose.msra.mxu0 0.0
    %1852 = vmatprep.subr.mxu0 0.0
    %1853 = vmatpush1.xpose.msra.mxu0 0.0
    %1854 = vmatprep.subr.mxu0 0.0
    %1855 = vmatpush1.xpose.msra.mxu0 0.0
    %1856 = vmatprep.mubr.f32.mxu0 0.0
    %1857 = vmatmul.mubr.f32.gmra.mrb[0].mxu0 %v1788
    %v1858 = vpop.f32.mrb[0].mxu0
    %v1859 = vadd.f32 0.0, %v1858
    %v1860 = vpop.f32.mrb[0].mxu0
    %1861 = vdwg.mxu0
    %v1862 = vmul.f32 %v1781, 0.35355338
    %v1863 = vmul.f32 %v1859, 0.35355338
    %v1864 = vadd.f32 %v1862, %v357
    %v1865 = vadd.f32 %v1863, %v361
    %v1866 = vsel %vm161, %v1864, -inf
    %1867 = vmax.xlane.f32.xlu0 %v1866
    %v1868 = vpop.xlane.xlu0 %1867
    %v1869 = vsel %vm161, %v1865, -inf
    %1870 = vmax.xlane.f32.xlu0 %v1869
    %v1871 = vpop.xlane.xlu0 %1870
    %v1872 = vsub.f32 %v1864, %v1868
    %v1873 = vsub.f32 %v1865, %v1871
    %v1874 = vmul.f32 %v1872, 1.442695
    %v1875 = vpow.pop %v1874
    %v1876 = vmul.f32 %v1873, 1.442695
    %v1877 = vpow.pop %v1876
    %v1878 = vsel %vm161, %v1875, 0.0
    %1879 = vadd.xlane.f32.xlu0 %v1878
    %v1880 = vpop.xlane.xlu0 %1879
    %v1881 = vsel %vm161, %v1877, 0.0
    %1882 = vadd.xlane.f32.xlu0 %v1881
    %v1883 = vpop.xlane.xlu0 %1882
    %v1884 = vrcp.pop %v1880
    %v1885 = vrcp.pop %v1883
    %v1886 = vmul.f32 %v1875, %v1884
    %v1887 = vmul.f32 %v1877, %v1885
    %1888 = vrot.lane.b32.xlu0 %v449, 40
    %v1889 = vpop.permute.xlu0 %1888
    %v1892 = vsel %vm161, %v1886, 0
    %1894 = vmatprep.subr.mxu0 0.0
    %1895 = vmatpush1.msra.mxu0 %v1889
    %1896 = vmatprep.subr.mxu0 0.0
    %1897 = vmatpush1.msra.mxu0 0.0
    %1898 = vmatprep.subr.mxu0 0.0
    %1899 = vmatpush1.msra.mxu0 0.0
    %1900 = vmatprep.subr.mxu0 0.0
    %1901 = vmatpush1.msra.mxu0 0.0
    %1902 = vmatprep.subr.mxu0 0.0
    %1903 = vmatpush1.msra.mxu0 0.0
    %1904 = vmatprep.subr.mxu0 0.0
    %1905 = vmatpush1.msra.mxu0 0.0
    %1906 = vmatprep.subr.mxu0 0.0
    %1907 = vmatpush1.msra.mxu0 0.0
    %1908 = vmatprep.subr.mxu0 0.0
    %1909 = vmatpush1.msra.mxu0 0.0
    %1910 = vmatprep.subr.mxu0 0.0
    %1911 = vmatpush1.msra.mxu0 0.0
    %1912 = vmatprep.subr.mxu0 0.0
    %1913 = vmatpush1.msra.mxu0 0.0
    %1914 = vmatprep.subr.mxu0 0.0
    %1915 = vmatpush1.msra.mxu0 0.0
    %1916 = vmatprep.subr.mxu0 0.0
    %1917 = vmatpush1.msra.mxu0 0.0
    %1918 = vmatprep.subr.mxu0 0.0
    %1919 = vmatpush1.msra.mxu0 0.0
    %1920 = vmatprep.subr.mxu0 0.0
    %1921 = vmatpush1.msra.mxu0 0.0
    %1922 = vmatprep.subr.mxu0 0.0
    %1923 = vmatpush1.msra.mxu0 0.0
    %1924 = vmatprep.subr.mxu0 0.0
    %1925 = vmatpush1.msra.mxu0 0.0
    %1926 = vmatprep.subr.mxu0 0.0
    %1927 = vmatpush1.msra.mxu0 0.0
    %1928 = vmatprep.subr.mxu0 0.0
    %1929 = vmatpush1.msra.mxu0 0.0
    %1930 = vmatprep.subr.mxu0 0.0
    %1931 = vmatpush1.msra.mxu0 0.0
    %1932 = vmatprep.subr.mxu0 0.0
    %1933 = vmatpush1.msra.mxu0 0.0
    %1934 = vmatprep.subr.mxu0 0.0
    %1935 = vmatpush1.msra.mxu0 0.0
    %1936 = vmatprep.subr.mxu0 0.0
    %1937 = vmatpush1.msra.mxu0 0.0
    %1938 = vmatprep.subr.mxu0 0.0
    %1939 = vmatpush1.msra.mxu0 0.0
    %1940 = vmatprep.subr.mxu0 0.0
    %1941 = vmatpush1.msra.mxu0 0.0
    %1942 = vmatprep.subr.mxu0 0.0
    %1943 = vmatpush1.msra.mxu0 0.0
    %1944 = vmatprep.subr.mxu0 0.0
    %1945 = vmatpush1.msra.mxu0 0.0
    %1946 = vmatprep.subr.mxu0 0.0
    %1947 = vmatpush1.msra.mxu0 0.0
    %1948 = vmatprep.subr.mxu0 0.0
    %1949 = vmatpush1.msra.mxu0 0.0
    %1950 = vmatprep.subr.mxu0 0.0
    %1951 = vmatpush1.msra.mxu0 0.0
    %1952 = vmatprep.subr.mxu0 0.0
    %1953 = vmatpush1.msra.mxu0 0.0
    %1954 = vmatprep.subr.mxu0 0.0
    %1955 = vmatpush1.msra.mxu0 0.0
    %1956 = vmatprep.subr.mxu0 0.0
    %1957 = vmatpush1.msra.mxu0 0.0
    %1958 = vmatprep.mubr.f32.mxu0 0.0
    %1959 = vmatmul.mubr.f32.gmra.mrb[0].mxu0 %v1892
    %v1960 = vpop.f32.mrb[0].mxu0
    %v1961 = vadd.f32 0.0, %v1960
    %v1962 = vpop.f32.mrb[0].mxu0
    %1963 = vdwg.mxu0
    %1964 = vrot.lane.b32.xlu0 %v454, 40
    %v1965 = vpop.permute.xlu0 %1964
    %v1968 = vsel %vm161, %v1887, 0
    %1970 = vmatprep.subr.mxu0 0.0
    %1971 = vmatpush1.msra.mxu0 %v1965
    %1972 = vmatprep.subr.mxu0 0.0
    %1973 = vmatpush1.msra.mxu0 0.0
    %1974 = vmatprep.subr.mxu0 0.0
    %1975 = vmatpush1.msra.mxu0 0.0
    %1976 = vmatprep.subr.mxu0 0.0
    %1977 = vmatpush1.msra.mxu0 0.0
    %1978 = vmatprep.subr.mxu0 0.0
    %1979 = vmatpush1.msra.mxu0 0.0
    %1980 = vmatprep.subr.mxu0 0.0
    %1981 = vmatpush1.msra.mxu0 0.0
    %1982 = vmatprep.subr.mxu0 0.0
    %1983 = vmatpush1.msra.mxu0 0.0
    %1984 = vmatprep.subr.mxu0 0.0
    %1985 = vmatpush1.msra.mxu0 0.0
    %1986 = vmatprep.subr.mxu0 0.0
    %1987 = vmatpush1.msra.mxu0 0.0
    %1988 = vmatprep.subr.mxu0 0.0
    %1989 = vmatpush1.msra.mxu0 0.0
    %1990 = vmatprep.subr.mxu0 0.0
    %1991 = vmatpush1.msra.mxu0 0.0
    %1992 = vmatprep.subr.mxu0 0.0
    %1993 = vmatpush1.msra.mxu0 0.0
    %1994 = vmatprep.subr.mxu0 0.0
    %1995 = vmatpush1.msra.mxu0 0.0
    %1996 = vmatprep.subr.mxu0 0.0
    %1997 = vmatpush1.msra.mxu0 0.0
    %1998 = vmatprep.subr.mxu0 0.0
    %1999 = vmatpush1.msra.mxu0 0.0
    %2000 = vmatprep.subr.mxu0 0.0
    %2001 = vmatpush1.msra.mxu0 0.0
    %2002 = vmatprep.subr.mxu0 0.0
    %2003 = vmatpush1.msra.mxu0 0.0
    %2004 = vmatprep.subr.mxu0 0.0
    %2005 = vmatpush1.msra.mxu0 0.0
    %2006 = vmatprep.subr.mxu0 0.0
    %2007 = vmatpush1.msra.mxu0 0.0
    %2008 = vmatprep.subr.mxu0 0.0
    %2009 = vmatpush1.msra.mxu0 0.0
    %2010 = vmatprep.subr.mxu0 0.0
    %2011 = vmatpush1.msra.mxu0 0.0
    %2012 = vmatprep.subr.mxu0 0.0
    %2013 = vmatpush1.msra.mxu0 0.0
    %2014 = vmatprep.subr.mxu0 0.0
    %2015 = vmatpush1.msra.mxu0 0.0
    %2016 = vmatprep.subr.mxu0 0.0
    %2017 = vmatpush1.msra.mxu0 0.0
    %2018 = vmatprep.subr.mxu0 0.0
    %2019 = vmatpush1.msra.mxu0 0.0
    %2020 = vmatprep.subr.mxu0 0.0
    %2021 = vmatpush1.msra.mxu0 0.0
    %2022 = vmatprep.subr.mxu0 0.0
    %2023 = vmatpush1.msra.mxu0 0.0
    %2024 = vmatprep.subr.mxu0 0.0
    %2025 = vmatpush1.msra.mxu0 0.0
    %2026 = vmatprep.subr.mxu0 0.0
    %2027 = vmatpush1.msra.mxu0 0.0
    %2028 = vmatprep.subr.mxu0 0.0
    %2029 = vmatpush1.msra.mxu0 0.0
    %2030 = vmatprep.subr.mxu0 0.0
    %2031 = vmatpush1.msra.mxu0 0.0
    %2032 = vmatprep.subr.mxu0 0.0
    %2033 = vmatpush1.msra.mxu0 0.0
    %2034 = vmatprep.mubr.f32.mxu0 0.0
    %2035 = vmatmul.mubr.f32.gmra.mrb[0].mxu0 %v1968
    %v2036 = vpop.f32.mrb[0].mxu0
    %v2037 = vadd.f32 0.0, %v2036
    %v2038 = vpop.f32.mrb[0].mxu0
    %2039 = vdwg.mxu0
    %v2041 = vsel %vm161, %v1961, 0
    %v2044 = vsel %vm161, %v2037, 0
    %2046 = vmatprep.subr.mxu0 0.0
    %2047 = vmatpush1.msra.mxu0 %v460
    %2048 = vmatprep.subr.mxu0 0.0
    %2049 = vmatpush1.msra.mxu0 0.0
    %2050 = vmatprep.subr.mxu0 0.0
    %2051 = vmatpush1.msra.mxu0 0.0
    %2052 = vmatprep.subr.mxu0 0.0
    %2053 = vmatpush1.msra.mxu0 0.0
    %2054 = vmatprep.subr.mxu0 0.0
    %2055 = vmatpush1.msra.mxu0 0.0
    %2056 = vmatprep.subr.mxu0 0.0
    %2057 = vmatpush1.msra.mxu0 0.0
    %2058 = vmatprep.subr.mxu0 0.0
    %2059 = vmatpush1.msra.mxu0 0.0
    %2060 = vmatprep.subr.mxu0 0.0
    %2061 = vmatpush1.msra.mxu0 0.0
    %2062 = vmatprep.subr.mxu0 0.0
    %2063 = vmatpush1.msra.mxu0 0.0
    %2064 = vmatprep.subr.mxu0 0.0
    %2065 = vmatpush1.msra.mxu0 0.0
    %2066 = vmatprep.subr.mxu0 0.0
    %2067 = vmatpush1.msra.mxu0 0.0
    %2068 = vmatprep.subr.mxu0 0.0
    %2069 = vmatpush1.msra.mxu0 0.0
    %2070 = vmatprep.subr.mxu0 0.0
    %2071 = vmatpush1.msra.mxu0 0.0
    %2072 = vmatprep.subr.mxu0 0.0
    %2073 = vmatpush1.msra.mxu0 0.0
    %2074 = vmatprep.subr.mxu0 0.0
    %2075 = vmatpush1.msra.mxu0 0.0
    %2076 = vmatprep.subr.mxu0 0.0
    %2077 = vmatpush1.msra.mxu0 0.0
    %2078 = vmatprep.subr.mxu0 0.0
    %2079 = vmatpush1.msra.mxu0 0.0
    %2080 = vmatprep.subr.mxu0 0.0
    %2081 = vmatpush1.msra.mxu0 0.0
    %2082 = vmatprep.subr.mxu0 0.0
    %2083 = vmatpush1.msra.mxu0 0.0
    %2084 = vmatprep.subr.mxu0 0.0
    %2085 = vmatpush1.msra.mxu0 0.0
    %2086 = vmatprep.subr.mxu0 0.0
    %2087 = vmatpush1.msra.mxu0 0.0
    %2088 = vmatprep.subr.mxu0 0.0
    %2089 = vmatpush1.msra.mxu0 0.0
    %2090 = vmatprep.subr.mxu0 0.0
    %2091 = vmatpush1.msra.mxu0 0.0
    %2092 = vmatprep.subr.mxu0 0.0
    %2093 = vmatpush1.msra.mxu0 0.0
    %2094 = vmatprep.subr.mxu0 0.0
    %2095 = vmatpush1.msra.mxu0 0.0
    %2096 = vmatprep.subr.mxu0 0.0
    %2097 = vmatpush1.msra.mxu0 0.0
    %2098 = vmatprep.subr.mxu0 0.0
    %2099 = vmatpush1.msra.mxu0 0.0
    %2100 = vmatprep.subr.mxu0 0.0
    %2101 = vmatpush1.msra.mxu0 0.0
    %2102 = vmatprep.subr.mxu0 0.0
    %2103 = vmatpush1.msra.mxu0 0.0
    %2104 = vmatprep.subr.mxu0 0.0
    %2105 = vmatpush1.msra.mxu0 0.0
    %2106 = vmatprep.subr.mxu0 0.0
    %2107 = vmatpush1.msra.mxu0 0.0
    %2108 = vmatprep.subr.mxu0 0.0
    %2109 = vmatpush1.msra.mxu0 0.0
    %2110 = vmatprep.mubr.f32.mxu0 0.0
    %2111 = vmatmul.mubr.f32.gmra.mrb[0].mxu0 %v2041
    %v2112 = vpop.f32.mrb[0].mxu0
    %v2113 = vadd.f32 0.0, %v2112
    %v2114 = vpop.f32.mrb[0].mxu0
    %2115 = vmatprep.mubr.f32.mxu0 0.0
    %2116 = vmatmul.mubr.f32.gmra.mrb[0].mxu0 %v2044
    %v2117 = vpop.f32.mrb[0].mxu0
    %v2118 = vadd.f32 0.0, %v2117
    %v2119 = vpop.f32.mrb[0].mxu0
    %2120 = vdwg.mxu0
    %v2121 = vadd.f32 %v1704, %v2113
    %v2122 = vadd.f32 %v1705, %v2118
    %v2123 = vld [vmem:[#allocation10] sm:$0x1]
    %v2125 = vlaneseq
    %v2126 = vshrl.u32 %v2125, 7
    %v2127 = vsub.s32 0, %v2126
    %v2128 = vrot.slane %v2123, %v2127
    %v2130 = vadd.f32 %v2121, %v2128
    %v2131 = vadd.f32 %v2122, %v2128
    %v2132 = vadd.f32 %v321, %v2130
    %v2133 = vadd.f32 %v326, %v2131
    %v2134 = vld [vmem:[%s9] sm:$0x1]
    %v2135 = vld [vmem:[%s10] sm:$0x1]
    %v2136 = vsel %vm375, %v2132, 0.0
    %2137 = vadd.xlane.f32.xlu0 %v2136
    %v2138 = vpop.xlane.xlu0 %2137
    %v2139 = vsel %vm375, %v2133, 0.0
    %2140 = vadd.xlane.f32.xlu0 %v2139
    %v2141 = vpop.xlane.xlu0 %2140
    %v2142 = vrcp.pop 32.0
    %v2143 = vmul.f32 %v2138, %v2142
    %v2144 = vmul.f32 %v2141, %v2142
    %v2145 = vsub.f32 %v2132, %v2143
    %v2146 = vsub.f32 %v2133, %v2144
    %v2147 = vmul.f32 %v2145, %v2145
    %v2148 = vmul.f32 %v2146, %v2146
    %v2149 = vsel %vm375, %v2147, 0.0
    %2150 = vadd.xlane.f32.xlu0 %v2149
    %v2151 = vpop.xlane.xlu0 %2150
    %v2152 = vsel %vm375, %v2148, 0.0
    %2153 = vadd.xlane.f32.xlu0 %v2152
    %v2154 = vpop.xlane.xlu0 %2153
    %v2155 = vmul.f32 %v2151, %v2142
    %v2156 = vmul.f32 %v2154, %v2142
    %v2157 = vadd.f32 %v2155, 1e-05
    %v2158 = vadd.f32 %v2156, 1e-05
    %v2159 = vrsqrt.pop %v2157
    %v2160 = vrsqrt.pop %v2158
    %v2161 = vmul.f32 %v2145, %v2159
    %v2162 = vmul.f32 %v2146, %v2160
    %v2164 = vlaneseq
    %v2165 = vshrl.u32 %v2164, 7
    %v2166 = vsub.s32 0, %v2165
    %v2167 = vrot.slane %v2134, %v2166
    %v2169 = vmul.f32 %v2161, %v2167
    %v2170 = vmul.f32 %v2162, %v2167
    %v2172 = vlaneseq
    %v2173 = vshrl.u32 %v2172, 7
    %v2174 = vsub.s32 0, %v2173
    %v2175 = vrot.slane %v2135, %v2174
    %v2177 = vadd.f32 %v2169, %v2175
    %v2178 = vadd.f32 %v2170, %v2175
    %v2179 = vld [vmem:[%s11] sm:$0x3]
    %v2180 = vld [vmem:[%s12] sm:$0x1]
    %v2181 = vld [vmem:[%s13] sm:$0x3]
    %v2182 = vlaneseq
    %v2183 = vshrl.u32 %v2182, 7
    %v2184 = vsub.s32 0, %v2183
    %v2185 = vrot.slane %v2179, %v2184
    %v2186 = vmul.f32 %v2177, %v2185
    %v2187 = vmul.f32 %v2178, %v2185
    %v2188 = vsel %vm375, %v2186, 0.0
    %2189 = vadd.xlane.f32.xlu0 %v2188
    %v2190 = vpop.xlane.xlu0 %2189
    %v2191 = vsel %vm375, %v2187, 0.0
    %2192 = vadd.xlane.f32.xlu0 %v2191
    %v2193 = vpop.xlane.xlu0 %2192
    %v2195 = vlaneseq
    %v2196 = vshrl.u32 %v2195, 7
    %v2197 = vsub.s32 0, %v2196
    %v2198 = vrot.slane %v2180, %v2197
    %v2200 = vadd.f32 %v2190, %v2198
    %v2201 = vadd.f32 %v2193, %v2198
    %v2202 = vmul.f32 %v2200, 0.5
    %v2203 = vmul.f32 %v2201, 0.5
    %v2204 = vmul.f32 %v2200, 0.70710677
    %v2205 = vmul.f32 %v2201, 0.70710677
    %vm2206 = vcmp.ge.f32.partialorder %v2204, 0.0
    %vm2207 = vcmp.ge.f32.partialorder %v2205, 0.0
    %v2208 = vsel %vm2206, 1.0, -1.0
    %v2209 = vsel %vm2207, 1.0, -1.0
    %v2210 = vand.u32 2147483647, %v2204
    %v2211 = vand.u32 2147483647, %v2205
    %v2212 = vmul.f32 %v2210, 0.3275911
    %v2213 = vmul.f32 %v2211, 0.3275911
    %v2214 = vadd.f32 %v2212, 1.0
    %v2215 = vadd.f32 %v2213, 1.0
    %v2216 = vrcp.pop %v2214
    %v2217 = vmul.f32 1.0, %v2216
    %v2218 = vrcp.pop %v2215
    %v2219 = vmul.f32 1.0, %v2218
    %v2220 = vmul.f32 %v2217, 1.0614054
    %v2221 = vmul.f32 %v2219, 1.0614054
    %v2222 = vadd.f32 %v2220, -1.4531521
    %v2223 = vadd.f32 %v2221, -1.4531521
    %v2224 = vmul.f32 %v2222, %v2217
    %v2225 = vmul.f32 %v2223, %v2219
    %v2226 = vadd.f32 %v2224, 1.4214138
    %v2227 = vadd.f32 %v2225, 1.4214138
    %v2228 = vmul.f32 %v2226, %v2217
    %v2229 = vmul.f32 %v2227, %v2219
    %v2230 = vadd.f32 %v2228, -0.28449672
    %v2231 = vadd.f32 %v2229, -0.28449672
    %v2232 = vmul.f32 %v2230, %v2217
    %v2233 = vmul.f32 %v2231, %v2219
    %v2234 = vadd.f32 %v2232, 0.2548296
    %v2235 = vadd.f32 %v2233, 0.2548296
    %v2236 = vmul.f32 %v2234, %v2217
    %v2237 = vmul.f32 %v2235, %v2219
    %v2238 = vsub.f32 0.0, %v2210
    %v2239 = vsub.f32 0.0, %v2211
    %v2240 = vmul.f32 %v2238, %v2210
    %v2241 = vmul.f32 %v2239, %v2211
    %v2242 = vmul.f32 %v2240, 1.442695
    %v2243 = vpow.pop %v2242
    %v2244 = vmul.f32 %v2241, 1.442695
    %v2245 = vpow.pop %v2244
    %v2246 = vmul.f32 %v2236, %v2243
    %v2247 = vmul.f32 %v2237, %v2245
    %v2248 = vsub.f32 1.0, %v2246
    %v2249 = vsub.f32 1.0, %v2247
    %v2250 = vmul.f32 %v2208, %v2248
    %v2251 = vmul.f32 %v2209, %v2249
    %v2252 = vadd.f32 %v2250, 1.0
    %v2253 = vadd.f32 %v2251, 1.0
    %v2254 = vmul.f32 %v2202, %v2252
    %v2255 = vmul.f32 %v2203, %v2253
    %2257 = vset.pattern.permute.xlu0 0
    %2258 = vperm.xlu0 %2257, %v2254
    %v2259 = vpop.permute.xlu0 %2258
    %2262 = vset.pattern.permute.xlu0 0
    %2263 = vperm.xlu0 %2262, %v2255
    %v2264 = vpop.permute.xlu0 %2263
    %v2266 = vlaneseq
    %v2267 = vshrl.u32 %v2266, 7
    %v2268 = vsub.s32 0, %v2267
    %v2269 = vrot.slane %v2181, %v2268
    %v2270 = vmul.f32 %v2259, %v2269
    %v2271 = vmul.f32 %v2264, %v2269
    %v2272 = vlaneseq
    %v2273 = vshrl.u32 %v2272, 7
    %v2274 = vsub.s32 1, %v2273
    %v2275 = vrot.slane %v2179, %v2274
    %v2276 = vmul.f32 %v2177, %v2275
    %v2277 = vmul.f32 %v2178, %v2275
    %v2278 = vsel %vm375, %v2276, 0.0
    %2279 = vadd.xlane.f32.xlu0 %v2278
    %v2280 = vpop.xlane.xlu0 %2279
    %v2281 = vsel %vm375, %v2277, 0.0
    %2282 = vadd.xlane.f32.xlu0 %v2281
    %v2283 = vpop.xlane.xlu0 %2282
    %v2284 = vadd.f32 %v2280, %v2198
    %v2285 = vadd.f32 %v2283, %v2198
    %v2286 = vmul.f32 %v2284, 0.5
    %v2287 = vmul.f32 %v2285, 0.5
    %v2288 = vmul.f32 %v2284, 0.70710677
    %v2289 = vmul.f32 %v2285, 0.70710677
    %vm2290 = vcmp.ge.f32.partialorder %v2288, 0.0
    %vm2291 = vcmp.ge.f32.partialorder %v2289, 0.0
    %v2292 = vsel %vm2290, 1.0, -1.0
    %v2293 = vsel %vm2291, 1.0, -1.0
    %v2294 = vand.u32 2147483647, %v2288
    %v2295 = vand.u32 2147483647, %v2289
    %v2296 = vmul.f32 %v2294, 0.3275911
    %v2297 = vmul.f32 %v2295, 0.3275911
    %v2298 = vadd.f32 %v2296, 1.0
    %v2299 = vadd.f32 %v2297, 1.0
    %v2300 = vrcp.pop %v2298
    %v2301 = vmul.f32 1.0, %v2300
    %v2302 = vrcp.pop %v2299
    %v2303 = vmul.f32 1.0, %v2302
    %v2304 = vmul.f32 %v2301, 1.0614054
    %v2305 = vmul.f32 %v2303, 1.0614054
    %v2306 = vadd.f32 %v2304, -1.4531521
    %v2307 = vadd.f32 %v2305, -1.4531521
    %v2308 = vmul.f32 %v2306, %v2301
    %v2309 = vmul.f32 %v2307, %v2303
    %v2310 = vadd.f32 %v2308, 1.4214138
    %v2311 = vadd.f32 %v2309, 1.4214138
    %v2312 = vmul.f32 %v2310, %v2301
    %v2313 = vmul.f32 %v2311, %v2303
    %v2314 = vadd.f32 %v2312, -0.28449672
    %v2315 = vadd.f32 %v2313, -0.28449672
    %v2316 = vmul.f32 %v2314, %v2301
    %v2317 = vmul.f32 %v2315, %v2303
    %v2318 = vadd.f32 %v2316, 0.2548296
    %v2319 = vadd.f32 %v2317, 0.2548296
    %v2320 = vmul.f32 %v2318, %v2301
    %v2321 = vmul.f32 %v2319, %v2303
    %v2322 = vsub.f32 0.0, %v2294
    %v2323 = vsub.f32 0.0, %v2295
    %v2324 = vmul.f32 %v2322, %v2294
    %v2325 = vmul.f32 %v2323, %v2295
    %v2326 = vmul.f32 %v2324, 1.442695
    %v2327 = vpow.pop %v2326
    %v2328 = vmul.f32 %v2325, 1.442695
    %v2329 = vpow.pop %v2328
    %v2330 = vmul.f32 %v2320, %v2327
    %v2331 = vmul.f32 %v2321, %v2329
    %v2332 = vsub.f32 1.0, %v2330
    %v2333 = vsub.f32 1.0, %v2331
    %v2334 = vmul.f32 %v2292, %v2332
    %v2335 = vmul.f32 %v2293, %v2333
    %v2336 = vadd.f32 %v2334, 1.0
    %v2337 = vadd.f32 %v2335, 1.0
    %v2338 = vmul.f32 %v2286, %v2336
    %v2339 = vmul.f32 %v2287, %v2337
    %2341 = vset.pattern.permute.xlu0 1
    %2342 = vperm.xlu0 %2341, %v2338
    %v2343 = vpop.permute.xlu0 %2342
    %2346 = vset.pattern.permute.xlu0 1
    %2347 = vperm.xlu0 %2346, %v2339
    %v2348 = vpop.permute.xlu0 %2347
    %v2350 = vlaneseq
    %v2351 = vshrl.u32 %v2350, 7
    %v2352 = vsub.s32 1, %v2351
    %v2353 = vrot.slane %v2181, %v2352
    %v2354 = vmul.f32 %v2343, %v2353
    %v2355 = vmul.f32 %v2348, %v2353
    %v2356 = vadd.f32 %v2270, %v2354
    %v2357 = vadd.f32 %v2271, %v2355
    %v2358 = vld [vmem:[%s14] sm:$0x1]
    %v2360 = vlaneseq
    %v2361 = vshrl.u32 %v2360, 7
    %v2362 = vsub.s32 0, %v2361
    %v2363 = vrot.slane %v2358, %v2362
    %v2365 = vadd.f32 %v2356, %v2363
    %v2366 = vadd.f32 %v2357, %v2363
    %v2367 = vadd.f32 %v2177, %v2365
    %v2368 = vadd.f32 %v2178, %v2366
    %v2369 = vld [vmem:[%s15] sm:$0x1]
    %v2370 = vld [vmem:[%s16] sm:$0x1]
    %v2371 = vsel %vm375, %v2367, 0.0
    %2372 = vadd.xlane.f32.xlu0 %v2371
    %v2373 = vpop.xlane.xlu0 %2372
    %v2374 = vsel %vm375, %v2368, 0.0
    %2375 = vadd.xlane.f32.xlu0 %v2374
    %v2376 = vpop.xlane.xlu0 %2375
    %v2377 = vmul.f32 %v2373, %v2142
    %v2378 = vmul.f32 %v2376, %v2142
    %v2379 = vsub.f32 %v2367, %v2377
    %v2380 = vsub.f32 %v2368, %v2378
    %v2381 = vmul.f32 %v2379, %v2379
    %v2382 = vmul.f32 %v2380, %v2380
    %v2383 = vsel %vm375, %v2381, 0.0
    %2384 = vadd.xlane.f32.xlu0 %v2383
    %v2385 = vpop.xlane.xlu0 %2384
    %v2386 = vsel %vm375, %v2382, 0.0
    %2387 = vadd.xlane.f32.xlu0 %v2386
    %v2388 = vpop.xlane.xlu0 %2387
    %v2389 = vmul.f32 %v2385, %v2142
    %v2390 = vmul.f32 %v2388, %v2142
    %v2391 = vadd.f32 %v2389, 1e-05
    %v2392 = vadd.f32 %v2390, 1e-05
    %v2393 = vrsqrt.pop %v2391
    %v2394 = vrsqrt.pop %v2392
    %v2395 = vmul.f32 %v2379, %v2393
    %v2396 = vmul.f32 %v2380, %v2394
    %v2398 = vlaneseq
    %v2399 = vshrl.u32 %v2398, 7
    %v2400 = vsub.s32 0, %v2399
    %v2401 = vrot.slane %v2369, %v2400
    %v2403 = vmul.f32 %v2395, %v2401
    %v2404 = vmul.f32 %v2396, %v2401
    %v2406 = vlaneseq
    %v2407 = vshrl.u32 %v2406, 7
    %v2408 = vsub.s32 0, %v2407
    %v2409 = vrot.slane %v2370, %v2408
    %v2411 = vadd.f32 %v2403, %v2409
    %v2412 = vadd.f32 %v2404, %v2409
    %s2413 = scalar_lea.vmem %s5, 32
    %v2414 = vld [vmem:[%s2413] sm:$0xff]
    %v2415 = vld [vmem:[%s2413 + $0x8] sm:$0xff]
    %v2416 = vld [vmem:[%s2413 + $0x10] sm:$0xff]
    %v2417 = vld [vmem:[%s2413 + $0x18] sm:$0xff]
    %s2418 = scalar_lea.vmem [#allocation7], 1
    %v2419 = vld [vmem:[%s2418] sm:$0x1]
    %v2421 = vlaneseq
    %v2422 = vshrl.u32 %v2421, 7
    %v2423 = vsub.s32 0, %v2422
    %v2424 = vrot.slane %v2419, %v2423
    %v2427 = vsel %vm375, %v2411, 0
    %v2430 = vsel %vm375, %v2412, 0
    %2432 = vmatprep.subr.mxu0 0.0
    %2433 = vmatpush1.msra.mxu0 %v2414
    %2434 = vmatprep.subr.mxu0 0.0
    %2435 = vmatpush1.msra.mxu0 %v2415
    %2436 = vmatprep.subr.mxu0 0.0
    %2437 = vmatpush1.msra.mxu0 %v2416
    %2438 = vmatprep.subr.mxu0 0.0
    %2439 = vmatpush1.msra.mxu0 %v2417
    %2440 = vmatprep.subr.mxu0 0.0
    %2441 = vmatpush1.msra.mxu0 0.0
    %2442 = vmatprep.subr.mxu0 0.0
    %2443 = vmatpush1.msra.mxu0 0.0
    %2444 = vmatprep.subr.mxu0 0.0
    %2445 = vmatpush1.msra.mxu0 0.0
    %2446 = vmatprep.subr.mxu0 0.0
    %2447 = vmatpush1.msra.mxu0 0.0
    %2448 = vmatprep.subr.mxu0 0.0
    %2449 = vmatpush1.msra.mxu0 0.0
    %2450 = vmatprep.subr.mxu0 0.0
    %2451 = vmatpush1.msra.mxu0 0.0
    %2452 = vmatprep.subr.mxu0 0.0
    %2453 = vmatpush1.msra.mxu0 0.0
    %2454 = vmatprep.subr.mxu0 0.0
    %2455 = vmatpush1.msra.mxu0 0.0
    %2456 = vmatprep.subr.mxu0 0.0
    %2457 = vmatpush1.msra.mxu0 0.0
    %2458 = vmatprep.subr.mxu0 0.0
    %2459 = vmatpush1.msra.mxu0 0.0
    %2460 = vmatprep.subr.mxu0 0.0
    %2461 = vmatpush1.msra.mxu0 0.0
    %2462 = vmatprep.subr.mxu0 0.0
    %2463 = vmatpush1.msra.mxu0 0.0
    %2464 = vmatprep.subr.mxu0 0.0
    %2465 = vmatpush1.msra.mxu0 0.0
    %2466 = vmatprep.subr.mxu0 0.0
    %2467 = vmatpush1.msra.mxu0 0.0
    %2468 = vmatprep.subr.mxu0 0.0
    %2469 = vmatpush1.msra.mxu0 0.0
    %2470 = vmatprep.subr.mxu0 0.0
    %2471 = vmatpush1.msra.mxu0 0.0
    %2472 = vmatprep.subr.mxu0 0.0
    %2473 = vmatpush1.msra.mxu0 0.0
    %2474 = vmatprep.subr.mxu0 0.0
    %2475 = vmatpush1.msra.mxu0 0.0
    %2476 = vmatprep.subr.mxu0 0.0
    %2477 = vmatpush1.msra.mxu0 0.0
    %2478 = vmatprep.subr.mxu0 0.0
    %2479 = vmatpush1.msra.mxu0 0.0
    %2480 = vmatprep.subr.mxu0 0.0
    %2481 = vmatpush1.msra.mxu0 0.0
    %2482 = vmatprep.subr.mxu0 0.0
    %2483 = vmatpush1.msra.mxu0 0.0
    %2484 = vmatprep.subr.mxu0 0.0
    %2485 = vmatpush1.msra.mxu0 0.0
    %2486 = vmatprep.subr.mxu0 0.0
    %2487 = vmatpush1.msra.mxu0 0.0
    %2488 = vmatprep.subr.mxu0 0.0
    %2489 = vmatpush1.msra.mxu0 0.0
    %2490 = vmatprep.subr.mxu0 0.0
    %2491 = vmatpush1.msra.mxu0 0.0
    %2492 = vmatprep.subr.mxu0 0.0
    %2493 = vmatpush1.msra.mxu0 0.0
    %2494 = vmatprep.subr.mxu0 0.0
    %2495 = vmatpush1.msra.mxu0 0.0
    %2496 = vmatprep.mubr.f32.mxu0 0.0
    %2497 = vmatmul.mubr.f32.gmra.mrb[0].mxu0 %v2427
    %v2498 = vpop.f32.mrb[0].mxu0
    %v2499 = vadd.f32 %v2424, %v2498
    %v2500 = vpop.f32.mrb[0].mxu0
    %2501 = vmatprep.mubr.f32.mxu0 0.0
    %2502 = vmatmul.mubr.f32.gmra.mrb[0].mxu0 %v2430
    %v2503 = vpop.f32.mrb[0].mxu0
    %v2504 = vadd.f32 %v2424, %v2503
    %v2505 = vpop.f32.mrb[0].mxu0
    %2506 = vdwg.mxu0
    %s2507 = scalar_lea.vmem [#allocation8], 32
    %v2508 = vld [vmem:[%s2507] sm:$0xff]
    %v2509 = vld [vmem:[%s2507 + $0x8] sm:$0xff]
    %v2510 = vld [vmem:[%s2507 + $0x10] sm:$0xff]
    %v2511 = vld [vmem:[%s2507 + $0x18] sm:$0xff]
    %2513 = vrot.lane.b32.xlu0 %v2499, 96
    %v2514 = vpop.permute.xlu0 %2513
    %v2515 = vsel %vm161, %v2499, 0
    %v2517 = vsel %vm161, %v2514, 0
    %2519 = vmatprep.subr.mxu0 0.0
    %2520 = vmatpush1.xpose.msra.mxu0 %v2517
    %2521 = vmatprep.subr.mxu0 0.0
    %2522 = vmatpush1.xpose.msra.mxu0 0.0
    %2523 = vmatprep.subr.mxu0 0.0
    %2524 = vmatpush1.xpose.msra.mxu0 0.0
    %2525 = vmatprep.subr.mxu0 0.0
    %2526 = vmatpush1.xpose.msra.mxu0 0.0
    %2527 = vmatprep.subr.mxu0 0.0
    %2528 = vmatpush1.xpose.msra.mxu0 0.0
    %2529 = vmatprep.subr.mxu0 0.0
    %2530 = vmatpush1.xpose.msra.mxu0 0.0
    %2531 = vmatprep.subr.mxu0 0.0
    %2532 = vmatpush1.xpose.msra.mxu0 0.0
    %2533 = vmatprep.subr.mxu0 0.0
    %2534 = vmatpush1.xpose.msra.mxu0 0.0
    %2535 = vmatprep.subr.mxu0 0.0
    %2536 = vmatpush1.xpose.msra.mxu0 0.0
    %2537 = vmatprep.subr.mxu0 0.0
    %2538 = vmatpush1.xpose.msra.mxu0 0.0
    %2539 = vmatprep.subr.mxu0 0.0
    %2540 = vmatpush1.xpose.msra.mxu0 0.0
    %2541 = vmatprep.subr.mxu0 0.0
    %2542 = vmatpush1.xpose.msra.mxu0 0.0
    %2543 = vmatprep.subr.mxu0 0.0
    %2544 = vmatpush1.xpose.msra.mxu0 0.0
    %2545 = vmatprep.subr.mxu0 0.0
    %2546 = vmatpush1.xpose.msra.mxu0 0.0
    %2547 = vmatprep.subr.mxu0 0.0
    %2548 = vmatpush1.xpose.msra.mxu0 0.0
    %2549 = vmatprep.subr.mxu0 0.0
    %2550 = vmatpush1.xpose.msra.mxu0 0.0
    %2551 = vmatprep.subr.mxu0 0.0
    %2552 = vmatpush1.xpose.msra.mxu0 0.0
    %2553 = vmatprep.subr.mxu0 0.0
    %2554 = vmatpush1.xpose.msra.mxu0 0.0
    %2555 = vmatprep.subr.mxu0 0.0
    %2556 = vmatpush1.xpose.msra.mxu0 0.0
    %2557 = vmatprep.subr.mxu0 0.0
    %2558 = vmatpush1.xpose.msra.mxu0 0.0
    %2559 = vmatprep.subr.mxu0 0.0
    %2560 = vmatpush1.xpose.msra.mxu0 0.0
    %2561 = vmatprep.subr.mxu0 0.0
    %2562 = vmatpush1.xpose.msra.mxu0 0.0
    %2563 = vmatprep.subr.mxu0 0.0
    %2564 = vmatpush1.xpose.msra.mxu0 0.0
    %2565 = vmatprep.subr.mxu0 0.0
    %2566 = vmatpush1.xpose.msra.mxu0 0.0
    %2567 = vmatprep.subr.mxu0 0.0
    %2568 = vmatpush1.xpose.msra.mxu0 0.0
    %2569 = vmatprep.subr.mxu0 0.0
    %2570 = vmatpush1.xpose.msra.mxu0 0.0
    %2571 = vmatprep.subr.mxu0 0.0
    %2572 = vmatpush1.xpose.msra.mxu0 0.0
    %2573 = vmatprep.subr.mxu0 0.0
    %2574 = vmatpush1.xpose.msra.mxu0 0.0
    %2575 = vmatprep.subr.mxu0 0.0
    %2576 = vmatpush1.xpose.msra.mxu0 0.0
    %2577 = vmatprep.subr.mxu0 0.0
    %2578 = vmatpush1.xpose.msra.mxu0 0.0
    %2579 = vmatprep.subr.mxu0 0.0
    %2580 = vmatpush1.xpose.msra.mxu0 0.0
    %2581 = vmatprep.subr.mxu0 0.0
    %2582 = vmatpush1.xpose.msra.mxu0 0.0
    %2583 = vmatprep.mubr.f32.mxu0 0.0
    %2584 = vmatmul.mubr.f32.gmra.mrb[0].mxu0 %v2515
    %v2585 = vpop.f32.mrb[0].mxu0
    %v2586 = vadd.f32 0.0, %v2585
    %v2587 = vpop.f32.mrb[0].mxu0
    %2588 = vdwg.mxu0
    %2590 = vrot.lane.b32.xlu0 %v2504, 96
    %v2591 = vpop.permute.xlu0 %2590
    %v2592 = vsel %vm161, %v2504, 0
    %v2594 = vsel %vm161, %v2591, 0
    %2596 = vmatprep.subr.mxu0 0.0
    %2597 = vmatpush1.xpose.msra.mxu0 %v2594
    %2598 = vmatprep.subr.mxu0 0.0
    %2599 = vmatpush1.xpose.msra.mxu0 0.0
    %2600 = vmatprep.subr.mxu0 0.0
    %2601 = vmatpush1.xpose.msra.mxu0 0.0
    %2602 = vmatprep.subr.mxu0 0.0
    %2603 = vmatpush1.xpose.msra.mxu0 0.0
    %2604 = vmatprep.subr.mxu0 0.0
    %2605 = vmatpush1.xpose.msra.mxu0 0.0
    %2606 = vmatprep.subr.mxu0 0.0
    %2607 = vmatpush1.xpose.msra.mxu0 0.0
    %2608 = vmatprep.subr.mxu0 0.0
    %2609 = vmatpush1.xpose.msra.mxu0 0.0
    %2610 = vmatprep.subr.mxu0 0.0
    %2611 = vmatpush1.xpose.msra.mxu0 0.0
    %2612 = vmatprep.subr.mxu0 0.0
    %2613 = vmatpush1.xpose.msra.mxu0 0.0
    %2614 = vmatprep.subr.mxu0 0.0
    %2615 = vmatpush1.xpose.msra.mxu0 0.0
    %2616 = vmatprep.subr.mxu0 0.0
    %2617 = vmatpush1.xpose.msra.mxu0 0.0
    %2618 = vmatprep.subr.mxu0 0.0
    %2619 = vmatpush1.xpose.msra.mxu0 0.0
    %2620 = vmatprep.subr.mxu0 0.0
    %2621 = vmatpush1.xpose.msra.mxu0 0.0
    %2622 = vmatprep.subr.mxu0 0.0
    %2623 = vmatpush1.xpose.msra.mxu0 0.0
    %2624 = vmatprep.subr.mxu0 0.0
    %2625 = vmatpush1.xpose.msra.mxu0 0.0
    %2626 = vmatprep.subr.mxu0 0.0
    %2627 = vmatpush1.xpose.msra.mxu0 0.0
    %2628 = vmatprep.subr.mxu0 0.0
    %2629 = vmatpush1.xpose.msra.mxu0 0.0
    %2630 = vmatprep.subr.mxu0 0.0
    %2631 = vmatpush1.xpose.msra.mxu0 0.0
    %2632 = vmatprep.subr.mxu0 0.0
    %2633 = vmatpush1.xpose.msra.mxu0 0.0
    %2634 = vmatprep.subr.mxu0 0.0
    %2635 = vmatpush1.xpose.msra.mxu0 0.0
    %2636 = vmatprep.subr.mxu0 0.0
    %2637 = vmatpush1.xpose.msra.mxu0 0.0
    %2638 = vmatprep.subr.mxu0 0.0
    %2639 = vmatpush1.xpose.msra.mxu0 0.0
    %2640 = vmatprep.subr.mxu0 0.0
    %2641 = vmatpush1.xpose.msra.mxu0 0.0
    %2642 = vmatprep.subr.mxu0 0.0
    %2643 = vmatpush1.xpose.msra.mxu0 0.0
    %2644 = vmatprep.subr.mxu0 0.0
    %2645 = vmatpush1.xpose.msra.mxu0 0.0
    %2646 = vmatprep.subr.mxu0 0.0
    %2647 = vmatpush1.xpose.msra.mxu0 0.0
    %2648 = vmatprep.subr.mxu0 0.0
    %2649 = vmatpush1.xpose.msra.mxu0 0.0
    %2650 = vmatprep.subr.mxu0 0.0
    %2651 = vmatpush1.xpose.msra.mxu0 0.0
    %2652 = vmatprep.subr.mxu0 0.0
    %2653 = vmatpush1.xpose.msra.mxu0 0.0
    %2654 = vmatprep.subr.mxu0 0.0
    %2655 = vmatpush1.xpose.msra.mxu0 0.0
    %2656 = vmatprep.subr.mxu0 0.0
    %2657 = vmatpush1.xpose.msra.mxu0 0.0
    %2658 = vmatprep.subr.mxu0 0.0
    %2659 = vmatpush1.xpose.msra.mxu0 0.0
    %2660 = vmatprep.mubr.f32.mxu0 0.0
    %2661 = vmatmul.mubr.f32.gmra.mrb[0].mxu0 %v2592
    %v2662 = vpop.f32.mrb[0].mxu0
    %v2663 = vadd.f32 0.0, %v2662
    %v2664 = vpop.f32.mrb[0].mxu0
    %2665 = vdwg.mxu0
    %v2666 = vmul.f32 %v2586, 0.35355338
    %v2667 = vmul.f32 %v2663, 0.35355338
    %v2668 = vadd.f32 %v2666, %v357
    %v2669 = vadd.f32 %v2667, %v361
    %v2670 = vsel %vm161, %v2668, -inf
    %2671 = vmax.xlane.f32.xlu0 %v2670
    %v2672 = vpop.xlane.xlu0 %2671
    %v2673 = vsel %vm161, %v2669, -inf
    %2674 = vmax.xlane.f32.xlu0 %v2673
    %v2675 = vpop.xlane.xlu0 %2674
    %v2676 = vsub.f32 %v2668, %v2672
    %v2677 = vsub.f32 %v2669, %v2675
    %v2678 = vmul.f32 %v2676, 1.442695
    %v2679 = vpow.pop %v2678
    %v2680 = vmul.f32 %v2677, 1.442695
    %v2681 = vpow.pop %v2680
    %v2682 = vsel %vm161, %v2679, 0.0
    %2683 = vadd.xlane.f32.xlu0 %v2682
    %v2684 = vpop.xlane.xlu0 %2683
    %v2685 = vsel %vm161, %v2681, 0.0
    %2686 = vadd.xlane.f32.xlu0 %v2685
    %v2687 = vpop.xlane.xlu0 %2686
    %v2688 = vrcp.pop %v2684
    %v2689 = vrcp.pop %v2687
    %v2690 = vmul.f32 %v2679, %v2688
    %v2691 = vmul.f32 %v2681, %v2689
    %2692 = vrot.lane.b32.xlu0 %v2499, 64
    %v2693 = vpop.permute.xlu0 %2692
    %v2696 = vsel %vm161, %v2690, 0
    %2698 = vmatprep.subr.mxu0 0.0
    %2699 = vmatpush1.msra.mxu0 %v2693
    %2700 = vmatprep.subr.mxu0 0.0
    %2701 = vmatpush1.msra.mxu0 0.0
    %2702 = vmatprep.subr.mxu0 0.0
    %2703 = vmatpush1.msra.mxu0 0.0
    %2704 = vmatprep.subr.mxu0 0.0
    %2705 = vmatpush1.msra.mxu0 0.0
    %2706 = vmatprep.subr.mxu0 0.0
    %2707 = vmatpush1.msra.mxu0 0.0
    %2708 = vmatprep.subr.mxu0 0.0
    %2709 = vmatpush1.msra.mxu0 0.0
    %2710 = vmatprep.subr.mxu0 0.0
    %2711 = vmatpush1.msra.mxu0 0.0
    %2712 = vmatprep.subr.mxu0 0.0
    %2713 = vmatpush1.msra.mxu0 0.0
    %2714 = vmatprep.subr.mxu0 0.0
    %2715 = vmatpush1.msra.mxu0 0.0
    %2716 = vmatprep.subr.mxu0 0.0
    %2717 = vmatpush1.msra.mxu0 0.0
    %2718 = vmatprep.subr.mxu0 0.0
    %2719 = vmatpush1.msra.mxu0 0.0
    %2720 = vmatprep.subr.mxu0 0.0
    %2721 = vmatpush1.msra.mxu0 0.0
    %2722 = vmatprep.subr.mxu0 0.0
    %2723 = vmatpush1.msra.mxu0 0.0
    %2724 = vmatprep.subr.mxu0 0.0
    %2725 = vmatpush1.msra.mxu0 0.0
    %2726 = vmatprep.subr.mxu0 0.0
    %2727 = vmatpush1.msra.mxu0 0.0
    %2728 = vmatprep.subr.mxu0 0.0
    %2729 = vmatpush1.msra.mxu0 0.0
    %2730 = vmatprep.subr.mxu0 0.0
    %2731 = vmatpush1.msra.mxu0 0.0
    %2732 = vmatprep.subr.mxu0 0.0
    %2733 = vmatpush1.msra.mxu0 0.0
    %2734 = vmatprep.subr.mxu0 0.0
    %2735 = vmatpush1.msra.mxu0 0.0
    %2736 = vmatprep.subr.mxu0 0.0
    %2737 = vmatpush1.msra.mxu0 0.0
    %2738 = vmatprep.subr.mxu0 0.0
    %2739 = vmatpush1.msra.mxu0 0.0
    %2740 = vmatprep.subr.mxu0 0.0
    %2741 = vmatpush1.msra.mxu0 0.0
    %2742 = vmatprep.subr.mxu0 0.0
    %2743 = vmatpush1.msra.mxu0 0.0
    %2744 = vmatprep.subr.mxu0 0.0
    %2745 = vmatpush1.msra.mxu0 0.0
    %2746 = vmatprep.subr.mxu0 0.0
    %2747 = vmatpush1.msra.mxu0 0.0
    %2748 = vmatprep.subr.mxu0 0.0
    %2749 = vmatpush1.msra.mxu0 0.0
    %2750 = vmatprep.subr.mxu0 0.0
    %2751 = vmatpush1.msra.mxu0 0.0
    %2752 = vmatprep.subr.mxu0 0.0
    %2753 = vmatpush1.msra.mxu0 0.0
    %2754 = vmatprep.subr.mxu0 0.0
    %2755 = vmatpush1.msra.mxu0 0.0
    %2756 = vmatprep.subr.mxu0 0.0
    %2757 = vmatpush1.msra.mxu0 0.0
    %2758 = vmatprep.subr.mxu0 0.0
    %2759 = vmatpush1.msra.mxu0 0.0
    %2760 = vmatprep.subr.mxu0 0.0
    %2761 = vmatpush1.msra.mxu0 0.0
    %2762 = vmatprep.mubr.f32.mxu0 0.0
    %2763 = vmatmul.mubr.f32.gmra.mrb[0].mxu0 %v2696
    %v2764 = vpop.f32.mrb[0].mxu0
    %v2765 = vadd.f32 0.0, %v2764
    %v2766 = vpop.f32.mrb[0].mxu0
    %2767 = vdwg.mxu0
    %2768 = vrot.lane.b32.xlu0 %v2504, 64
    %v2769 = vpop.permute.xlu0 %2768
    %v2772 = vsel %vm161, %v2691, 0
    %2774 = vmatprep.subr.mxu0 0.0
    %2775 = vmatpush1.msra.mxu0 %v2769
    %2776 = vmatprep.subr.mxu0 0.0
    %2777 = vmatpush1.msra.mxu0 0.0
    %2778 = vmatprep.subr.mxu0 0.0
    %2779 = vmatpush1.msra.mxu0 0.0
    %2780 = vmatprep.subr.mxu0 0.0
    %2781 = vmatpush1.msra.mxu0 0.0
    %2782 = vmatprep.subr.mxu0 0.0
    %2783 = vmatpush1.msra.mxu0 0.0
    %2784 = vmatprep.subr.mxu0 0.0
    %2785 = vmatpush1.msra.mxu0 0.0
    %2786 = vmatprep.subr.mxu0 0.0
    %2787 = vmatpush1.msra.mxu0 0.0
    %2788 = vmatprep.subr.mxu0 0.0
    %2789 = vmatpush1.msra.mxu0 0.0
    %2790 = vmatprep.subr.mxu0 0.0
    %2791 = vmatpush1.msra.mxu0 0.0
    %2792 = vmatprep.subr.mxu0 0.0
    %2793 = vmatpush1.msra.mxu0 0.0
    %2794 = vmatprep.subr.mxu0 0.0
    %2795 = vmatpush1.msra.mxu0 0.0
    %2796 = vmatprep.subr.mxu0 0.0
    %2797 = vmatpush1.msra.mxu0 0.0
    %2798 = vmatprep.subr.mxu0 0.0
    %2799 = vmatpush1.msra.mxu0 0.0
    %2800 = vmatprep.subr.mxu0 0.0
    %2801 = vmatpush1.msra.mxu0 0.0
    %2802 = vmatprep.subr.mxu0 0.0
    %2803 = vmatpush1.msra.mxu0 0.0
    %2804 = vmatprep.subr.mxu0 0.0
    %2805 = vmatpush1.msra.mxu0 0.0
    %2806 = vmatprep.subr.mxu0 0.0
    %2807 = vmatpush1.msra.mxu0 0.0
    %2808 = vmatprep.subr.mxu0 0.0
    %2809 = vmatpush1.msra.mxu0 0.0
    %2810 = vmatprep.subr.mxu0 0.0
    %2811 = vmatpush1.msra.mxu0 0.0
    %2812 = vmatprep.subr.mxu0 0.0
    %2813 = vmatpush1.msra.mxu0 0.0
    %2814 = vmatprep.subr.mxu0 0.0
    %2815 = vmatpush1.msra.mxu0 0.0
    %2816 = vmatprep.subr.mxu0 0.0
    %2817 = vmatpush1.msra.mxu0 0.0
    %2818 = vmatprep.subr.mxu0 0.0
    %2819 = vmatpush1.msra.mxu0 0.0
    %2820 = vmatprep.subr.mxu0 0.0
    %2821 = vmatpush1.msra.mxu0 0.0
    %2822 = vmatprep.subr.mxu0 0.0
    %2823 = vmatpush1.msra.mxu0 0.0
    %2824 = vmatprep.subr.mxu0 0.0
    %2825 = vmatpush1.msra.mxu0 0.0
    %2826 = vmatprep.subr.mxu0 0.0
    %2827 = vmatpush1.msra.mxu0 0.0
    %2828 = vmatprep.subr.mxu0 0.0
    %2829 = vmatpush1.msra.mxu0 0.0
    %2830 = vmatprep.subr.mxu0 0.0
    %2831 = vmatpush1.msra.mxu0 0.0
    %2832 = vmatprep.subr.mxu0 0.0
    %2833 = vmatpush1.msra.mxu0 0.0
    %2834 = vmatprep.subr.mxu0 0.0
    %2835 = vmatpush1.msra.mxu0 0.0
    %2836 = vmatprep.subr.mxu0 0.0
    %2837 = vmatpush1.msra.mxu0 0.0
    %2838 = vmatprep.mubr.f32.mxu0 0.0
    %2839 = vmatmul.mubr.f32.gmra.mrb[0].mxu0 %v2772
    %v2840 = vpop.f32.mrb[0].mxu0
    %v2841 = vadd.f32 0.0, %v2840
    %v2842 = vpop.f32.mrb[0].mxu0
    %2843 = vdwg.mxu0
    %2844 = vrot.lane.b32.xlu0 %v2499, 120
    %v2845 = vpop.permute.xlu0 %2844
    %2846 = vrot.lane.b32.xlu0 %v2499, 88
    %v2847 = vpop.permute.xlu0 %2846
    %v2848 = vsel %vm161, %v2845, 0
    %v2850 = vsel %vm161, %v2847, 0
    %2852 = vmatprep.subr.mxu0 0.0
    %2853 = vmatpush1.xpose.msra.mxu0 %v2850
    %2854 = vmatprep.subr.mxu0 0.0
    %2855 = vmatpush1.xpose.msra.mxu0 0.0
    %2856 = vmatprep.subr.mxu0 0.0
    %2857 = vmatpush1.xpose.msra.mxu0 0.0
    %2858 = vmatprep.subr.mxu0 0.0
    %2859 = vmatpush1.xpose.msra.mxu0 0.0
    %2860 = vmatprep.subr.mxu0 0.0
    %2861 = vmatpush1.xpose.msra.mxu0 0.0
    %2862 = vmatprep.subr.mxu0 0.0
    %2863 = vmatpush1.xpose.msra.mxu0 0.0
    %2864 = vmatprep.subr.mxu0 0.0
    %2865 = vmatpush1.xpose.msra.mxu0 0.0
    %2866 = vmatprep.subr.mxu0 0.0
    %2867 = vmatpush1.xpose.msra.mxu0 0.0
    %2868 = vmatprep.subr.mxu0 0.0
    %2869 = vmatpush1.xpose.msra.mxu0 0.0
    %2870 = vmatprep.subr.mxu0 0.0
    %2871 = vmatpush1.xpose.msra.mxu0 0.0
    %2872 = vmatprep.subr.mxu0 0.0
    %2873 = vmatpush1.xpose.msra.mxu0 0.0
    %2874 = vmatprep.subr.mxu0 0.0
    %2875 = vmatpush1.xpose.msra.mxu0 0.0
    %2876 = vmatprep.subr.mxu0 0.0
    %2877 = vmatpush1.xpose.msra.mxu0 0.0
    %2878 = vmatprep.subr.mxu0 0.0
    %2879 = vmatpush1.xpose.msra.mxu0 0.0
    %2880 = vmatprep.subr.mxu0 0.0
    %2881 = vmatpush1.xpose.msra.mxu0 0.0
    %2882 = vmatprep.subr.mxu0 0.0
    %2883 = vmatpush1.xpose.msra.mxu0 0.0
    %2884 = vmatprep.subr.mxu0 0.0
    %2885 = vmatpush1.xpose.msra.mxu0 0.0
    %2886 = vmatprep.subr.mxu0 0.0
    %2887 = vmatpush1.xpose.msra.mxu0 0.0
    %2888 = vmatprep.subr.mxu0 0.0
    %2889 = vmatpush1.xpose.msra.mxu0 0.0
    %2890 = vmatprep.subr.mxu0 0.0
    %2891 = vmatpush1.xpose.msra.mxu0 0.0
    %2892 = vmatprep.subr.mxu0 0.0
    %2893 = vmatpush1.xpose.msra.mxu0 0.0
    %2894 = vmatprep.subr.mxu0 0.0
    %2895 = vmatpush1.xpose.msra.mxu0 0.0
    %2896 = vmatprep.subr.mxu0 0.0
    %2897 = vmatpush1.xpose.msra.mxu0 0.0
    %2898 = vmatprep.subr.mxu0 0.0
    %2899 = vmatpush1.xpose.msra.mxu0 0.0
    %2900 = vmatprep.subr.mxu0 0.0
    %2901 = vmatpush1.xpose.msra.mxu0 0.0
    %2902 = vmatprep.subr.mxu0 0.0
    %2903 = vmatpush1.xpose.msra.mxu0 0.0
    %2904 = vmatprep.subr.mxu0 0.0
    %2905 = vmatpush1.xpose.msra.mxu0 0.0
    %2906 = vmatprep.subr.mxu0 0.0
    %2907 = vmatpush1.xpose.msra.mxu0 0.0
    %2908 = vmatprep.subr.mxu0 0.0
    %2909 = vmatpush1.xpose.msra.mxu0 0.0
    %2910 = vmatprep.subr.mxu0 0.0
    %2911 = vmatpush1.xpose.msra.mxu0 0.0
    %2912 = vmatprep.subr.mxu0 0.0
    %2913 = vmatpush1.xpose.msra.mxu0 0.0
    %2914 = vmatprep.subr.mxu0 0.0
    %2915 = vmatpush1.xpose.msra.mxu0 0.0
    %2916 = vmatprep.mubr.f32.mxu0 0.0
    %2917 = vmatmul.mubr.f32.gmra.mrb[0].mxu0 %v2848
    %v2918 = vpop.f32.mrb[0].mxu0
    %v2919 = vadd.f32 0.0, %v2918
    %v2920 = vpop.f32.mrb[0].mxu0
    %2921 = vdwg.mxu0
    %2922 = vrot.lane.b32.xlu0 %v2504, 120
    %v2923 = vpop.permute.xlu0 %2922
    %2924 = vrot.lane.b32.xlu0 %v2504, 88
    %v2925 = vpop.permute.xlu0 %2924
    %v2926 = vsel %vm161, %v2923, 0
    %v2928 = vsel %vm161, %v2925, 0
    %2930 = vmatprep.subr.mxu0 0.0
    %2931 = vmatpush1.xpose.msra.mxu0 %v2928
    %2932 = vmatprep.subr.mxu0 0.0
    %2933 = vmatpush1.xpose.msra.mxu0 0.0
    %2934 = vmatprep.subr.mxu0 0.0
    %2935 = vmatpush1.xpose.msra.mxu0 0.0
    %2936 = vmatprep.subr.mxu0 0.0
    %2937 = vmatpush1.xpose.msra.mxu0 0.0
    %2938 = vmatprep.subr.mxu0 0.0
    %2939 = vmatpush1.xpose.msra.mxu0 0.0
    %2940 = vmatprep.subr.mxu0 0.0
    %2941 = vmatpush1.xpose.msra.mxu0 0.0
    %2942 = vmatprep.subr.mxu0 0.0
    %2943 = vmatpush1.xpose.msra.mxu0 0.0
    %2944 = vmatprep.subr.mxu0 0.0
    %2945 = vmatpush1.xpose.msra.mxu0 0.0
    %2946 = vmatprep.subr.mxu0 0.0
    %2947 = vmatpush1.xpose.msra.mxu0 0.0
    %2948 = vmatprep.subr.mxu0 0.0
    %2949 = vmatpush1.xpose.msra.mxu0 0.0
    %2950 = vmatprep.subr.mxu0 0.0
    %2951 = vmatpush1.xpose.msra.mxu0 0.0
    %2952 = vmatprep.subr.mxu0 0.0
    %2953 = vmatpush1.xpose.msra.mxu0 0.0
    %2954 = vmatprep.subr.mxu0 0.0
    %2955 = vmatpush1.xpose.msra.mxu0 0.0
    %2956 = vmatprep.subr.mxu0 0.0
    %2957 = vmatpush1.xpose.msra.mxu0 0.0
    %2958 = vmatprep.subr.mxu0 0.0
    %2959 = vmatpush1.xpose.msra.mxu0 0.0
    %2960 = vmatprep.subr.mxu0 0.0
    %2961 = vmatpush1.xpose.msra.mxu0 0.0
    %2962 = vmatprep.subr.mxu0 0.0
    %2963 = vmatpush1.xpose.msra.mxu0 0.0
    %2964 = vmatprep.subr.mxu0 0.0
    %2965 = vmatpush1.xpose.msra.mxu0 0.0
    %2966 = vmatprep.subr.mxu0 0.0
    %2967 = vmatpush1.xpose.msra.mxu0 0.0
    %2968 = vmatprep.subr.mxu0 0.0
    %2969 = vmatpush1.xpose.msra.mxu0 0.0
    %2970 = vmatprep.subr.mxu0 0.0
    %2971 = vmatpush1.xpose.msra.mxu0 0.0
    %2972 = vmatprep.subr.mxu0 0.0
    %2973 = vmatpush1.xpose.msra.mxu0 0.0
    %2974 = vmatprep.subr.mxu0 0.0
    %2975 = vmatpush1.xpose.msra.mxu0 0.0
    %2976 = vmatprep.subr.mxu0 0.0
    %2977 = vmatpush1.xpose.msra.mxu0 0.0
    %2978 = vmatprep.subr.mxu0 0.0
    %2979 = vmatpush1.xpose.msra.mxu0 0.0
    %2980 = vmatprep.subr.mxu0 0.0
    %2981 = vmatpush1.xpose.msra.mxu0 0.0
    %2982 = vmatprep.subr.mxu0 0.0
    %2983 = vmatpush1.xpose.msra.mxu0 0.0
    %2984 = vmatprep.subr.mxu0 0.0
    %2985 = vmatpush1.xpose.msra.mxu0 0.0
    %2986 = vmatprep.subr.mxu0 0.0
    %2987 = vmatpush1.xpose.msra.mxu0 0.0
    %2988 = vmatprep.subr.mxu0 0.0
    %2989 = vmatpush1.xpose.msra.mxu0 0.0
    %2990 = vmatprep.subr.mxu0 0.0
    %2991 = vmatpush1.xpose.msra.mxu0 0.0
    %2992 = vmatprep.subr.mxu0 0.0
    %2993 = vmatpush1.xpose.msra.mxu0 0.0
    %2994 = vmatprep.mubr.f32.mxu0 0.0
    %2995 = vmatmul.mubr.f32.gmra.mrb[0].mxu0 %v2926
    %v2996 = vpop.f32.mrb[0].mxu0
    %v2997 = vadd.f32 0.0, %v2996
    %v2998 = vpop.f32.mrb[0].mxu0
    %2999 = vdwg.mxu0
    %v3000 = vmul.f32 %v2919, 0.35355338
    %v3001 = vmul.f32 %v2997, 0.35355338
    %v3002 = vadd.f32 %v3000, %v357
    %v3003 = vadd.f32 %v3001, %v361
    %v3004 = vsel %vm161, %v3002, -inf
    %3005 = vmax.xlane.f32.xlu0 %v3004
    %v3006 = vpop.xlane.xlu0 %3005
    %v3007 = vsel %vm161, %v3003, -inf
    %3008 = vmax.xlane.f32.xlu0 %v3007
    %v3009 = vpop.xlane.xlu0 %3008
    %v3010 = vsub.f32 %v3002, %v3006
    %v3011 = vsub.f32 %v3003, %v3009
    %v3012 = vmul.f32 %v3010, 1.442695
    %v3013 = vpow.pop %v3012
    %v3014 = vmul.f32 %v3011, 1.442695
    %v3015 = vpow.pop %v3014
    %v3016 = vsel %vm161, %v3013, 0.0
    %3017 = vadd.xlane.f32.xlu0 %v3016
    %v3018 = vpop.xlane.xlu0 %3017
    %v3019 = vsel %vm161, %v3015, 0.0
    %3020 = vadd.xlane.f32.xlu0 %v3019
    %v3021 = vpop.xlane.xlu0 %3020
    %v3022 = vrcp.pop %v3018
    %v3023 = vrcp.pop %v3021
    %v3024 = vmul.f32 %v3013, %v3022
    %v3025 = vmul.f32 %v3015, %v3023
    %3026 = vrot.lane.b32.xlu0 %v2499, 56
    %v3027 = vpop.permute.xlu0 %3026
    %v3030 = vsel %vm161, %v3024, 0
    %3032 = vmatprep.subr.mxu0 0.0
    %3033 = vmatpush1.msra.mxu0 %v3027
    %3034 = vmatprep.subr.mxu0 0.0
    %3035 = vmatpush1.msra.mxu0 0.0
    %3036 = vmatprep.subr.mxu0 0.0
    %3037 = vmatpush1.msra.mxu0 0.0
    %3038 = vmatprep.subr.mxu0 0.0
    %3039 = vmatpush1.msra.mxu0 0.0
    %3040 = vmatprep.subr.mxu0 0.0
    %3041 = vmatpush1.msra.mxu0 0.0
    %3042 = vmatprep.subr.mxu0 0.0
    %3043 = vmatpush1.msra.mxu0 0.0
    %3044 = vmatprep.subr.mxu0 0.0
    %3045 = vmatpush1.msra.mxu0 0.0
    %3046 = vmatprep.subr.mxu0 0.0
    %3047 = vmatpush1.msra.mxu0 0.0
    %3048 = vmatprep.subr.mxu0 0.0
    %3049 = vmatpush1.msra.mxu0 0.0
    %3050 = vmatprep.subr.mxu0 0.0
    %3051 = vmatpush1.msra.mxu0 0.0
    %3052 = vmatprep.subr.mxu0 0.0
    %3053 = vmatpush1.msra.mxu0 0.0
    %3054 = vmatprep.subr.mxu0 0.0
    %3055 = vmatpush1.msra.mxu0 0.0
    %3056 = vmatprep.subr.mxu0 0.0
    %3057 = vmatpush1.msra.mxu0 0.0
    %3058 = vmatprep.subr.mxu0 0.0
    %3059 = vmatpush1.msra.mxu0 0.0
    %3060 = vmatprep.subr.mxu0 0.0
    %3061 = vmatpush1.msra.mxu0 0.0
    %3062 = vmatprep.subr.mxu0 0.0
    %3063 = vmatpush1.msra.mxu0 0.0
    %3064 = vmatprep.subr.mxu0 0.0
    %3065 = vmatpush1.msra.mxu0 0.0
    %3066 = vmatprep.subr.mxu0 0.0
    %3067 = vmatpush1.msra.mxu0 0.0
    %3068 = vmatprep.subr.mxu0 0.0
    %3069 = vmatpush1.msra.mxu0 0.0
    %3070 = vmatprep.subr.mxu0 0.0
    %3071 = vmatpush1.msra.mxu0 0.0
    %3072 = vmatprep.subr.mxu0 0.0
    %3073 = vmatpush1.msra.mxu0 0.0
    %3074 = vmatprep.subr.mxu0 0.0
    %3075 = vmatpush1.msra.mxu0 0.0
    %3076 = vmatprep.subr.mxu0 0.0
    %3077 = vmatpush1.msra.mxu0 0.0
    %3078 = vmatprep.subr.mxu0 0.0
    %3079 = vmatpush1.msra.mxu0 0.0
    %3080 = vmatprep.subr.mxu0 0.0
    %3081 = vmatpush1.msra.mxu0 0.0
    %3082 = vmatprep.subr.mxu0 0.0
    %3083 = vmatpush1.msra.mxu0 0.0
    %3084 = vmatprep.subr.mxu0 0.0
    %3085 = vmatpush1.msra.mxu0 0.0
    %3086 = vmatprep.subr.mxu0 0.0
    %3087 = vmatpush1.msra.mxu0 0.0
    %3088 = vmatprep.subr.mxu0 0.0
    %3089 = vmatpush1.msra.mxu0 0.0
    %3090 = vmatprep.subr.mxu0 0.0
    %3091 = vmatpush1.msra.mxu0 0.0
    %3092 = vmatprep.subr.mxu0 0.0
    %3093 = vmatpush1.msra.mxu0 0.0
    %3094 = vmatprep.subr.mxu0 0.0
    %3095 = vmatpush1.msra.mxu0 0.0
    %3096 = vmatprep.mubr.f32.mxu0 0.0
    %3097 = vmatmul.mubr.f32.gmra.mrb[0].mxu0 %v3030
    %v3098 = vpop.f32.mrb[0].mxu0
    %v3099 = vadd.f32 0.0, %v3098
    %v3100 = vpop.f32.mrb[0].mxu0
    %3101 = vdwg.mxu0
    %3102 = vrot.lane.b32.xlu0 %v2504, 56
    %v3103 = vpop.permute.xlu0 %3102
    %v3106 = vsel %vm161, %v3025, 0
    %3108 = vmatprep.subr.mxu0 0.0
    %3109 = vmatpush1.msra.mxu0 %v3103
    %3110 = vmatprep.subr.mxu0 0.0
    %3111 = vmatpush1.msra.mxu0 0.0
    %3112 = vmatprep.subr.mxu0 0.0
    %3113 = vmatpush1.msra.mxu0 0.0
    %3114 = vmatprep.subr.mxu0 0.0
    %3115 = vmatpush1.msra.mxu0 0.0
    %3116 = vmatprep.subr.mxu0 0.0
    %3117 = vmatpush1.msra.mxu0 0.0
    %3118 = vmatprep.subr.mxu0 0.0
    %3119 = vmatpush1.msra.mxu0 0.0
    %3120 = vmatprep.subr.mxu0 0.0
    %3121 = vmatpush1.msra.mxu0 0.0
    %3122 = vmatprep.subr.mxu0 0.0
    %3123 = vmatpush1.msra.mxu0 0.0
    %3124 = vmatprep.subr.mxu0 0.0
    %3125 = vmatpush1.msra.mxu0 0.0
    %3126 = vmatprep.subr.mxu0 0.0
    %3127 = vmatpush1.msra.mxu0 0.0
    %3128 = vmatprep.subr.mxu0 0.0
    %3129 = vmatpush1.msra.mxu0 0.0
    %3130 = vmatprep.subr.mxu0 0.0
    %3131 = vmatpush1.msra.mxu0 0.0
    %3132 = vmatprep.subr.mxu0 0.0
    %3133 = vmatpush1.msra.mxu0 0.0
    %3134 = vmatprep.subr.mxu0 0.0
    %3135 = vmatpush1.msra.mxu0 0.0
    %3136 = vmatprep.subr.mxu0 0.0
    %3137 = vmatpush1.msra.mxu0 0.0
    %3138 = vmatprep.subr.mxu0 0.0
    %3139 = vmatpush1.msra.mxu0 0.0
    %3140 = vmatprep.subr.mxu0 0.0
    %3141 = vmatpush1.msra.mxu0 0.0
    %3142 = vmatprep.subr.mxu0 0.0
    %3143 = vmatpush1.msra.mxu0 0.0
    %3144 = vmatprep.subr.mxu0 0.0
    %3145 = vmatpush1.msra.mxu0 0.0
    %3146 = vmatprep.subr.mxu0 0.0
    %3147 = vmatpush1.msra.mxu0 0.0
    %3148 = vmatprep.subr.mxu0 0.0
    %3149 = vmatpush1.msra.mxu0 0.0
    %3150 = vmatprep.subr.mxu0 0.0
    %3151 = vmatpush1.msra.mxu0 0.0
    %3152 = vmatprep.subr.mxu0 0.0
    %3153 = vmatpush1.msra.mxu0 0.0
    %3154 = vmatprep.subr.mxu0 0.0
    %3155 = vmatpush1.msra.mxu0 0.0
    %3156 = vmatprep.subr.mxu0 0.0
    %3157 = vmatpush1.msra.mxu0 0.0
    %3158 = vmatprep.subr.mxu0 0.0
    %3159 = vmatpush1.msra.mxu0 0.0
    %3160 = vmatprep.subr.mxu0 0.0
    %3161 = vmatpush1.msra.mxu0 0.0
    %3162 = vmatprep.subr.mxu0 0.0
    %3163 = vmatpush1.msra.mxu0 0.0
    %3164 = vmatprep.subr.mxu0 0.0
    %3165 = vmatpush1.msra.mxu0 0.0
    %3166 = vmatprep.subr.mxu0 0.0
    %3167 = vmatpush1.msra.mxu0 0.0
    %3168 = vmatprep.subr.mxu0 0.0
    %3169 = vmatpush1.msra.mxu0 0.0
    %3170 = vmatprep.subr.mxu0 0.0
    %3171 = vmatpush1.msra.mxu0 0.0
    %3172 = vmatprep.mubr.f32.mxu0 0.0
    %3173 = vmatmul.mubr.f32.gmra.mrb[0].mxu0 %v3106
    %v3174 = vpop.f32.mrb[0].mxu0
    %v3175 = vadd.f32 0.0, %v3174
    %v3176 = vpop.f32.mrb[0].mxu0
    %3177 = vdwg.mxu0
    %v3179 = vsel %vm161, %v3099, 0
    %v3182 = vsel %vm161, %v3175, 0
    %3184 = vmatprep.subr.mxu0 0.0
    %3185 = vmatpush1.msra.mxu0 %v2509
    %3186 = vmatprep.subr.mxu0 0.0
    %3187 = vmatpush1.msra.mxu0 0.0
    %3188 = vmatprep.subr.mxu0 0.0
    %3189 = vmatpush1.msra.mxu0 0.0
    %3190 = vmatprep.subr.mxu0 0.0
    %3191 = vmatpush1.msra.mxu0 0.0
    %3192 = vmatprep.subr.mxu0 0.0
    %3193 = vmatpush1.msra.mxu0 0.0
    %3194 = vmatprep.subr.mxu0 0.0
    %3195 = vmatpush1.msra.mxu0 0.0
    %3196 = vmatprep.subr.mxu0 0.0
    %3197 = vmatpush1.msra.mxu0 0.0
    %3198 = vmatprep.subr.mxu0 0.0
    %3199 = vmatpush1.msra.mxu0 0.0
    %3200 = vmatprep.subr.mxu0 0.0
    %3201 = vmatpush1.msra.mxu0 0.0
    %3202 = vmatprep.subr.mxu0 0.0
    %3203 = vmatpush1.msra.mxu0 0.0
    %3204 = vmatprep.subr.mxu0 0.0
    %3205 = vmatpush1.msra.mxu0 0.0
    %3206 = vmatprep.subr.mxu0 0.0
    %3207 = vmatpush1.msra.mxu0 0.0
    %3208 = vmatprep.subr.mxu0 0.0
    %3209 = vmatpush1.msra.mxu0 0.0
    %3210 = vmatprep.subr.mxu0 0.0
    %3211 = vmatpush1.msra.mxu0 0.0
    %3212 = vmatprep.subr.mxu0 0.0
    %3213 = vmatpush1.msra.mxu0 0.0
    %3214 = vmatprep.subr.mxu0 0.0
    %3215 = vmatpush1.msra.mxu0 0.0
    %3216 = vmatprep.subr.mxu0 0.0
    %3217 = vmatpush1.msra.mxu0 0.0
    %3218 = vmatprep.subr.mxu0 0.0
    %3219 = vmatpush1.msra.mxu0 0.0
    %3220 = vmatprep.subr.mxu0 0.0
    %3221 = vmatpush1.msra.mxu0 0.0
    %3222 = vmatprep.subr.mxu0 0.0
    %3223 = vmatpush1.msra.mxu0 0.0
    %3224 = vmatprep.subr.mxu0 0.0
    %3225 = vmatpush1.msra.mxu0 0.0
    %3226 = vmatprep.subr.mxu0 0.0
    %3227 = vmatpush1.msra.mxu0 0.0
    %3228 = vmatprep.subr.mxu0 0.0
    %3229 = vmatpush1.msra.mxu0 0.0
    %3230 = vmatprep.subr.mxu0 0.0
    %3231 = vmatpush1.msra.mxu0 0.0
    %3232 = vmatprep.subr.mxu0 0.0
    %3233 = vmatpush1.msra.mxu0 0.0
    %3234 = vmatprep.subr.mxu0 0.0
    %3235 = vmatpush1.msra.mxu0 0.0
    %3236 = vmatprep.subr.mxu0 0.0
    %3237 = vmatpush1.msra.mxu0 0.0
    %3238 = vmatprep.subr.mxu0 0.0
    %3239 = vmatpush1.msra.mxu0 0.0
    %3240 = vmatprep.subr.mxu0 0.0
    %3241 = vmatpush1.msra.mxu0 0.0
    %3242 = vmatprep.subr.mxu0 0.0
    %3243 = vmatpush1.msra.mxu0 0.0
    %3244 = vmatprep.subr.mxu0 0.0
    %3245 = vmatpush1.msra.mxu0 0.0
    %3246 = vmatprep.subr.mxu0 0.0
    %3247 = vmatpush1.msra.mxu0 0.0
    %3248 = vmatprep.mubr.f32.mxu0 0.0
    %3249 = vmatmul.mubr.f32.gmra.mrb[0].mxu0 %v3179
    %v3250 = vpop.f32.mrb[0].mxu0
    %v3251 = vadd.f32 0.0, %v3250
    %v3252 = vpop.f32.mrb[0].mxu0
    %3253 = vmatprep.mubr.f32.mxu0 0.0
    %3254 = vmatmul.mubr.f32.gmra.mrb[0].mxu0 %v3182
    %v3255 = vpop.f32.mrb[0].mxu0
    %v3256 = vadd.f32 0.0, %v3255
    %v3257 = vpop.f32.mrb[0].mxu0
    %3258 = vdwg.mxu0
    %v3260 = vsel %vm161, %v2765, 0
    %v3263 = vsel %vm161, %v2841, 0
    %3265 = vmatprep.subr.mxu0 0.0
    %3266 = vmatpush1.msra.mxu0 %v2508
    %3267 = vmatprep.subr.mxu0 0.0
    %3268 = vmatpush1.msra.mxu0 0.0
    %3269 = vmatprep.subr.mxu0 0.0
    %3270 = vmatpush1.msra.mxu0 0.0
    %3271 = vmatprep.subr.mxu0 0.0
    %3272 = vmatpush1.msra.mxu0 0.0
    %3273 = vmatprep.subr.mxu0 0.0
    %3274 = vmatpush1.msra.mxu0 0.0
    %3275 = vmatprep.subr.mxu0 0.0
    %3276 = vmatpush1.msra.mxu0 0.0
    %3277 = vmatprep.subr.mxu0 0.0
    %3278 = vmatpush1.msra.mxu0 0.0
    %3279 = vmatprep.subr.mxu0 0.0
    %3280 = vmatpush1.msra.mxu0 0.0
    %3281 = vmatprep.subr.mxu0 0.0
    %3282 = vmatpush1.msra.mxu0 0.0
    %3283 = vmatprep.subr.mxu0 0.0
    %3284 = vmatpush1.msra.mxu0 0.0
    %3285 = vmatprep.subr.mxu0 0.0
    %3286 = vmatpush1.msra.mxu0 0.0
    %3287 = vmatprep.subr.mxu0 0.0
    %3288 = vmatpush1.msra.mxu0 0.0
    %3289 = vmatprep.subr.mxu0 0.0
    %3290 = vmatpush1.msra.mxu0 0.0
    %3291 = vmatprep.subr.mxu0 0.0
    %3292 = vmatpush1.msra.mxu0 0.0
    %3293 = vmatprep.subr.mxu0 0.0
    %3294 = vmatpush1.msra.mxu0 0.0
    %3295 = vmatprep.subr.mxu0 0.0
    %3296 = vmatpush1.msra.mxu0 0.0
    %3297 = vmatprep.subr.mxu0 0.0
    %3298 = vmatpush1.msra.mxu0 0.0
    %3299 = vmatprep.subr.mxu0 0.0
    %3300 = vmatpush1.msra.mxu0 0.0
    %3301 = vmatprep.subr.mxu0 0.0
    %3302 = vmatpush1.msra.mxu0 0.0
    %3303 = vmatprep.subr.mxu0 0.0
    %3304 = vmatpush1.msra.mxu0 0.0
    %3305 = vmatprep.subr.mxu0 0.0
    %3306 = vmatpush1.msra.mxu0 0.0
    %3307 = vmatprep.subr.mxu0 0.0
    %3308 = vmatpush1.msra.mxu0 0.0
    %3309 = vmatprep.subr.mxu0 0.0
    %3310 = vmatpush1.msra.mxu0 0.0
    %3311 = vmatprep.subr.mxu0 0.0
    %3312 = vmatpush1.msra.mxu0 0.0
    %3313 = vmatprep.subr.mxu0 0.0
    %3314 = vmatpush1.msra.mxu0 0.0
    %3315 = vmatprep.subr.mxu0 0.0
    %3316 = vmatpush1.msra.mxu0 0.0
    %3317 = vmatprep.subr.mxu0 0.0
    %3318 = vmatpush1.msra.mxu0 0.0
    %3319 = vmatprep.subr.mxu0 0.0
    %3320 = vmatpush1.msra.mxu0 0.0
    %3321 = vmatprep.subr.mxu0 0.0
    %3322 = vmatpush1.msra.mxu0 0.0
    %3323 = vmatprep.subr.mxu0 0.0
    %3324 = vmatpush1.msra.mxu0 0.0
    %3325 = vmatprep.subr.mxu0 0.0
    %3326 = vmatpush1.msra.mxu0 0.0
    %3327 = vmatprep.subr.mxu0 0.0
    %3328 = vmatpush1.msra.mxu0 0.0
    %3329 = vmatprep.mubr.f32.mxu0 0.0
    %3330 = vmatmul.mubr.f32.gmra.mrb[0].mxu0 %v3260
    %v3331 = vpop.f32.mrb[0].mxu0
    %v3332 = vadd.f32 %v3251, %v3331
    %v3333 = vpop.f32.mrb[0].mxu0
    %3334 = vmatprep.mubr.f32.mxu0 0.0
    %3335 = vmatmul.mubr.f32.gmra.mrb[0].mxu0 %v3263
    %v3336 = vpop.f32.mrb[0].mxu0
    %v3337 = vadd.f32 %v3256, %v3336
    %v3338 = vpop.f32.mrb[0].mxu0
    %3339 = vdwg.mxu0
    %3340 = vrot.lane.b32.xlu0 %v2499, 112
    %v3341 = vpop.permute.xlu0 %3340
    %3342 = vrot.lane.b32.xlu0 %v2499, 80
    %v3343 = vpop.permute.xlu0 %3342
    %v3344 = vsel %vm161, %v3341, 0
    %v3346 = vsel %vm161, %v3343, 0
    %3348 = vmatprep.subr.mxu0 0.0
    %3349 = vmatpush1.xpose.msra.mxu0 %v3346
    %3350 = vmatprep.subr.mxu0 0.0
    %3351 = vmatpush1.xpose.msra.mxu0 0.0
    %3352 = vmatprep.subr.mxu0 0.0
    %3353 = vmatpush1.xpose.msra.mxu0 0.0
    %3354 = vmatprep.subr.mxu0 0.0
    %3355 = vmatpush1.xpose.msra.mxu0 0.0
    %3356 = vmatprep.subr.mxu0 0.0
    %3357 = vmatpush1.xpose.msra.mxu0 0.0
    %3358 = vmatprep.subr.mxu0 0.0
    %3359 = vmatpush1.xpose.msra.mxu0 0.0
    %3360 = vmatprep.subr.mxu0 0.0
    %3361 = vmatpush1.xpose.msra.mxu0 0.0
    %3362 = vmatprep.subr.mxu0 0.0
    %3363 = vmatpush1.xpose.msra.mxu0 0.0
    %3364 = vmatprep.subr.mxu0 0.0
    %3365 = vmatpush1.xpose.msra.mxu0 0.0
    %3366 = vmatprep.subr.mxu0 0.0
    %3367 = vmatpush1.xpose.msra.mxu0 0.0
    %3368 = vmatprep.subr.mxu0 0.0
    %3369 = vmatpush1.xpose.msra.mxu0 0.0
    %3370 = vmatprep.subr.mxu0 0.0
    %3371 = vmatpush1.xpose.msra.mxu0 0.0
    %3372 = vmatprep.subr.mxu0 0.0
    %3373 = vmatpush1.xpose.msra.mxu0 0.0
    %3374 = vmatprep.subr.mxu0 0.0
    %3375 = vmatpush1.xpose.msra.mxu0 0.0
    %3376 = vmatprep.subr.mxu0 0.0
    %3377 = vmatpush1.xpose.msra.mxu0 0.0
    %3378 = vmatprep.subr.mxu0 0.0
    %3379 = vmatpush1.xpose.msra.mxu0 0.0
    %3380 = vmatprep.subr.mxu0 0.0
    %3381 = vmatpush1.xpose.msra.mxu0 0.0
    %3382 = vmatprep.subr.mxu0 0.0
    %3383 = vmatpush1.xpose.msra.mxu0 0.0
    %3384 = vmatprep.subr.mxu0 0.0
    %3385 = vmatpush1.xpose.msra.mxu0 0.0
    %3386 = vmatprep.subr.mxu0 0.0
    %3387 = vmatpush1.xpose.msra.mxu0 0.0
    %3388 = vmatprep.subr.mxu0 0.0
    %3389 = vmatpush1.xpose.msra.mxu0 0.0
    %3390 = vmatprep.subr.mxu0 0.0
    %3391 = vmatpush1.xpose.msra.mxu0 0.0
    %3392 = vmatprep.subr.mxu0 0.0
    %3393 = vmatpush1.xpose.msra.mxu0 0.0
    %3394 = vmatprep.subr.mxu0 0.0
    %3395 = vmatpush1.xpose.msra.mxu0 0.0
    %3396 = vmatprep.subr.mxu0 0.0
    %3397 = vmatpush1.xpose.msra.mxu0 0.0
    %3398 = vmatprep.subr.mxu0 0.0
    %3399 = vmatpush1.xpose.msra.mxu0 0.0
    %3400 = vmatprep.subr.mxu0 0.0
    %3401 = vmatpush1.xpose.msra.mxu0 0.0
    %3402 = vmatprep.subr.mxu0 0.0
    %3403 = vmatpush1.xpose.msra.mxu0 0.0
    %3404 = vmatprep.subr.mxu0 0.0
    %3405 = vmatpush1.xpose.msra.mxu0 0.0
    %3406 = vmatprep.subr.mxu0 0.0
    %3407 = vmatpush1.xpose.msra.mxu0 0.0
    %3408 = vmatprep.subr.mxu0 0.0
    %3409 = vmatpush1.xpose.msra.mxu0 0.0
    %3410 = vmatprep.subr.mxu0 0.0
    %3411 = vmatpush1.xpose.msra.mxu0 0.0
    %3412 = vmatprep.mubr.f32.mxu0 0.0
    %3413 = vmatmul.mubr.f32.gmra.mrb[0].mxu0 %v3344
    %v3414 = vpop.f32.mrb[0].mxu0
    %v3415 = vadd.f32 0.0, %v3414
    %v3416 = vpop.f32.mrb[0].mxu0
    %3417 = vdwg.mxu0
    %3418 = vrot.lane.b32.xlu0 %v2504, 112
    %v3419 = vpop.permute.xlu0 %3418
    %3420 = vrot.lane.b32.xlu0 %v2504, 80
    %v3421 = vpop.permute.xlu0 %3420
    %v3422 = vsel %vm161, %v3419, 0
    %v3424 = vsel %vm161, %v3421, 0
    %3426 = vmatprep.subr.mxu0 0.0
    %3427 = vmatpush1.xpose.msra.mxu0 %v3424
    %3428 = vmatprep.subr.mxu0 0.0
    %3429 = vmatpush1.xpose.msra.mxu0 0.0
    %3430 = vmatprep.subr.mxu0 0.0
    %3431 = vmatpush1.xpose.msra.mxu0 0.0
    %3432 = vmatprep.subr.mxu0 0.0
    %3433 = vmatpush1.xpose.msra.mxu0 0.0
    %3434 = vmatprep.subr.mxu0 0.0
    %3435 = vmatpush1.xpose.msra.mxu0 0.0
    %3436 = vmatprep.subr.mxu0 0.0
    %3437 = vmatpush1.xpose.msra.mxu0 0.0
    %3438 = vmatprep.subr.mxu0 0.0
    %3439 = vmatpush1.xpose.msra.mxu0 0.0
    %3440 = vmatprep.subr.mxu0 0.0
    %3441 = vmatpush1.xpose.msra.mxu0 0.0
    %3442 = vmatprep.subr.mxu0 0.0
    %3443 = vmatpush1.xpose.msra.mxu0 0.0
    %3444 = vmatprep.subr.mxu0 0.0
    %3445 = vmatpush1.xpose.msra.mxu0 0.0
    %3446 = vmatprep.subr.mxu0 0.0
    %3447 = vmatpush1.xpose.msra.mxu0 0.0
    %3448 = vmatprep.subr.mxu0 0.0
    %3449 = vmatpush1.xpose.msra.mxu0 0.0
    %3450 = vmatprep.subr.mxu0 0.0
    %3451 = vmatpush1.xpose.msra.mxu0 0.0
    %3452 = vmatprep.subr.mxu0 0.0
    %3453 = vmatpush1.xpose.msra.mxu0 0.0
    %3454 = vmatprep.subr.mxu0 0.0
    %3455 = vmatpush1.xpose.msra.mxu0 0.0
    %3456 = vmatprep.subr.mxu0 0.0
    %3457 = vmatpush1.xpose.msra.mxu0 0.0
    %3458 = vmatprep.subr.mxu0 0.0
    %3459 = vmatpush1.xpose.msra.mxu0 0.0
    %3460 = vmatprep.subr.mxu0 0.0
    %3461 = vmatpush1.xpose.msra.mxu0 0.0
    %3462 = vmatprep.subr.mxu0 0.0
    %3463 = vmatpush1.xpose.msra.mxu0 0.0
    %3464 = vmatprep.subr.mxu0 0.0
    %3465 = vmatpush1.xpose.msra.mxu0 0.0
    %3466 = vmatprep.subr.mxu0 0.0
    %3467 = vmatpush1.xpose.msra.mxu0 0.0
    %3468 = vmatprep.subr.mxu0 0.0
    %3469 = vmatpush1.xpose.msra.mxu0 0.0
    %3470 = vmatprep.subr.mxu0 0.0
    %3471 = vmatpush1.xpose.msra.mxu0 0.0
    %3472 = vmatprep.subr.mxu0 0.0
    %3473 = vmatpush1.xpose.msra.mxu0 0.0
    %3474 = vmatprep.subr.mxu0 0.0
    %3475 = vmatpush1.xpose.msra.mxu0 0.0
    %3476 = vmatprep.subr.mxu0 0.0
    %3477 = vmatpush1.xpose.msra.mxu0 0.0
    %3478 = vmatprep.subr.mxu0 0.0
    %3479 = vmatpush1.xpose.msra.mxu0 0.0
    %3480 = vmatprep.subr.mxu0 0.0
    %3481 = vmatpush1.xpose.msra.mxu0 0.0
    %3482 = vmatprep.subr.mxu0 0.0
    %3483 = vmatpush1.xpose.msra.mxu0 0.0
    %3484 = vmatprep.subr.mxu0 0.0
    %3485 = vmatpush1.xpose.msra.mxu0 0.0
    %3486 = vmatprep.subr.mxu0 0.0
    %3487 = vmatpush1.xpose.msra.mxu0 0.0
    %3488 = vmatprep.subr.mxu0 0.0
    %3489 = vmatpush1.xpose.msra.mxu0 0.0
    %3490 = vmatprep.mubr.f32.mxu0 0.0
    %3491 = vmatmul.mubr.f32.gmra.mrb[0].mxu0 %v3422
    %v3492 = vpop.f32.mrb[0].mxu0
    %v3493 = vadd.f32 0.0, %v3492
    %v3494 = vpop.f32.mrb[0].mxu0
    %3495 = vdwg.mxu0
    %v3496 = vmul.f32 %v3415, 0.35355338
    %v3497 = vmul.f32 %v3493, 0.35355338
    %v3498 = vadd.f32 %v3496, %v357
    %v3499 = vadd.f32 %v3497, %v361
    %v3500 = vsel %vm161, %v3498, -inf
    %3501 = vmax.xlane.f32.xlu0 %v3500
    %v3502 = vpop.xlane.xlu0 %3501
    %v3503 = vsel %vm161, %v3499, -inf
    %3504 = vmax.xlane.f32.xlu0 %v3503
    %v3505 = vpop.xlane.xlu0 %3504
    %v3506 = vsub.f32 %v3498, %v3502
    %v3507 = vsub.f32 %v3499, %v3505
    %v3508 = vmul.f32 %v3506, 1.442695
    %v3509 = vpow.pop %v3508
    %v3510 = vmul.f32 %v3507, 1.442695
    %v3511 = vpow.pop %v3510
    %v3512 = vsel %vm161, %v3509, 0.0
    %3513 = vadd.xlane.f32.xlu0 %v3512
    %v3514 = vpop.xlane.xlu0 %3513
    %v3515 = vsel %vm161, %v3511, 0.0
    %3516 = vadd.xlane.f32.xlu0 %v3515
    %v3517 = vpop.xlane.xlu0 %3516
    %v3518 = vrcp.pop %v3514
    %v3519 = vrcp.pop %v3517
    %v3520 = vmul.f32 %v3509, %v3518
    %v3521 = vmul.f32 %v3511, %v3519
    %3522 = vrot.lane.b32.xlu0 %v2499, 48
    %v3523 = vpop.permute.xlu0 %3522
    %v3526 = vsel %vm161, %v3520, 0
    %3528 = vmatprep.subr.mxu0 0.0
    %3529 = vmatpush1.msra.mxu0 %v3523
    %3530 = vmatprep.subr.mxu0 0.0
    %3531 = vmatpush1.msra.mxu0 0.0
    %3532 = vmatprep.subr.mxu0 0.0
    %3533 = vmatpush1.msra.mxu0 0.0
    %3534 = vmatprep.subr.mxu0 0.0
    %3535 = vmatpush1.msra.mxu0 0.0
    %3536 = vmatprep.subr.mxu0 0.0
    %3537 = vmatpush1.msra.mxu0 0.0
    %3538 = vmatprep.subr.mxu0 0.0
    %3539 = vmatpush1.msra.mxu0 0.0
    %3540 = vmatprep.subr.mxu0 0.0
    %3541 = vmatpush1.msra.mxu0 0.0
    %3542 = vmatprep.subr.mxu0 0.0
    %3543 = vmatpush1.msra.mxu0 0.0
    %3544 = vmatprep.subr.mxu0 0.0
    %3545 = vmatpush1.msra.mxu0 0.0
    %3546 = vmatprep.subr.mxu0 0.0
    %3547 = vmatpush1.msra.mxu0 0.0
    %3548 = vmatprep.subr.mxu0 0.0
    %3549 = vmatpush1.msra.mxu0 0.0
    %3550 = vmatprep.subr.mxu0 0.0
    %3551 = vmatpush1.msra.mxu0 0.0
    %3552 = vmatprep.subr.mxu0 0.0
    %3553 = vmatpush1.msra.mxu0 0.0
    %3554 = vmatprep.subr.mxu0 0.0
    %3555 = vmatpush1.msra.mxu0 0.0
    %3556 = vmatprep.subr.mxu0 0.0
    %3557 = vmatpush1.msra.mxu0 0.0
    %3558 = vmatprep.subr.mxu0 0.0
    %3559 = vmatpush1.msra.mxu0 0.0
    %3560 = vmatprep.subr.mxu0 0.0
    %3561 = vmatpush1.msra.mxu0 0.0
    %3562 = vmatprep.subr.mxu0 0.0
    %3563 = vmatpush1.msra.mxu0 0.0
    %3564 = vmatprep.subr.mxu0 0.0
    %3565 = vmatpush1.msra.mxu0 0.0
    %3566 = vmatprep.subr.mxu0 0.0
    %3567 = vmatpush1.msra.mxu0 0.0
    %3568 = vmatprep.subr.mxu0 0.0
    %3569 = vmatpush1.msra.mxu0 0.0
    %3570 = vmatprep.subr.mxu0 0.0
    %3571 = vmatpush1.msra.mxu0 0.0
    %3572 = vmatprep.subr.mxu0 0.0
    %3573 = vmatpush1.msra.mxu0 0.0
    %3574 = vmatprep.subr.mxu0 0.0
    %3575 = vmatpush1.msra.mxu0 0.0
    %3576 = vmatprep.subr.mxu0 0.0
    %3577 = vmatpush1.msra.mxu0 0.0
    %3578 = vmatprep.subr.mxu0 0.0
    %3579 = vmatpush1.msra.mxu0 0.0
    %3580 = vmatprep.subr.mxu0 0.0
    %3581 = vmatpush1.msra.mxu0 0.0
    %3582 = vmatprep.subr.mxu0 0.0
    %3583 = vmatpush1.msra.mxu0 0.0
    %3584 = vmatprep.subr.mxu0 0.0
    %3585 = vmatpush1.msra.mxu0 0.0
    %3586 = vmatprep.subr.mxu0 0.0
    %3587 = vmatpush1.msra.mxu0 0.0
    %3588 = vmatprep.subr.mxu0 0.0
    %3589 = vmatpush1.msra.mxu0 0.0
    %3590 = vmatprep.subr.mxu0 0.0
    %3591 = vmatpush1.msra.mxu0 0.0
    %3592 = vmatprep.mubr.f32.mxu0 0.0
    %3593 = vmatmul.mubr.f32.gmra.mrb[0].mxu0 %v3526
    %v3594 = vpop.f32.mrb[0].mxu0
    %v3595 = vadd.f32 0.0, %v3594
    %v3596 = vpop.f32.mrb[0].mxu0
    %3597 = vdwg.mxu0
    %3598 = vrot.lane.b32.xlu0 %v2504, 48
    %v3599 = vpop.permute.xlu0 %3598
    %v3602 = vsel %vm161, %v3521, 0
    %3604 = vmatprep.subr.mxu0 0.0
    %3605 = vmatpush1.msra.mxu0 %v3599
    %3606 = vmatprep.subr.mxu0 0.0
    %3607 = vmatpush1.msra.mxu0 0.0
    %3608 = vmatprep.subr.mxu0 0.0
    %3609 = vmatpush1.msra.mxu0 0.0
    %3610 = vmatprep.subr.mxu0 0.0
    %3611 = vmatpush1.msra.mxu0 0.0
    %3612 = vmatprep.subr.mxu0 0.0
    %3613 = vmatpush1.msra.mxu0 0.0
    %3614 = vmatprep.subr.mxu0 0.0
    %3615 = vmatpush1.msra.mxu0 0.0
    %3616 = vmatprep.subr.mxu0 0.0
    %3617 = vmatpush1.msra.mxu0 0.0
    %3618 = vmatprep.subr.mxu0 0.0
    %3619 = vmatpush1.msra.mxu0 0.0
    %3620 = vmatprep.subr.mxu0 0.0
    %3621 = vmatpush1.msra.mxu0 0.0
    %3622 = vmatprep.subr.mxu0 0.0
    %3623 = vmatpush1.msra.mxu0 0.0
    %3624 = vmatprep.subr.mxu0 0.0
    %3625 = vmatpush1.msra.mxu0 0.0
    %3626 = vmatprep.subr.mxu0 0.0
    %3627 = vmatpush1.msra.mxu0 0.0
    %3628 = vmatprep.subr.mxu0 0.0
    %3629 = vmatpush1.msra.mxu0 0.0
    %3630 = vmatprep.subr.mxu0 0.0
    %3631 = vmatpush1.msra.mxu0 0.0
    %3632 = vmatprep.subr.mxu0 0.0
    %3633 = vmatpush1.msra.mxu0 0.0
    %3634 = vmatprep.subr.mxu0 0.0
    %3635 = vmatpush1.msra.mxu0 0.0
    %3636 = vmatprep.subr.mxu0 0.0
    %3637 = vmatpush1.msra.mxu0 0.0
    %3638 = vmatprep.subr.mxu0 0.0
    %3639 = vmatpush1.msra.mxu0 0.0
    %3640 = vmatprep.subr.mxu0 0.0
    %3641 = vmatpush1.msra.mxu0 0.0
    %3642 = vmatprep.subr.mxu0 0.0
    %3643 = vmatpush1.msra.mxu0 0.0
    %3644 = vmatprep.subr.mxu0 0.0
    %3645 = vmatpush1.msra.mxu0 0.0
    %3646 = vmatprep.subr.mxu0 0.0
    %3647 = vmatpush1.msra.mxu0 0.0
    %3648 = vmatprep.subr.mxu0 0.0
    %3649 = vmatpush1.msra.mxu0 0.0
    %3650 = vmatprep.subr.mxu0 0.0
    %3651 = vmatpush1.msra.mxu0 0.0
    %3652 = vmatprep.subr.mxu0 0.0
    %3653 = vmatpush1.msra.mxu0 0.0
    %3654 = vmatprep.subr.mxu0 0.0
    %3655 = vmatpush1.msra.mxu0 0.0
    %3656 = vmatprep.subr.mxu0 0.0
    %3657 = vmatpush1.msra.mxu0 0.0
    %3658 = vmatprep.subr.mxu0 0.0
    %3659 = vmatpush1.msra.mxu0 0.0
    %3660 = vmatprep.subr.mxu0 0.0
    %3661 = vmatpush1.msra.mxu0 0.0
    %3662 = vmatprep.subr.mxu0 0.0
    %3663 = vmatpush1.msra.mxu0 0.0
    %3664 = vmatprep.subr.mxu0 0.0
    %3665 = vmatpush1.msra.mxu0 0.0
    %3666 = vmatprep.subr.mxu0 0.0
    %3667 = vmatpush1.msra.mxu0 0.0
    %3668 = vmatprep.mubr.f32.mxu0 0.0
    %3669 = vmatmul.mubr.f32.gmra.mrb[0].mxu0 %v3602
    %v3670 = vpop.f32.mrb[0].mxu0
    %v3671 = vadd.f32 0.0, %v3670
    %v3672 = vpop.f32.mrb[0].mxu0
    %3673 = vdwg.mxu0
    %v3675 = vsel %vm161, %v3595, 0
    %v3678 = vsel %vm161, %v3671, 0
    %3680 = vmatprep.subr.mxu0 0.0
    %3681 = vmatpush1.msra.mxu0 %v2510
    %3682 = vmatprep.subr.mxu0 0.0
    %3683 = vmatpush1.msra.mxu0 0.0
    %3684 = vmatprep.subr.mxu0 0.0
    %3685 = vmatpush1.msra.mxu0 0.0
    %3686 = vmatprep.subr.mxu0 0.0
    %3687 = vmatpush1.msra.mxu0 0.0
    %3688 = vmatprep.subr.mxu0 0.0
    %3689 = vmatpush1.msra.mxu0 0.0
    %3690 = vmatprep.subr.mxu0 0.0
    %3691 = vmatpush1.msra.mxu0 0.0
    %3692 = vmatprep.subr.mxu0 0.0
    %3693 = vmatpush1.msra.mxu0 0.0
    %3694 = vmatprep.subr.mxu0 0.0
    %3695 = vmatpush1.msra.mxu0 0.0
    %3696 = vmatprep.subr.mxu0 0.0
    %3697 = vmatpush1.msra.mxu0 0.0
    %3698 = vmatprep.subr.mxu0 0.0
    %3699 = vmatpush1.msra.mxu0 0.0
    %3700 = vmatprep.subr.mxu0 0.0
    %3701 = vmatpush1.msra.mxu0 0.0
    %3702 = vmatprep.subr.mxu0 0.0
    %3703 = vmatpush1.msra.mxu0 0.0
    %3704 = vmatprep.subr.mxu0 0.0
    %3705 = vmatpush1.msra.mxu0 0.0
    %3706 = vmatprep.subr.mxu0 0.0
    %3707 = vmatpush1.msra.mxu0 0.0
    %3708 = vmatprep.subr.mxu0 0.0
    %3709 = vmatpush1.msra.mxu0 0.0
    %3710 = vmatprep.subr.mxu0 0.0
    %3711 = vmatpush1.msra.mxu0 0.0
    %3712 = vmatprep.subr.mxu0 0.0
    %3713 = vmatpush1.msra.mxu0 0.0
    %3714 = vmatprep.subr.mxu0 0.0
    %3715 = vmatpush1.msra.mxu0 0.0
    %3716 = vmatprep.subr.mxu0 0.0
    %3717 = vmatpush1.msra.mxu0 0.0
    %3718 = vmatprep.subr.mxu0 0.0
    %3719 = vmatpush1.msra.mxu0 0.0
    %3720 = vmatprep.subr.mxu0 0.0
    %3721 = vmatpush1.msra.mxu0 0.0
    %3722 = vmatprep.subr.mxu0 0.0
    %3723 = vmatpush1.msra.mxu0 0.0
    %3724 = vmatprep.subr.mxu0 0.0
    %3725 = vmatpush1.msra.mxu0 0.0
    %3726 = vmatprep.subr.mxu0 0.0
    %3727 = vmatpush1.msra.mxu0 0.0
    %3728 = vmatprep.subr.mxu0 0.0
    %3729 = vmatpush1.msra.mxu0 0.0
    %3730 = vmatprep.subr.mxu0 0.0
    %3731 = vmatpush1.msra.mxu0 0.0
    %3732 = vmatprep.subr.mxu0 0.0
    %3733 = vmatpush1.msra.mxu0 0.0
    %3734 = vmatprep.subr.mxu0 0.0
    %3735 = vmatpush1.msra.mxu0 0.0
    %3736 = vmatprep.subr.mxu0 0.0
    %3737 = vmatpush1.msra.mxu0 0.0
    %3738 = vmatprep.subr.mxu0 0.0
    %3739 = vmatpush1.msra.mxu0 0.0
    %3740 = vmatprep.subr.mxu0 0.0
    %3741 = vmatpush1.msra.mxu0 0.0
    %3742 = vmatprep.subr.mxu0 0.0
    %3743 = vmatpush1.msra.mxu0 0.0
    %3744 = vmatprep.mubr.f32.mxu0 0.0
    %3745 = vmatmul.mubr.f32.gmra.mrb[0].mxu0 %v3675
    %v3746 = vpop.f32.mrb[0].mxu0
    %v3747 = vadd.f32 0.0, %v3746
    %v3748 = vpop.f32.mrb[0].mxu0
    %3749 = vmatprep.mubr.f32.mxu0 0.0
    %3750 = vmatmul.mubr.f32.gmra.mrb[0].mxu0 %v3678
    %v3751 = vpop.f32.mrb[0].mxu0
    %v3752 = vadd.f32 0.0, %v3751
    %v3753 = vpop.f32.mrb[0].mxu0
    %3754 = vdwg.mxu0
    %v3755 = vadd.f32 %v3332, %v3747
    %v3756 = vadd.f32 %v3337, %v3752
    %3757 = vrot.lane.b32.xlu0 %v2499, 104
    %v3758 = vpop.permute.xlu0 %3757
    %3759 = vrot.lane.b32.xlu0 %v2499, 72
    %v3760 = vpop.permute.xlu0 %3759
    %v3761 = vsel %vm161, %v3758, 0
    %v3763 = vsel %vm161, %v3760, 0
    %3765 = vmatprep.subr.mxu0 0.0
    %3766 = vmatpush1.xpose.msra.mxu0 %v3763
    %3767 = vmatprep.subr.mxu0 0.0
    %3768 = vmatpush1.xpose.msra.mxu0 0.0
    %3769 = vmatprep.subr.mxu0 0.0
    %3770 = vmatpush1.xpose.msra.mxu0 0.0
    %3771 = vmatprep.subr.mxu0 0.0
    %3772 = vmatpush1.xpose.msra.mxu0 0.0
    %3773 = vmatprep.subr.mxu0 0.0
    %3774 = vmatpush1.xpose.msra.mxu0 0.0
    %3775 = vmatprep.subr.mxu0 0.0
    %3776 = vmatpush1.xpose.msra.mxu0 0.0
    %3777 = vmatprep.subr.mxu0 0.0
    %3778 = vmatpush1.xpose.msra.mxu0 0.0
    %3779 = vmatprep.subr.mxu0 0.0
    %3780 = vmatpush1.xpose.msra.mxu0 0.0
    %3781 = vmatprep.subr.mxu0 0.0
    %3782 = vmatpush1.xpose.msra.mxu0 0.0
    %3783 = vmatprep.subr.mxu0 0.0
    %3784 = vmatpush1.xpose.msra.mxu0 0.0
    %3785 = vmatprep.subr.mxu0 0.0
    %3786 = vmatpush1.xpose.msra.mxu0 0.0
    %3787 = vmatprep.subr.mxu0 0.0
    %3788 = vmatpush1.xpose.msra.mxu0 0.0
    %3789 = vmatprep.subr.mxu0 0.0
    %3790 = vmatpush1.xpose.msra.mxu0 0.0
    %3791 = vmatprep.subr.mxu0 0.0
    %3792 = vmatpush1.xpose.msra.mxu0 0.0
    %3793 = vmatprep.subr.mxu0 0.0
    %3794 = vmatpush1.xpose.msra.mxu0 0.0
    %3795 = vmatprep.subr.mxu0 0.0
    %3796 = vmatpush1.xpose.msra.mxu0 0.0
    %3797 = vmatprep.subr.mxu0 0.0
    %3798 = vmatpush1.xpose.msra.mxu0 0.0
    %3799 = vmatprep.subr.mxu0 0.0
    %3800 = vmatpush1.xpose.msra.mxu0 0.0
    %3801 = vmatprep.subr.mxu0 0.0
    %3802 = vmatpush1.xpose.msra.mxu0 0.0
    %3803 = vmatprep.subr.mxu0 0.0
    %3804 = vmatpush1.xpose.msra.mxu0 0.0
    %3805 = vmatprep.subr.mxu0 0.0
    %3806 = vmatpush1.xpose.msra.mxu0 0.0
    %3807 = vmatprep.subr.mxu0 0.0
    %3808 = vmatpush1.xpose.msra.mxu0 0.0
    %3809 = vmatprep.subr.mxu0 0.0
    %3810 = vmatpush1.xpose.msra.mxu0 0.0
    %3811 = vmatprep.subr.mxu0 0.0
    %3812 = vmatpush1.xpose.msra.mxu0 0.0
    %3813 = vmatprep.subr.mxu0 0.0
    %3814 = vmatpush1.xpose.msra.mxu0 0.0
    %3815 = vmatprep.subr.mxu0 0.0
    %3816 = vmatpush1.xpose.msra.mxu0 0.0
    %3817 = vmatprep.subr.mxu0 0.0
    %3818 = vmatpush1.xpose.msra.mxu0 0.0
    %3819 = vmatprep.subr.mxu0 0.0
    %3820 = vmatpush1.xpose.msra.mxu0 0.0
    %3821 = vmatprep.subr.mxu0 0.0
    %3822 = vmatpush1.xpose.msra.mxu0 0.0
    %3823 = vmatprep.subr.mxu0 0.0
    %3824 = vmatpush1.xpose.msra.mxu0 0.0
    %3825 = vmatprep.subr.mxu0 0.0
    %3826 = vmatpush1.xpose.msra.mxu0 0.0
    %3827 = vmatprep.subr.mxu0 0.0
    %3828 = vmatpush1.xpose.msra.mxu0 0.0
    %3829 = vmatprep.mubr.f32.mxu0 0.0
    %3830 = vmatmul.mubr.f32.gmra.mrb[0].mxu0 %v3761
    %v3831 = vpop.f32.mrb[0].mxu0
    %v3832 = vadd.f32 0.0, %v3831
    %v3833 = vpop.f32.mrb[0].mxu0
    %3834 = vdwg.mxu0
    %3835 = vrot.lane.b32.xlu0 %v2504, 104
    %v3836 = vpop.permute.xlu0 %3835
    %3837 = vrot.lane.b32.xlu0 %v2504, 72
    %v3838 = vpop.permute.xlu0 %3837
    %v3839 = vsel %vm161, %v3836, 0
    %v3841 = vsel %vm161, %v3838, 0
    %3843 = vmatprep.subr.mxu0 0.0
    %3844 = vmatpush1.xpose.msra.mxu0 %v3841
    %3845 = vmatprep.subr.mxu0 0.0
    %3846 = vmatpush1.xpose.msra.mxu0 0.0
    %3847 = vmatprep.subr.mxu0 0.0
    %3848 = vmatpush1.xpose.msra.mxu0 0.0
    %3849 = vmatprep.subr.mxu0 0.0
    %3850 = vmatpush1.xpose.msra.mxu0 0.0
    %3851 = vmatprep.subr.mxu0 0.0
    %3852 = vmatpush1.xpose.msra.mxu0 0.0
    %3853 = vmatprep.subr.mxu0 0.0
    %3854 = vmatpush1.xpose.msra.mxu0 0.0
    %3855 = vmatprep.subr.mxu0 0.0
    %3856 = vmatpush1.xpose.msra.mxu0 0.0
    %3857 = vmatprep.subr.mxu0 0.0
    %3858 = vmatpush1.xpose.msra.mxu0 0.0
    %3859 = vmatprep.subr.mxu0 0.0
    %3860 = vmatpush1.xpose.msra.mxu0 0.0
    %3861 = vmatprep.subr.mxu0 0.0
    %3862 = vmatpush1.xpose.msra.mxu0 0.0
    %3863 = vmatprep.subr.mxu0 0.0
    %3864 = vmatpush1.xpose.msra.mxu0 0.0
    %3865 = vmatprep.subr.mxu0 0.0
    %3866 = vmatpush1.xpose.msra.mxu0 0.0
    %3867 = vmatprep.subr.mxu0 0.0
    %3868 = vmatpush1.xpose.msra.mxu0 0.0
    %3869 = vmatprep.subr.mxu0 0.0
    %3870 = vmatpush1.xpose.msra.mxu0 0.0
    %3871 = vmatprep.subr.mxu0 0.0
    %3872 = vmatpush1.xpose.msra.mxu0 0.0
    %3873 = vmatprep.subr.mxu0 0.0
    %3874 = vmatpush1.xpose.msra.mxu0 0.0
    %3875 = vmatprep.subr.mxu0 0.0
    %3876 = vmatpush1.xpose.msra.mxu0 0.0
    %3877 = vmatprep.subr.mxu0 0.0
    %3878 = vmatpush1.xpose.msra.mxu0 0.0
    %3879 = vmatprep.subr.mxu0 0.0
    %3880 = vmatpush1.xpose.msra.mxu0 0.0
    %3881 = vmatprep.subr.mxu0 0.0
    %3882 = vmatpush1.xpose.msra.mxu0 0.0
    %3883 = vmatprep.subr.mxu0 0.0
    %3884 = vmatpush1.xpose.msra.mxu0 0.0
    %3885 = vmatprep.subr.mxu0 0.0
    %3886 = vmatpush1.xpose.msra.mxu0 0.0
    %3887 = vmatprep.subr.mxu0 0.0
    %3888 = vmatpush1.xpose.msra.mxu0 0.0
    %3889 = vmatprep.subr.mxu0 0.0
    %3890 = vmatpush1.xpose.msra.mxu0 0.0
    %3891 = vmatprep.subr.mxu0 0.0
    %3892 = vmatpush1.xpose.msra.mxu0 0.0
    %3893 = vmatprep.subr.mxu0 0.0
    %3894 = vmatpush1.xpose.msra.mxu0 0.0
    %3895 = vmatprep.subr.mxu0 0.0
    %3896 = vmatpush1.xpose.msra.mxu0 0.0
    %3897 = vmatprep.subr.mxu0 0.0
    %3898 = vmatpush1.xpose.msra.mxu0 0.0
    %3899 = vmatprep.subr.mxu0 0.0
    %3900 = vmatpush1.xpose.msra.mxu0 0.0
    %3901 = vmatprep.subr.mxu0 0.0
    %3902 = vmatpush1.xpose.msra.mxu0 0.0
    %3903 = vmatprep.subr.mxu0 0.0
    %3904 = vmatpush1.xpose.msra.mxu0 0.0
    %3905 = vmatprep.subr.mxu0 0.0
    %3906 = vmatpush1.xpose.msra.mxu0 0.0
    %3907 = vmatprep.mubr.f32.mxu0 0.0
    %3908 = vmatmul.mubr.f32.gmra.mrb[0].mxu0 %v3839
    %v3909 = vpop.f32.mrb[0].mxu0
    %v3910 = vadd.f32 0.0, %v3909
    %v3911 = vpop.f32.mrb[0].mxu0
    %3912 = vdwg.mxu0
    %v3913 = vmul.f32 %v3832, 0.35355338
    %v3914 = vmul.f32 %v3910, 0.35355338
    %v3915 = vadd.f32 %v3913, %v357
    %v3916 = vadd.f32 %v3914, %v361
    %v3917 = vsel %vm161, %v3915, -inf
    %3918 = vmax.xlane.f32.xlu0 %v3917
    %v3919 = vpop.xlane.xlu0 %3918
    %v3920 = vsel %vm161, %v3916, -inf
    %3921 = vmax.xlane.f32.xlu0 %v3920
    %v3922 = vpop.xlane.xlu0 %3921
    %v3923 = vsub.f32 %v3915, %v3919
    %v3924 = vsub.f32 %v3916, %v3922
    %v3925 = vmul.f32 %v3923, 1.442695
    %v3926 = vpow.pop %v3925
    %v3927 = vmul.f32 %v3924, 1.442695
    %v3928 = vpow.pop %v3927
    %v3929 = vsel %vm161, %v3926, 0.0
    %3930 = vadd.xlane.f32.xlu0 %v3929
    %v3931 = vpop.xlane.xlu0 %3930
    %v3932 = vsel %vm161, %v3928, 0.0
    %3933 = vadd.xlane.f32.xlu0 %v3932
    %v3934 = vpop.xlane.xlu0 %3933
    %v3935 = vrcp.pop %v3931
    %v3936 = vrcp.pop %v3934
    %v3937 = vmul.f32 %v3926, %v3935
    %v3938 = vmul.f32 %v3928, %v3936
    %3939 = vrot.lane.b32.xlu0 %v2499, 40
    %v3940 = vpop.permute.xlu0 %3939
    %v3943 = vsel %vm161, %v3937, 0
    %3945 = vmatprep.subr.mxu0 0.0
    %3946 = vmatpush1.msra.mxu0 %v3940
    %3947 = vmatprep.subr.mxu0 0.0
    %3948 = vmatpush1.msra.mxu0 0.0
    %3949 = vmatprep.subr.mxu0 0.0
    %3950 = vmatpush1.msra.mxu0 0.0
    %3951 = vmatprep.subr.mxu0 0.0
    %3952 = vmatpush1.msra.mxu0 0.0
    %3953 = vmatprep.subr.mxu0 0.0
    %3954 = vmatpush1.msra.mxu0 0.0
    %3955 = vmatprep.subr.mxu0 0.0
    %3956 = vmatpush1.msra.mxu0 0.0
    %3957 = vmatprep.subr.mxu0 0.0
    %3958 = vmatpush1.msra.mxu0 0.0
    %3959 = vmatprep.subr.mxu0 0.0
    %3960 = vmatpush1.msra.mxu0 0.0
    %3961 = vmatprep.subr.mxu0 0.0
    %3962 = vmatpush1.msra.mxu0 0.0
    %3963 = vmatprep.subr.mxu0 0.0
    %3964 = vmatpush1.msra.mxu0 0.0
    %3965 = vmatprep.subr.mxu0 0.0
    %3966 = vmatpush1.msra.mxu0 0.0
    %3967 = vmatprep.subr.mxu0 0.0
    %3968 = vmatpush1.msra.mxu0 0.0
    %3969 = vmatprep.subr.mxu0 0.0
    %3970 = vmatpush1.msra.mxu0 0.0
    %3971 = vmatprep.subr.mxu0 0.0
    %3972 = vmatpush1.msra.mxu0 0.0
    %3973 = vmatprep.subr.mxu0 0.0
    %3974 = vmatpush1.msra.mxu0 0.0
    %3975 = vmatprep.subr.mxu0 0.0
    %3976 = vmatpush1.msra.mxu0 0.0
    %3977 = vmatprep.subr.mxu0 0.0
    %3978 = vmatpush1.msra.mxu0 0.0
    %3979 = vmatprep.subr.mxu0 0.0
    %3980 = vmatpush1.msra.mxu0 0.0
    %3981 = vmatprep.subr.mxu0 0.0
    %3982 = vmatpush1.msra.mxu0 0.0
    %3983 = vmatprep.subr.mxu0 0.0
    %3984 = vmatpush1.msra.mxu0 0.0
    %3985 = vmatprep.subr.mxu0 0.0
    %3986 = vmatpush1.msra.mxu0 0.0
    %3987 = vmatprep.subr.mxu0 0.0
    %3988 = vmatpush1.msra.mxu0 0.0
    %3989 = vmatprep.subr.mxu0 0.0
    %3990 = vmatpush1.msra.mxu0 0.0
    %3991 = vmatprep.subr.mxu0 0.0
    %3992 = vmatpush1.msra.mxu0 0.0
    %3993 = vmatprep.subr.mxu0 0.0
    %3994 = vmatpush1.msra.mxu0 0.0
    %3995 = vmatprep.subr.mxu0 0.0
    %3996 = vmatpush1.msra.mxu0 0.0
    %3997 = vmatprep.subr.mxu0 0.0
    %3998 = vmatpush1.msra.mxu0 0.0
    %3999 = vmatprep.subr.mxu0 0.0
    %4000 = vmatpush1.msra.mxu0 0.0
    %4001 = vmatprep.subr.mxu0 0.0
    %4002 = vmatpush1.msra.mxu0 0.0
    %4003 = vmatprep.subr.mxu0 0.0
    %4004 = vmatpush1.msra.mxu0 0.0
    %4005 = vmatprep.subr.mxu0 0.0
    %4006 = vmatpush1.msra.mxu0 0.0
    %4007 = vmatprep.subr.mxu0 0.0
    %4008 = vmatpush1.msra.mxu0 0.0
    %4009 = vmatprep.mubr.f32.mxu0 0.0
    %4010 = vmatmul.mubr.f32.gmra.mrb[0].mxu0 %v3943
    %v4011 = vpop.f32.mrb[0].mxu0
    %v4012 = vadd.f32 0.0, %v4011
    %v4013 = vpop.f32.mrb[0].mxu0
    %4014 = vdwg.mxu0
    %4015 = vrot.lane.b32.xlu0 %v2504, 40
    %v4016 = vpop.permute.xlu0 %4015
    %v4019 = vsel %vm161, %v3938, 0
    %4021 = vmatprep.subr.mxu0 0.0
    %4022 = vmatpush1.msra.mxu0 %v4016
    %4023 = vmatprep.subr.mxu0 0.0
    %4024 = vmatpush1.msra.mxu0 0.0
    %4025 = vmatprep.subr.mxu0 0.0
    %4026 = vmatpush1.msra.mxu0 0.0
    %4027 = vmatprep.subr.mxu0 0.0
    %4028 = vmatpush1.msra.mxu0 0.0
    %4029 = vmatprep.subr.mxu0 0.0
    %4030 = vmatpush1.msra.mxu0 0.0
    %4031 = vmatprep.subr.mxu0 0.0
    %4032 = vmatpush1.msra.mxu0 0.0
    %4033 = vmatprep.subr.mxu0 0.0
    %4034 = vmatpush1.msra.mxu0 0.0
    %4035 = vmatprep.subr.mxu0 0.0
    %4036 = vmatpush1.msra.mxu0 0.0
    %4037 = vmatprep.subr.mxu0 0.0
    %4038 = vmatpush1.msra.mxu0 0.0
    %4039 = vmatprep.subr.mxu0 0.0
    %4040 = vmatpush1.msra.mxu0 0.0
    %4041 = vmatprep.subr.mxu0 0.0
    %4042 = vmatpush1.msra.mxu0 0.0
    %4043 = vmatprep.subr.mxu0 0.0
    %4044 = vmatpush1.msra.mxu0 0.0
    %4045 = vmatprep.subr.mxu0 0.0
    %4046 = vmatpush1.msra.mxu0 0.0
    %4047 = vmatprep.subr.mxu0 0.0
    %4048 = vmatpush1.msra.mxu0 0.0
    %4049 = vmatprep.subr.mxu0 0.0
    %4050 = vmatpush1.msra.mxu0 0.0
    %4051 = vmatprep.subr.mxu0 0.0
    %4052 = vmatpush1.msra.mxu0 0.0
    %4053 = vmatprep.subr.mxu0 0.0
    %4054 = vmatpush1.msra.mxu0 0.0
    %4055 = vmatprep.subr.mxu0 0.0
    %4056 = vmatpush1.msra.mxu0 0.0
    %4057 = vmatprep.subr.mxu0 0.0
    %4058 = vmatpush1.msra.mxu0 0.0
    %4059 = vmatprep.subr.mxu0 0.0
    %4060 = vmatpush1.msra.mxu0 0.0
    %4061 = vmatprep.subr.mxu0 0.0
    %4062 = vmatpush1.msra.mxu0 0.0
    %4063 = vmatprep.subr.mxu0 0.0
    %4064 = vmatpush1.msra.mxu0 0.0
    %4065 = vmatprep.subr.mxu0 0.0
    %4066 = vmatpush1.msra.mxu0 0.0
    %4067 = vmatprep.subr.mxu0 0.0
    %4068 = vmatpush1.msra.mxu0 0.0
    %4069 = vmatprep.subr.mxu0 0.0
    %4070 = vmatpush1.msra.mxu0 0.0
    %4071 = vmatprep.subr.mxu0 0.0
    %4072 = vmatpush1.msra.mxu0 0.0
    %4073 = vmatprep.subr.mxu0 0.0
    %4074 = vmatpush1.msra.mxu0 0.0
    %4075 = vmatprep.subr.mxu0 0.0
    %4076 = vmatpush1.msra.mxu0 0.0
    %4077 = vmatprep.subr.mxu0 0.0
    %4078 = vmatpush1.msra.mxu0 0.0
    %4079 = vmatprep.subr.mxu0 0.0
    %4080 = vmatpush1.msra.mxu0 0.0
    %4081 = vmatprep.subr.mxu0 0.0
    %4082 = vmatpush1.msra.mxu0 0.0
    %4083 = vmatprep.subr.mxu0 0.0
    %4084 = vmatpush1.msra.mxu0 0.0
    %4085 = vmatprep.mubr.f32.mxu0 0.0
    %4086 = vmatmul.mubr.f32.gmra.mrb[0].mxu0 %v4019
    %v4087 = vpop.f32.mrb[0].mxu0
    %v4088 = vadd.f32 0.0, %v4087
    %v4089 = vpop.f32.mrb[0].mxu0
    %4090 = vdwg.mxu0
    %v4092 = vsel %vm161, %v4012, 0
    %v4095 = vsel %vm161, %v4088, 0
    %4097 = vmatprep.subr.mxu0 0.0
    %4098 = vmatpush1.msra.mxu0 %v2511
    %4099 = vmatprep.subr.mxu0 0.0
    %4100 = vmatpush1.msra.mxu0 0.0
    %4101 = vmatprep.subr.mxu0 0.0
    %4102 = vmatpush1.msra.mxu0 0.0
    %4103 = vmatprep.subr.mxu0 0.0
    %4104 = vmatpush1.msra.mxu0 0.0
    %4105 = vmatprep.subr.mxu0 0.0
    %4106 = vmatpush1.msra.mxu0 0.0
    %4107 = vmatprep.subr.mxu0 0.0
    %4108 = vmatpush1.msra.mxu0 0.0
    %4109 = vmatprep.subr.mxu0 0.0
    %4110 = vmatpush1.msra.mxu0 0.0
    %4111 = vmatprep.subr.mxu0 0.0
    %4112 = vmatpush1.msra.mxu0 0.0
    %4113 = vmatprep.subr.mxu0 0.0
    %4114 = vmatpush1.msra.mxu0 0.0
    %4115 = vmatprep.subr.mxu0 0.0
    %4116 = vmatpush1.msra.mxu0 0.0
    %4117 = vmatprep.subr.mxu0 0.0
    %4118 = vmatpush1.msra.mxu0 0.0
    %4119 = vmatprep.subr.mxu0 0.0
    %4120 = vmatpush1.msra.mxu0 0.0
    %4121 = vmatprep.subr.mxu0 0.0
    %4122 = vmatpush1.msra.mxu0 0.0
    %4123 = vmatprep.subr.mxu0 0.0
    %4124 = vmatpush1.msra.mxu0 0.0
    %4125 = vmatprep.subr.mxu0 0.0
    %4126 = vmatpush1.msra.mxu0 0.0
    %4127 = vmatprep.subr.mxu0 0.0
    %4128 = vmatpush1.msra.mxu0 0.0
    %4129 = vmatprep.subr.mxu0 0.0
    %4130 = vmatpush1.msra.mxu0 0.0
    %4131 = vmatprep.subr.mxu0 0.0
    %4132 = vmatpush1.msra.mxu0 0.0
    %4133 = vmatprep.subr.mxu0 0.0
    %4134 = vmatpush1.msra.mxu0 0.0
    %4135 = vmatprep.subr.mxu0 0.0
    %4136 = vmatpush1.msra.mxu0 0.0
    %4137 = vmatprep.subr.mxu0 0.0
    %4138 = vmatpush1.msra.mxu0 0.0
    %4139 = vmatprep.subr.mxu0 0.0
    %4140 = vmatpush1.msra.mxu0 0.0
    %4141 = vmatprep.subr.mxu0 0.0
    %4142 = vmatpush1.msra.mxu0 0.0
    %4143 = vmatprep.subr.mxu0 0.0
    %4144 = vmatpush1.msra.mxu0 0.0
    %4145 = vmatprep.subr.mxu0 0.0
    %4146 = vmatpush1.msra.mxu0 0.0
    %4147 = vmatprep.subr.mxu0 0.0
    %4148 = vmatpush1.msra.mxu0 0.0
    %4149 = vmatprep.subr.mxu0 0.0
    %4150 = vmatpush1.msra.mxu0 0.0
    %4151 = vmatprep.subr.mxu0 0.0
    %4152 = vmatpush1.msra.mxu0 0.0
    %4153 = vmatprep.subr.mxu0 0.0
    %4154 = vmatpush1.msra.mxu0 0.0
    %4155 = vmatprep.subr.mxu0 0.0
    %4156 = vmatpush1.msra.mxu0 0.0
    %4157 = vmatprep.subr.mxu0 0.0
    %4158 = vmatpush1.msra.mxu0 0.0
    %4159 = vmatprep.subr.mxu0 0.0
    %4160 = vmatpush1.msra.mxu0 0.0
    %4161 = vmatprep.mubr.f32.mxu0 0.0
    %4162 = vmatmul.mubr.f32.gmra.mrb[0].mxu0 %v4092
    %v4163 = vpop.f32.mrb[0].mxu0
    %v4164 = vadd.f32 0.0, %v4163
    %v4165 = vpop.f32.mrb[0].mxu0
    %4166 = vmatprep.mubr.f32.mxu0 0.0
    %4167 = vmatmul.mubr.f32.gmra.mrb[0].mxu0 %v4095
    %v4168 = vpop.f32.mrb[0].mxu0
    %v4169 = vadd.f32 0.0, %v4168
    %v4170 = vpop.f32.mrb[0].mxu0
    %4171 = vdwg.mxu0
    %v4172 = vadd.f32 %v3755, %v4164
    %v4173 = vadd.f32 %v3756, %v4169
    %s4174 = scalar_lea.vmem [#allocation10], 1
    %v4175 = vld [vmem:[%s4174] sm:$0x1]
    %v4177 = vlaneseq
    %v4178 = vshrl.u32 %v4177, 7
    %v4179 = vsub.s32 0, %v4178
    %v4180 = vrot.slane %v4175, %v4179
    %v4182 = vadd.f32 %v4172, %v4180
    %v4183 = vadd.f32 %v4173, %v4180
    %v4184 = vadd.f32 %v2411, %v4182
    %v4185 = vadd.f32 %v2412, %v4183
    %s4186 = scalar_lea.vmem %s9, 1
    %v4187 = vld [vmem:[%s4186] sm:$0x1]
    %s4188 = scalar_lea.vmem %s10, 1
    %v4189 = vld [vmem:[%s4188] sm:$0x1]
    %v4190 = vsel %vm375, %v4184, 0.0
    %4191 = vadd.xlane.f32.xlu0 %v4190
    %v4192 = vpop.xlane.xlu0 %4191
    %v4193 = vsel %vm375, %v4185, 0.0
    %4194 = vadd.xlane.f32.xlu0 %v4193
    %v4195 = vpop.xlane.xlu0 %4194
    %v4196 = vmul.f32 %v4192, %v2142
    %v4197 = vmul.f32 %v4195, %v2142
    %v4198 = vsub.f32 %v4184, %v4196
    %v4199 = vsub.f32 %v4185, %v4197
    %v4200 = vmul.f32 %v4198, %v4198
    %v4201 = vmul.f32 %v4199, %v4199
    %v4202 = vsel %vm375, %v4200, 0.0
    %4203 = vadd.xlane.f32.xlu0 %v4202
    %v4204 = vpop.xlane.xlu0 %4203
    %v4205 = vsel %vm375, %v4201, 0.0
    %4206 = vadd.xlane.f32.xlu0 %v4205
    %v4207 = vpop.xlane.xlu0 %4206
    %v4208 = vmul.f32 %v4204, %v2142
    %v4209 = vmul.f32 %v4207, %v2142
    %v4210 = vadd.f32 %v4208, 1e-05
    %v4211 = vadd.f32 %v4209, 1e-05
    %v4212 = vrsqrt.pop %v4210
    %v4213 = vrsqrt.pop %v4211
    %v4214 = vmul.f32 %v4198, %v4212
    %v4215 = vmul.f32 %v4199, %v4213
    %v4217 = vlaneseq
    %v4218 = vshrl.u32 %v4217, 7
    %v4219 = vsub.s32 0, %v4218
    %v4220 = vrot.slane %v4187, %v4219
    %v4222 = vmul.f32 %v4214, %v4220
    %v4223 = vmul.f32 %v4215, %v4220
    %v4225 = vlaneseq
    %v4226 = vshrl.u32 %v4225, 7
    %v4227 = vsub.s32 0, %v4226
    %v4228 = vrot.slane %v4189, %v4227
    %v4230 = vadd.f32 %v4222, %v4228
    %v4231 = vadd.f32 %v4223, %v4228
    %s4232 = scalar_lea.vmem %s11, 2
    %v4233 = vld [vmem:[%s4232] sm:$0x3]
    %s4234 = scalar_lea.vmem %s12, 1
    %v4235 = vld [vmem:[%s4234] sm:$0x1]
    %s4236 = scalar_lea.vmem %s13, 2
    %v4237 = vld [vmem:[%s4236] sm:$0x3]
    %v4238 = vlaneseq
    %v4239 = vshrl.u32 %v4238, 7
    %v4240 = vsub.s32 0, %v4239
    %v4241 = vrot.slane %v4233, %v4240
    %v4242 = vmul.f32 %v4230, %v4241
    %v4243 = vmul.f32 %v4231, %v4241
    %v4244 = vsel %vm375, %v4242, 0.0
    %4245 = vadd.xlane.f32.xlu0 %v4244
    %v4246 = vpop.xlane.xlu0 %4245
    %v4247 = vsel %vm375, %v4243, 0.0
    %4248 = vadd.xlane.f32.xlu0 %v4247
    %v4249 = vpop.xlane.xlu0 %4248
    %v4251 = vlaneseq
    %v4252 = vshrl.u32 %v4251, 7
    %v4253 = vsub.s32 0, %v4252
    %v4254 = vrot.slane %v4235, %v4253
    %v4256 = vadd.f32 %v4246, %v4254
    %v4257 = vadd.f32 %v4249, %v4254
    %v4258 = vmul.f32 %v4256, 0.5
    %v4259 = vmul.f32 %v4257, 0.5
    %v4260 = vmul.f32 %v4256, 0.70710677
    %v4261 = vmul.f32 %v4257, 0.70710677
    %vm4262 = vcmp.ge.f32.partialorder %v4260, 0.0
    %vm4263 = vcmp.ge.f32.partialorder %v4261, 0.0
    %v4264 = vsel %vm4262, 1.0, -1.0
    %v4265 = vsel %vm4263, 1.0, -1.0
    %v4266 = vand.u32 2147483647, %v4260
    %v4267 = vand.u32 2147483647, %v4261
    %v4268 = vmul.f32 %v4266, 0.3275911
    %v4269 = vmul.f32 %v4267, 0.3275911
    %v4270 = vadd.f32 %v4268, 1.0
    %v4271 = vadd.f32 %v4269, 1.0
    %v4272 = vrcp.pop %v4270
    %v4273 = vmul.f32 1.0, %v4272
    %v4274 = vrcp.pop %v4271
    %v4275 = vmul.f32 1.0, %v4274
    %v4276 = vmul.f32 %v4273, 1.0614054
    %v4277 = vmul.f32 %v4275, 1.0614054
    %v4278 = vadd.f32 %v4276, -1.4531521
    %v4279 = vadd.f32 %v4277, -1.4531521
    %v4280 = vmul.f32 %v4278, %v4273
    %v4281 = vmul.f32 %v4279, %v4275
    %v4282 = vadd.f32 %v4280, 1.4214138
    %v4283 = vadd.f32 %v4281, 1.4214138
    %v4284 = vmul.f32 %v4282, %v4273
    %v4285 = vmul.f32 %v4283, %v4275
    %v4286 = vadd.f32 %v4284, -0.28449672
    %v4287 = vadd.f32 %v4285, -0.28449672
    %v4288 = vmul.f32 %v4286, %v4273
    %v4289 = vmul.f32 %v4287, %v4275
    %v4290 = vadd.f32 %v4288, 0.2548296
    %v4291 = vadd.f32 %v4289, 0.2548296
    %v4292 = vmul.f32 %v4290, %v4273
    %v4293 = vmul.f32 %v4291, %v4275
    %v4294 = vsub.f32 0.0, %v4266
    %v4295 = vsub.f32 0.0, %v4267
    %v4296 = vmul.f32 %v4294, %v4266
    %v4297 = vmul.f32 %v4295, %v4267
    %v4298 = vmul.f32 %v4296, 1.442695
    %v4299 = vpow.pop %v4298
    %v4300 = vmul.f32 %v4297, 1.442695
    %v4301 = vpow.pop %v4300
    %v4302 = vmul.f32 %v4292, %v4299
    %v4303 = vmul.f32 %v4293, %v4301
    %v4304 = vsub.f32 1.0, %v4302
    %v4305 = vsub.f32 1.0, %v4303
    %v4306 = vmul.f32 %v4264, %v4304
    %v4307 = vmul.f32 %v4265, %v4305
    %v4308 = vadd.f32 %v4306, 1.0
    %v4309 = vadd.f32 %v4307, 1.0
    %v4310 = vmul.f32 %v4258, %v4308
    %v4311 = vmul.f32 %v4259, %v4309
    %4313 = vset.pattern.permute.xlu0 0
    %4314 = vperm.xlu0 %4313, %v4310
    %v4315 = vpop.permute.xlu0 %4314
    %4318 = vset.pattern.permute.xlu0 0
    %4319 = vperm.xlu0 %4318, %v4311
    %v4320 = vpop.permute.xlu0 %4319
    %v4322 = vlaneseq
    %v4323 = vshrl.u32 %v4322, 7
    %v4324 = vsub.s32 0, %v4323
    %v4325 = vrot.slane %v4237, %v4324
    %v4326 = vmul.f32 %v4315, %v4325
    %v4327 = vmul.f32 %v4320, %v4325
    %v4328 = vlaneseq
    %v4329 = vshrl.u32 %v4328, 7
    %v4330 = vsub.s32 1, %v4329
    %v4331 = vrot.slane %v4233, %v4330
    %v4332 = vmul.f32 %v4230, %v4331
    %v4333 = vmul.f32 %v4231, %v4331
    %v4334 = vsel %vm375, %v4332, 0.0
    %4335 = vadd.xlane.f32.xlu0 %v4334
    %v4336 = vpop.xlane.xlu0 %4335
    %v4337 = vsel %vm375, %v4333, 0.0
    %4338 = vadd.xlane.f32.xlu0 %v4337
    %v4339 = vpop.xlane.xlu0 %4338
    %v4340 = vadd.f32 %v4336, %v4254
    %v4341 = vadd.f32 %v4339, %v4254
    %v4342 = vmul.f32 %v4340, 0.5
    %v4343 = vmul.f32 %v4341, 0.5
    %v4344 = vmul.f32 %v4340, 0.70710677
    %v4345 = vmul.f32 %v4341, 0.70710677
    %vm4346 = vcmp.ge.f32.partialorder %v4344, 0.0
    %vm4347 = vcmp.ge.f32.partialorder %v4345, 0.0
    %v4348 = vsel %vm4346, 1.0, -1.0
    %v4349 = vsel %vm4347, 1.0, -1.0
    %v4350 = vand.u32 2147483647, %v4344
    %v4351 = vand.u32 2147483647, %v4345
    %v4352 = vmul.f32 %v4350, 0.3275911
    %v4353 = vmul.f32 %v4351, 0.3275911
    %v4354 = vadd.f32 %v4352, 1.0
    %v4355 = vadd.f32 %v4353, 1.0
    %v4356 = vrcp.pop %v4354
    %v4357 = vmul.f32 1.0, %v4356
    %v4358 = vrcp.pop %v4355
    %v4359 = vmul.f32 1.0, %v4358
    %v4360 = vmul.f32 %v4357, 1.0614054
    %v4361 = vmul.f32 %v4359, 1.0614054
    %v4362 = vadd.f32 %v4360, -1.4531521
    %v4363 = vadd.f32 %v4361, -1.4531521
    %v4364 = vmul.f32 %v4362, %v4357
    %v4365 = vmul.f32 %v4363, %v4359
    %v4366 = vadd.f32 %v4364, 1.4214138
    %v4367 = vadd.f32 %v4365, 1.4214138
    %v4368 = vmul.f32 %v4366, %v4357
    %v4369 = vmul.f32 %v4367, %v4359
    %v4370 = vadd.f32 %v4368, -0.28449672
    %v4371 = vadd.f32 %v4369, -0.28449672
    %v4372 = vmul.f32 %v4370, %v4357
    %v4373 = vmul.f32 %v4371, %v4359
    %v4374 = vadd.f32 %v4372, 0.2548296
    %v4375 = vadd.f32 %v4373, 0.2548296
    %v4376 = vmul.f32 %v4374, %v4357
    %v4377 = vmul.f32 %v4375, %v4359
    %v4378 = vsub.f32 0.0, %v4350
    %v4379 = vsub.f32 0.0, %v4351
    %v4380 = vmul.f32 %v4378, %v4350
    %v4381 = vmul.f32 %v4379, %v4351
    %v4382 = vmul.f32 %v4380, 1.442695
    %v4383 = vpow.pop %v4382
    %v4384 = vmul.f32 %v4381, 1.442695
    %v4385 = vpow.pop %v4384
    %v4386 = vmul.f32 %v4376, %v4383
    %v4387 = vmul.f32 %v4377, %v4385
    %v4388 = vsub.f32 1.0, %v4386
    %v4389 = vsub.f32 1.0, %v4387
    %v4390 = vmul.f32 %v4348, %v4388
    %v4391 = vmul.f32 %v4349, %v4389
    %v4392 = vadd.f32 %v4390, 1.0
    %v4393 = vadd.f32 %v4391, 1.0
    %v4394 = vmul.f32 %v4342, %v4392
    %v4395 = vmul.f32 %v4343, %v4393
    %4397 = vset.pattern.permute.xlu0 1
    %4398 = vperm.xlu0 %4397, %v4394
    %v4399 = vpop.permute.xlu0 %4398
    %4402 = vset.pattern.permute.xlu0 1
    %4403 = vperm.xlu0 %4402, %v4395
    %v4404 = vpop.permute.xlu0 %4403
    %v4406 = vlaneseq
    %v4407 = vshrl.u32 %v4406, 7
    %v4408 = vsub.s32 1, %v4407
    %v4409 = vrot.slane %v4237, %v4408
    %v4410 = vmul.f32 %v4399, %v4409
    %v4411 = vmul.f32 %v4404, %v4409
    %v4412 = vadd.f32 %v4326, %v4410
    %v4413 = vadd.f32 %v4327, %v4411
    %s4414 = scalar_lea.vmem %s14, 1
    %v4415 = vld [vmem:[%s4414] sm:$0x1]
    %v4417 = vlaneseq
    %v4418 = vshrl.u32 %v4417, 7
    %v4419 = vsub.s32 0, %v4418
    %v4420 = vrot.slane %v4415, %v4419
    %v4422 = vadd.f32 %v4412, %v4420
    %v4423 = vadd.f32 %v4413, %v4420
    %v4424 = vadd.f32 %v4230, %v4422
    %v4425 = vadd.f32 %v4231, %v4423
    %s4426 = scalar_lea.vmem %s15, 1
    %v4427 = vld [vmem:[%s4426] sm:$0x1]
    %s4428 = scalar_lea.vmem %s16, 1
    %v4429 = vld [vmem:[%s4428] sm:$0x1]
    %v4430 = vsel %vm375, %v4424, 0.0
    %4431 = vadd.xlane.f32.xlu0 %v4430
    %v4432 = vpop.xlane.xlu0 %4431
    %v4433 = vsel %vm375, %v4425, 0.0
    %4434 = vadd.xlane.f32.xlu0 %v4433
    %v4435 = vpop.xlane.xlu0 %4434
    %v4436 = vmul.f32 %v4432, %v2142
    %v4437 = vmul.f32 %v4435, %v2142
    %v4438 = vsub.f32 %v4424, %v4436
    %v4439 = vsub.f32 %v4425, %v4437
    %v4440 = vmul.f32 %v4438, %v4438
    %v4441 = vmul.f32 %v4439, %v4439
    %v4442 = vsel %vm375, %v4440, 0.0
    %4443 = vadd.xlane.f32.xlu0 %v4442
    %v4444 = vpop.xlane.xlu0 %4443
    %v4445 = vsel %vm375, %v4441, 0.0
    %4446 = vadd.xlane.f32.xlu0 %v4445
    %v4447 = vpop.xlane.xlu0 %4446
    %v4448 = vmul.f32 %v4444, %v2142
    %v4449 = vmul.f32 %v4447, %v2142
    %v4450 = vadd.f32 %v4448, 1e-05
    %v4451 = vadd.f32 %v4449, 1e-05
    %v4452 = vrsqrt.pop %v4450
    %v4453 = vrsqrt.pop %v4451
    %v4454 = vmul.f32 %v4438, %v4452
    %v4455 = vmul.f32 %v4439, %v4453
    %v4457 = vlaneseq
    %v4458 = vshrl.u32 %v4457, 7
    %v4459 = vsub.s32 0, %v4458
    %v4460 = vrot.slane %v4427, %v4459
    %v4462 = vmul.f32 %v4454, %v4460
    %v4463 = vmul.f32 %v4455, %v4460
    %v4465 = vlaneseq
    %v4466 = vshrl.u32 %v4465, 7
    %v4467 = vsub.s32 0, %v4466
    %v4468 = vrot.slane %v4429, %v4467
    %v4470 = vadd.f32 %v4462, %v4468
    %v4471 = vadd.f32 %v4463, %v4468
    %v4472 = vsub.f32 1.0, %v329
    %v4473 = vlaneseq
    %v4474 = vshrl.u32 %v4473, 7
    %v4475 = vsub.s32 0, %v4474
    %v4476 = vrot.slane %v4472, %v4475
    %4478 = vbcast.lane.b32.xlu0 %v4476, 256
    %v4479 = vpop.permute.xlu0 %4478
    %v4480 = vlaneseq
    %v4481 = vshrl.u32 %v4480, 7
    %v4482 = vsub.s32 1, %v4481
    %v4483 = vrot.slane %v4472, %v4482
    %4485 = vbcast.lane.b32.xlu0 %v4483, 256
    %v4486 = vpop.permute.xlu0 %4485
    %v4487 = vmul.f32 %v4470, %v4479
    %v4488 = vmul.f32 %v4471, %v4486
    %v4489 = vsel %vm375, %v4487, 0.0
    %v4490 = vrot.slane %v4489, 4
    %v4491 = vadd.f32 %v4489, %v4490
    %v4492 = vrot.slane %v4491, 2
    %v4493 = vadd.f32 %v4491, %v4492
    %v4494 = vrot.slane %v4493, 1
    %v4495 = vadd.f32 %v4493, %v4494
    %v4496 = vsel %vm375, %v4488, 0.0
    %v4497 = vrot.slane %v4496, 4
    %v4498 = vadd.f32 %v4496, %v4497
    %v4499 = vrot.slane %v4498, 2
    %v4500 = vadd.f32 %v4498, %v4499
    %v4501 = vrot.slane %v4500, 1
    %v4502 = vadd.f32 %v4500, %v4501
    %vm4503 = vcmask 58368
    %v4504 = vsel %vm4503, %v4472, 0.0
    %4505 = vadd.xlane.f32.xlu0 %v4504
    %v4506 = vpop.xlane.xlu0 %4505
    %v4507 = vrcp.pop %v4506
    %v4509 = vrot.slane %v4507, 1
    %v4512 = vmul.f32 %v4495, %v4507
    %v4513 = vmul.f32 %v4502, %v4509
    %v4514 = vld [vmem:[%s17] sm:$0xff]
    %v4515 = vld [vmem:[%s17 + $0x8] sm:$0xff]
    %v4516 = vld [vmem:[%s17 + $0x10] sm:$0xff]
    %v4517 = vld [vmem:[%s17 + $0x18] sm:$0xff]
    %v4518 = vld [vmem:[%s18] sm:$0x1]
    %v4520 = vlaneseq
    %v4521 = vshrl.u32 %v4520, 7
    %v4522 = vsub.s32 0, %v4521
    %v4523 = vrot.slane %v4518, %v4522
    %v4527 = vrot.slane %v4513, 7
    %vm4528 = vcmask 1041409
    %v4529 = vsel %vm4528, %v4527, %v4512
    %v4530 = vsel %vm375, %v4529, 0
    %4532 = vmatprep.subr.mxu0 0.0
    %4533 = vmatpush1.msra.mxu0 %v4514
    %4534 = vmatprep.subr.mxu0 0.0
    %4535 = vmatpush1.msra.mxu0 %v4515
    %4536 = vmatprep.subr.mxu0 0.0
    %4537 = vmatpush1.msra.mxu0 %v4516
    %4538 = vmatprep.subr.mxu0 0.0
    %4539 = vmatpush1.msra.mxu0 %v4517
    %4540 = vmatprep.subr.mxu0 0.0
    %4541 = vmatpush1.msra.mxu0 0.0
    %4542 = vmatprep.subr.mxu0 0.0
    %4543 = vmatpush1.msra.mxu0 0.0
    %4544 = vmatprep.subr.mxu0 0.0
    %4545 = vmatpush1.msra.mxu0 0.0
    %4546 = vmatprep.subr.mxu0 0.0
    %4547 = vmatpush1.msra.mxu0 0.0
    %4548 = vmatprep.subr.mxu0 0.0
    %4549 = vmatpush1.msra.mxu0 0.0
    %4550 = vmatprep.subr.mxu0 0.0
    %4551 = vmatpush1.msra.mxu0 0.0
    %4552 = vmatprep.subr.mxu0 0.0
    %4553 = vmatpush1.msra.mxu0 0.0
    %4554 = vmatprep.subr.mxu0 0.0
    %4555 = vmatpush1.msra.mxu0 0.0
    %4556 = vmatprep.subr.mxu0 0.0
    %4557 = vmatpush1.msra.mxu0 0.0
    %4558 = vmatprep.subr.mxu0 0.0
    %4559 = vmatpush1.msra.mxu0 0.0
    %4560 = vmatprep.subr.mxu0 0.0
    %4561 = vmatpush1.msra.mxu0 0.0
    %4562 = vmatprep.subr.mxu0 0.0
    %4563 = vmatpush1.msra.mxu0 0.0
    %4564 = vmatprep.subr.mxu0 0.0
    %4565 = vmatpush1.msra.mxu0 0.0
    %4566 = vmatprep.subr.mxu0 0.0
    %4567 = vmatpush1.msra.mxu0 0.0
    %4568 = vmatprep.subr.mxu0 0.0
    %4569 = vmatpush1.msra.mxu0 0.0
    %4570 = vmatprep.subr.mxu0 0.0
    %4571 = vmatpush1.msra.mxu0 0.0
    %4572 = vmatprep.subr.mxu0 0.0
    %4573 = vmatpush1.msra.mxu0 0.0
    %4574 = vmatprep.subr.mxu0 0.0
    %4575 = vmatpush1.msra.mxu0 0.0
    %4576 = vmatprep.subr.mxu0 0.0
    %4577 = vmatpush1.msra.mxu0 0.0
    %4578 = vmatprep.subr.mxu0 0.0
    %4579 = vmatpush1.msra.mxu0 0.0
    %4580 = vmatprep.subr.mxu0 0.0
    %4581 = vmatpush1.msra.mxu0 0.0
    %4582 = vmatprep.subr.mxu0 0.0
    %4583 = vmatpush1.msra.mxu0 0.0
    %4584 = vmatprep.subr.mxu0 0.0
    %4585 = vmatpush1.msra.mxu0 0.0
    %4586 = vmatprep.subr.mxu0 0.0
    %4587 = vmatpush1.msra.mxu0 0.0
    %4588 = vmatprep.subr.mxu0 0.0
    %4589 = vmatpush1.msra.mxu0 0.0
    %4590 = vmatprep.subr.mxu0 0.0
    %4591 = vmatpush1.msra.mxu0 0.0
    %4592 = vmatprep.subr.mxu0 0.0
    %4593 = vmatpush1.msra.mxu0 0.0
    %4594 = vmatprep.subr.mxu0 0.0
    %4595 = vmatpush1.msra.mxu0 0.0
    %4596 = vmatprep.mubr.f32.mxu0 0.0
    %4597 = vmatmul.mubr.f32.gmra.mrb[0].mxu0 %v4530
    %v4598 = vpop.f32.mrb[0].mxu0
    %v4599 = vadd.f32 %v4523, %v4598
    %v4600 = vpop.f32.mrb[0].mxu0
    %4601 = vdwg.mxu0
    %vm4602 = vcmask 33792
    %4603 = vst.msk [vmem:[#allocation11] sm:$0x3] %vm4602, %v4599
    // Predicated region
    $region98: #{tpu_custom_call.1} parent=1 // pred_check
      _
    $region99: #{tpu_custom_call.1} parent=1 // pred_check_branch
      %4605 = sbr.rel (0) target = $region101
    $region100: #{tpu_custom_call.1} parent=1 // pred_region
      %s4607 = ssub.s32 32, 32
      %4608 = vsyncadd [#allocation4], %s4607
      %s4610 = sshll.u32 [#allocation11], 4
      %s4611 = int_to_ptr.vmem [resolvable:$true] %s4610
      %4613 = dma.vmem_to_hbm [thread:$0]  %s4611, 32, %s19, [#allocation4]
    $region101: #{tpu_custom_call.1} parent=1 // pred_fallthru
      _
    // Predicated region
    $region102: #{tpu_custom_call.1} parent=1 // pred_check
      _
    $region103: #{tpu_custom_call.1} parent=1 // pred_check_branch
      %4615 = sbr.rel (0) target = $region105
    $region104: #{tpu_custom_call.1} parent=1 // pred_region
      %4616 = dma.done [#allocation4], 32
    $region105: #{tpu_custom_call.1} parent=1 // pred_fallthru
      _
    %4617 = vsyncpa [#allocation3], 1
    %4618 = vsyncpa [#allocation6], 1
    %4619 = vsyncpa [#allocation9], 1
    %4620 = vsyncpa [#allocation4], 1

</llo_original>
